<compile_context>
chip_gen: v5e
topology: v5e:2x2
jax: 0.10.0
libtpu: 0.0.40
codegen_flags: <defaults>
</compile_context>

<pallas_src>
import functools

import jax
import jax.numpy as jnp
from jax.experimental import pallas as pl
from jax.experimental.pallas import tpu as pltpu


# ----------------------------------------------------------------------------
# In-kernel helpers (traced inline; operate on values)
# ----------------------------------------------------------------------------

def _layernorm(x, g, b, eps=1e-5):
    mean = jnp.mean(x, axis=-1, keepdims=True)
    var = jnp.mean(jnp.square(x - mean), axis=-1, keepdims=True)
    return (x - mean) * jax.lax.rsqrt(var + eps) * g + b


def _gru_step_fused(h_prev, gi_rz, gi_n, whh, bhh, hh):
    """One PyTorch GRU step with a single fused recurrent matmul.

    whh: (H, 3H) columns [r | z | n]; bhh: (1, 3H).
    gi_rz: (B, 2H) precomputed input projection for r,z; gi_n: (B, H) for n.

      r = sigmoid(gi_r + h W_hr^T + b_hr)
      z = sigmoid(gi_z + h W_hz^T + b_hz)
      n = tanh  (gi_n + r * (h W_hn^T + b_hn))
      h' = (1 - z) * n + z * h
    """
    gh = jnp.dot(h_prev, whh, preferred_element_type=jnp.float32) + bhh
    rz = jax.nn.sigmoid(gi_rz + gh[:, 0:2 * hh])      # one EUP pass for r and z
    r = rz[:, 0:hh]
    z = rz[:, hh:2 * hh]
    n = jnp.tanh(gi_n + r * gh[:, 2 * hh:3 * hh])
    return (1.0 - z) * n + z * h_prev


# ----------------------------------------------------------------------------
# The fused kernel
# ----------------------------------------------------------------------------

def _fused_kernel(
    # inputs -------------------------------------------------------------
    ids_ref,
    se_f_emb, se_f_bih, se_f_whh, se_f_bhh,      # SentenceEncoder GRU fwd (emb folded)
    se_b_emb, se_b_bih, se_b_bhh,                # SentenceEncoder GRU bwd (1 step, h0=0)
    se_ln_g, se_ln_b, se_lin_w, se_lin_b,        # SentenceEncoder LN / linear
    enc_lin_w, enc_lin_b,                        # Encoder.linear
    gf_wih, gf_whh, gf_bih, gf_bhh,              # Encoder.gru_F (fused gates)
    lnf_g, lnf_b,                                # Encoder.LN_F
    lin_new_w, lin_new_b,                        # Encoder.linear_new
    bi_wih, bi_bih, bi_whh, bi_bhh,              # Encoder.gru (block-diag fused)
    ln_g, ln_b,                                  # Encoder.LN
    out_w, out_b,                                # SequenceTaggle1.linear
    # outputs ------------------------------------------------------------
    logits_ref, hidden_ref,
    # statics ------------------------------------------------------------
    *, ns, sl, b, h,
):
    f32 = jnp.float32
    nb = ns * b                  # all sentences batched for the sentence encoder
    t_tok = sl * nb              # total tokens (time-major: t, sentence, batch)
    v = se_f_emb.shape[0]

    # --- embedding lookup folded into the sentence-encoder input projection ----
    # Note: out-of-range ids map to an all-zero row instead of erroring.
    ids = ids_ref[...]                                            # (T, 1) int32
    tok_iota = jax.lax.broadcasted_iota(jnp.int32, (t_tok, v), 1)
    onehot = (tok_iota == ids).astype(f32)                        # (T, V)
    gi = jnp.dot(onehot, se_f_emb[...], preferred_element_type=f32) + se_f_bih[...]
    gi_rz = gi[:, 0:2 * h]                                        # (T, 2H)
    gi_n = gi[:, 2 * h:3 * h]                                     # (T, H)

    # --- SentenceEncoder forward direction over tokens, batch = NS*B -----------
    whh = se_f_whh[...]
    bhh = se_f_bhh[...]
    h_f = jnp.zeros((nb, h), f32)
    for t in range(sl):
        lo, hi = t * nb, (t + 1) * nb
        h_f = _gru_step_fused(h_f, gi_rz[lo:hi], gi_n[lo:hi], whh, bhh, h)

    # Reverse direction: only its output at the LAST token position is consumed
    # (cell[-1]; LN / linear are position-wise) == one GRU step from h0 = 0 on
    # token SL-1.  With h0 = 0 the recurrent matmul vanishes (gh = b_hh).
    gi_b = (jnp.dot(onehot[(sl - 1) * nb:t_tok], se_b_emb[...],
                    preferred_element_type=f32) + se_b_bih[...])  # (NB, 3H)
    bhh_b = se_b_bhh[...]
    rz_b = jax.nn.sigmoid(gi_b[:, 0:2 * h] + bhh_b[:, 0:2 * h])
    n_b = jnp.tanh(gi_b[:, 2 * h:3 * h] + rz_b[:, 0:h] * bhh_b[:, 2 * h:3 * h])
    h_b = (1.0 - rz_b[:, h:2 * h]) * n_b                          # z * h0 == 0

    se_out = _layernorm(jnp.concatenate([h_f, h_b], axis=-1),
                        se_ln_g[...], se_ln_b[...])               # (NB, 2H)
    store = (jnp.dot(se_out, se_lin_w[...], preferred_element_type=f32)
             + se_lin_b[...])                                     # (NB, H)

    # --- Encoder ----------------------------------------------------------------
    enc_in = jnp.tanh(jnp.dot(store, enc_lin_w[...], preferred_element_type=f32)
                      + enc_lin_b[...])                           # (NS*B, H)

    # gru_F: unidirectional over sentences, batch = B
    gi = jnp.dot(enc_in, gf_wih[...], preferred_element_type=f32) + gf_bih[...]
    gi_rz = gi[:, 0:2 * h]
    gi_n = gi[:, 2 * h:3 * h]
    whh = gf_whh[...]
    bhh = gf_bhh[...]
    h_t = jnp.zeros((b, h), f32)
    hs = []
    for s in range(ns):
        lo, hi = s * b, (s + 1) * b
        h_t = _gru_step_fused(h_t, gi_rz[lo:hi], gi_n[lo:hi], whh, bhh, h)
        hs.append(h_t)
    lnf_out = _layernorm(jnp.concatenate(hs, axis=0), lnf_g[...], lnf_b[...])
    # dropout = identity (inference)
    new = (jnp.dot(jnp.concatenate([lnf_out, enc_in], axis=-1), lin_new_w[...],
                   preferred_element_type=f32) + lin_new_b[...])  # (NS*B, H)

    # Bidirectional GRU over sentences: both directions fused into ONE
    # block-diagonal recurrent matmul + ONE sigmoid + ONE tanh per step.
    gi2 = jnp.dot(new, bi_wih[...], preferred_element_type=f32) + bi_bih[...]  # (NS*B, 6H)
    gi_fd = gi2[:, 0:3 * h]
    gi_bd = gi2[:, 3 * h:6 * h]
    gi_rz_steps, gi_n_steps = [], []
    for i in range(ns):                      # precomputed, off the serial h-chain
        j = ns - 1 - i
        gf_i = gi_fd[i * b:(i + 1) * b]
        gb_j = gi_bd[j * b:(j + 1) * b]
        gi_rz_steps.append(jnp.concatenate(                      # [r_f r_b z_f z_b]
            [gf_i[:, 0:h], gb_j[:, 0:h], gf_i[:, h:2 * h], gb_j[:, h:2 * h]],
            axis=-1))
        gi_n_steps.append(jnp.concatenate(                       # [n_f n_b]
            [gf_i[:, 2 * h:3 * h], gb_j[:, 2 * h:3 * h]], axis=-1))

    whh_bd = bi_whh[...]                                          # (2H, 6H)
    bhh_bd = bi_bhh[...]                                          # (1, 6H)
    h_cat = jnp.zeros((b, 2 * h), f32)                            # [h_fw | h_bw]
    h_steps = []
    for i in range(ns):
        gh = jnp.dot(h_cat, whh_bd, preferred_element_type=f32) + bhh_bd   # (B, 6H)
        rz = jax.nn.sigmoid(gi_rz_steps[i] + gh[:, 0:4 * h])               # (B, 4H)
        r_cat = rz[:, 0:2 * h]
        z_cat = rz[:, 2 * h:4 * h]
        n_cat = jnp.tanh(gi_n_steps[i] + r_cat * gh[:, 4 * h:6 * h])       # (B, 2H)
        h_cat = (1.0 - z_cat) * n_cat + z_cat * h_cat
        h_steps.append(h_cat)

    rows = []
    for i in range(ns):        # fwd output at position i + bwd output at position i
        rows.append(jnp.concatenate(
            [h_steps[i][:, 0:h], h_steps[ns - 1 - i][:, h:2 * h]], axis=-1))
    bi_out = _layernorm(jnp.concatenate(rows, axis=0), ln_g[...], ln_b[...])

    # --- SequenceTaggle1.linear; single lane-dense stores -----------------------
    logits_ref[...] = (jnp.dot(bi_out, out_w[...], preferred_element_type=f32)
                       + out_b[...])                              # (NS*B, O)
    hidden_ref[...] = jnp.concatenate(                            # (2B, H)
        [h_steps[-1][:, 0:h], h_steps[-1][:, h:2 * h]], axis=0)


# ----------------------------------------------------------------------------
# Parameter construction (deterministic, synthetic, pre-fused / pre-transposed)
# ----------------------------------------------------------------------------

def make_params(key, num_embeddings, embedding_dim, hidden_size, output_size):
    h, e = hidden_size, embedding_dim
    keys = iter(jax.random.split(key, 40))

    def u(shape, scale):
        return jax.random.uniform(next(keys), shape, jnp.float32, -scale, scale)

    def gru_fused(din):
        """Synthetic PyTorch-layout GRU params -> fused, pre-transposed layout.

        Returns wih (Din,3H), whh (H,3H), bih (1,3H), bhh (1,3H), gate-column
        order [r | z | n] so x @ wih == x @ [W_ir^T  W_iz^T  W_in^T].
        """
        s = 1.0 / (h ** 0.5)
        w_ih, w_hh = u((3 * h, din), s), u((3 * h, h), s)
        b_ih, b_hh = u((3 * h,), s), u((3 * h,), s)
        return (w_ih.T, w_hh.T, b_ih.reshape(1, 3 * h), b_hh.reshape(1, 3 * h))

    emb = jax.random.normal(next(keys), (num_embeddings, e), jnp.float32)
    se_f = gru_fused(e)          # SentenceEncoder.encoder, forward direction
    se_b = gru_fused(e)          # SentenceEncoder.encoder, backward direction
    gru_f = gru_fused(h)         # Encoder.gru_F
    bi_f = gru_fused(h)          # Encoder.gru, forward direction
    bi_b = gru_fused(h)          # Encoder.gru, backward direction

    # Fold the embedding table into the sentence-encoder input projections:
    # onehot @ (emb @ Wih) == (onehot @ emb) @ Wih.
    se_f_emb = emb @ se_f[0]                                      # (V, 3H)
    se_b_emb = emb @ se_b[0]                                      # (V, 3H)

    # Block-diagonal fused recurrent weights for the sentence-level bi-GRU.
    # Column layout [r_f, r_b, z_f, z_b, n_f, n_b]; rows 0:H act on h_fwd,
    # rows H:2H act on h_bwd.
    whh_bd = jnp.zeros((2 * h, 6 * h), jnp.float32)
    for g in range(3):
        whh_bd = whh_bd.at[0:h, (2 * g) * h:(2 * g + 1) * h].set(
            bi_f[1][:, g * h:(g + 1) * h])
        whh_bd = whh_bd.at[h:2 * h, (2 * g + 1) * h:(2 * g + 2) * h].set(
            bi_b[1][:, g * h:(g + 1) * h])
    bhh_bd = jnp.concatenate(
        [(bi_f[3] if d == 0 else bi_b[3])[:, g * h:(g + 1) * h]
         for g in range(3) for d in range(2)], axis=-1)           # (1, 6H)
    bi_wih = jnp.concatenate([bi_f[0], bi_b[0]], axis=-1)         # (H, 6H)
    bi_bih = jnp.concatenate([bi_f[2], bi_b[2]], axis=-1)         # (1, 6H)

    s2h = 1.0 / ((2 * h) ** 0.5)
    sh = 1.0 / (h ** 0.5)
    return {
        # SentenceEncoder.encoder : GRU(E, H, bidirectional=True)
        "se_f_emb": se_f_emb, "se_f_bih": se_f[2],
        "se_f_whh": se_f[1], "se_f_bhh": se_f[3],
        "se_b_emb": se_b_emb, "se_b_bih": se_b[2], "se_b_bhh": se_b[3],
        "se_ln_g": jnp.ones((1, 2 * h), jnp.float32),
        "se_ln_b": jnp.zeros((1, 2 * h), jnp.float32),
        # SentenceEncoder.linear : Linear(2H, H), stored as W^T
        "se_lin_w": u((2 * h, h), s2h), "se_lin_b": u((1, h), s2h),
        # Encoder.linear : Linear(H, H), stored as W^T
        "enc_lin_w": u((h, h), sh), "enc_lin_b": u((1, h), sh),
        # Encoder.gru_F : GRU(H, H)
        "gf_wih": gru_f[0], "gf_whh": gru_f[1],
        "gf_bih": gru_f[2], "gf_bhh": gru_f[3],
        "lnf_g": jnp.ones((1, h), jnp.float32),
        "lnf_b": jnp.zeros((1, h), jnp.float32),
        # Encoder.linear_new : Linear(2H, H), stored as W^T
        "lin_new_w": u((2 * h, h), s2h), "lin_new_b": u((1, h), s2h),
        # Encoder.gru : GRU(H, H, bidirectional=True), fused fwd+bwd
        "bi_wih": bi_wih, "bi_bih": bi_bih, "bi_whh": whh_bd, "bi_bhh": bhh_bd,
        "ln_g": jnp.ones((1, 2 * h), jnp.float32),
        "ln_b": jnp.zeros((1, 2 * h), jnp.float32),
        # SequenceTaggle1.linear : Linear(2H, O), stored as W^T
        "out_w": u((2 * h, output_size), s2h), "out_b": u((1, output_size), s2h),
    }


# ----------------------------------------------------------------------------
# Forward pass wrapper (single fused pallas_call, everything VMEM resident)
# ----------------------------------------------------------------------------

def sequence_taggle1_forward(ids, params, *, hidden_size, output_size):
    ns, sl, b = ids.shape
    h = hidden_size
    nb = ns * b
    t_tok = sl * nb

    # Time-major flattening of token ids: (NS, SL, B) -> (SL, NS, B) -> (T, 1)
    ids_t = jnp.transpose(ids, (1, 0, 2)).reshape(t_tok, 1).astype(jnp.int32)

    args = (
        ids_t,
        params["se_f_emb"], params["se_f_bih"],
        params["se_f_whh"], params["se_f_bhh"],
        params["se_b_emb"], params["se_b_bih"], params["se_b_bhh"],
        params["se_ln_g"], params["se_ln_b"],
        params["se_lin_w"], params["se_lin_b"],
        params["enc_lin_w"], params["enc_lin_b"],
        params["gf_wih"], params["gf_whh"], params["gf_bih"], params["gf_bhh"],
        params["lnf_g"], params["lnf_b"],
        params["lin_new_w"], params["lin_new_b"],
        params["bi_wih"], params["bi_bih"], params["bi_whh"], params["bi_bhh"],
        params["ln_g"], params["ln_b"],
        params["out_w"], params["out_b"],
    )

    kernel = functools.partial(_fused_kernel, ns=ns, sl=sl, b=b, h=h)
    logits_flat, hidden_flat = pl.pallas_call(
        kernel,
        out_shape=[
            jax.ShapeDtypeStruct((nb, output_size), jnp.float32),
            jax.ShapeDtypeStruct((2 * b, h), jnp.float32),
        ],
    )(*args)
    return (logits_flat.reshape(ns, b, output_size),
            hidden_flat.reshape(2, b, h))


# ----------------------------------------------------------------------------
# Main
# ----------------------------------------------------------------------------

if __name__ == "__main__":
    num_embeddings = 50
    embedding_dim = 16
    hidden_size = 32
    output_size = 8
    num_sentences = 3     # outer "for sentence in input" loop length
    sentence_len = 8      # tokens per sentence
    batch = 2

    key = jax.random.PRNGKey(0)
    k_ids, k_params = jax.random.split(key)

    params = make_params(k_params, num_embeddings, embedding_dim,
                         hidden_size, output_size)
    ids = jax.random.randint(k_ids, (num_sentences, sentence_len, batch),
                             0, num_embeddings, dtype=jnp.int32)

    fwd = jax.jit(functools.partial(sequence_taggle1_forward,
                                    hidden_size=hidden_size,
                                    output_size=output_size))
    logits, hidden = fwd(ids, params)
    jax.block_until_ready((logits, hidden))

    assert logits.shape == (num_sentences, batch, output_size)
    assert hidden.shape == (2, batch, hidden_size)
    print("KERNEL_OK")
</pallas_src>

<mosaic_0001>
module attributes {stable_mosaic.version = 11 : i64} {
  func.func @_fused_kernel(%arg0: memref<48x1xi32, #tpu.memory_space<vmem>>, %arg1: memref<50x96xf32, #tpu.memory_space<vmem>>, %arg2: memref<1x96xf32, #tpu.memory_space<vmem>>, %arg3: memref<32x96xf32, #tpu.memory_space<vmem>>, %arg4: memref<1x96xf32, #tpu.memory_space<vmem>>, %arg5: memref<50x96xf32, #tpu.memory_space<vmem>>, %arg6: memref<1x96xf32, #tpu.memory_space<vmem>>, %arg7: memref<1x96xf32, #tpu.memory_space<vmem>>, %arg8: memref<1x64xf32, #tpu.memory_space<vmem>>, %arg9: memref<1x64xf32, #tpu.memory_space<vmem>>, %arg10: memref<64x32xf32, #tpu.memory_space<vmem>>, %arg11: memref<1x32xf32, #tpu.memory_space<vmem>>, %arg12: memref<32x32xf32, #tpu.memory_space<vmem>>, %arg13: memref<1x32xf32, #tpu.memory_space<vmem>>, %arg14: memref<32x96xf32, #tpu.memory_space<vmem>>, %arg15: memref<32x96xf32, #tpu.memory_space<vmem>>, %arg16: memref<1x96xf32, #tpu.memory_space<vmem>>, %arg17: memref<1x96xf32, #tpu.memory_space<vmem>>, %arg18: memref<1x32xf32, #tpu.memory_space<vmem>>, %arg19: memref<1x32xf32, #tpu.memory_space<vmem>>, %arg20: memref<64x32xf32, #tpu.memory_space<vmem>>, %arg21: memref<1x32xf32, #tpu.memory_space<vmem>>, %arg22: memref<32x192xf32, #tpu.memory_space<vmem>>, %arg23: memref<1x192xf32, #tpu.memory_space<vmem>>, %arg24: memref<64x192xf32, #tpu.memory_space<vmem>>, %arg25: memref<1x192xf32, #tpu.memory_space<vmem>>, %arg26: memref<1x64xf32, #tpu.memory_space<vmem>>, %arg27: memref<1x64xf32, #tpu.memory_space<vmem>>, %arg28: memref<64x8xf32, #tpu.memory_space<vmem>>, %arg29: memref<1x8xf32, #tpu.memory_space<vmem>>, %arg30: memref<6x8xf32, #tpu.memory_space<vmem>>, %arg31: memref<4x32xf32, #tpu.memory_space<vmem>>) attributes {dimension_semantics = [], scalar_prefetch = 0 : i64, scratch_operands = 0 : i64, tpu.core_type = #tpu.core_type<tc>} {
    %c0 = arith.constant 0 : index
    %c0_0 = arith.constant 0 : index
    %0 = vector.load %arg0[%c0, %c0_0] : memref<48x1xi32, #tpu.memory_space<vmem>>, vector<48x1xi32>
    %1 = tpu.iota {dimensions = array<i32: 1>} : vector<48x50xi32>
    %2 = vector.broadcast %0 : vector<48x1xi32> to vector<48x50xi32>
    %3 = arith.cmpi eq, %1, %2 : vector<48x50xi32>
    %4 = arith.extui %3 : vector<48x50xi1> to vector<48x50xi32>
    %5 = arith.sitofp %4 : vector<48x50xi32> to vector<48x50xf32>
    %c0_1 = arith.constant 0 : index
    %c0_2 = arith.constant 0 : index
    %6 = vector.load %arg1[%c0_1, %c0_2] : memref<50x96xf32, #tpu.memory_space<vmem>>, vector<50x96xf32>
    %cst = arith.constant dense<0.000000e+00> : vector<48x96xf32>
    %7 = tpu.matmul %5, %6, %cst {dimension_numbers = #tpu.dot_dimension_numbers<[1], [0], [0], [1], [0, 0, 1, 1], [], []>} : vector<48x50xf32>, vector<50x96xf32>, vector<48x96xf32> -> vector<48x96xf32>
    %c0_3 = arith.constant 0 : index
    %c0_4 = arith.constant 0 : index
    %8 = vector.load %arg2[%c0_3, %c0_4] : memref<1x96xf32, #tpu.memory_space<vmem>>, vector<1x96xf32>
    %9 = vector.broadcast %8 : vector<1x96xf32> to vector<48x96xf32>
    %10 = arith.addf %7, %9 : vector<48x96xf32>
    %11 = vector.extract_strided_slice %10 {offsets = [0, 0], sizes = [48, 64], strides = [1, 1]} : vector<48x96xf32> to vector<48x64xf32>
    %12 = vector.extract_strided_slice %10 {offsets = [0, 64], sizes = [48, 32], strides = [1, 1]} : vector<48x96xf32> to vector<48x32xf32>
    %c0_5 = arith.constant 0 : index
    %c0_6 = arith.constant 0 : index
    %13 = vector.load %arg3[%c0_5, %c0_6] : memref<32x96xf32, #tpu.memory_space<vmem>>, vector<32x96xf32>
    %c0_7 = arith.constant 0 : index
    %c0_8 = arith.constant 0 : index
    %14 = vector.load %arg4[%c0_7, %c0_8] : memref<1x96xf32, #tpu.memory_space<vmem>>, vector<1x96xf32>
    %cst_9 = arith.constant 0.000000e+00 : f32
    %15 = vector.broadcast %cst_9 : f32 to vector<6x32xf32>
    %16 = vector.extract_strided_slice %11 {offsets = [0, 0], sizes = [6, 64], strides = [1, 1]} : vector<48x64xf32> to vector<6x64xf32>
    %17 = vector.extract_strided_slice %12 {offsets = [0, 0], sizes = [6, 32], strides = [1, 1]} : vector<48x32xf32> to vector<6x32xf32>
    %cst_10 = arith.constant dense<0.000000e+00> : vector<6x96xf32>
    %18 = tpu.matmul %15, %13, %cst_10 {dimension_numbers = #tpu.dot_dimension_numbers<[1], [0], [0], [1], [0, 0, 1, 1], [], []>} : vector<6x32xf32>, vector<32x96xf32>, vector<6x96xf32> -> vector<6x96xf32>
    %19 = vector.broadcast %14 : vector<1x96xf32> to vector<6x96xf32>
    %20 = arith.addf %18, %19 : vector<6x96xf32>
    %21 = vector.extract_strided_slice %20 {offsets = [0, 0], sizes = [6, 64], strides = [1, 1]} : vector<6x96xf32> to vector<6x64xf32>
    %22 = arith.addf %16, %21 : vector<6x64xf32>
    %23 = arith.negf %22 : vector<6x64xf32>
    %24 = math.exp %23 : vector<6x64xf32>
    %cst_11 = arith.constant 1.000000e+00 : f32
    %25 = vector.broadcast %cst_11 : f32 to vector<6x64xf32>
    %26 = arith.addf %25, %24 : vector<6x64xf32>
    %27 = arith.divf %25, %26 : vector<6x64xf32>
    %28 = vector.extract_strided_slice %27 {offsets = [0, 0], sizes = [6, 32], strides = [1, 1]} : vector<6x64xf32> to vector<6x32xf32>
    %29 = vector.extract_strided_slice %27 {offsets = [0, 32], sizes = [6, 32], strides = [1, 1]} : vector<6x64xf32> to vector<6x32xf32>
    %30 = vector.extract_strided_slice %20 {offsets = [0, 64], sizes = [6, 32], strides = [1, 1]} : vector<6x96xf32> to vector<6x32xf32>
    %31 = arith.mulf %28, %30 : vector<6x32xf32>
    %32 = arith.addf %17, %31 : vector<6x32xf32>
    %33 = math.tanh %32 : vector<6x32xf32>
    %cst_12 = arith.constant 1.000000e+00 : f32
    %34 = vector.broadcast %cst_12 : f32 to vector<6x32xf32>
    %35 = arith.subf %34, %29 : vector<6x32xf32>
    %36 = arith.mulf %35, %33 : vector<6x32xf32>
    %37 = arith.mulf %29, %15 : vector<6x32xf32>
    %38 = arith.addf %36, %37 : vector<6x32xf32>
    %39 = vector.extract_strided_slice %11 {offsets = [6, 0], sizes = [6, 64], strides = [1, 1]} : vector<48x64xf32> to vector<6x64xf32>
    %40 = vector.extract_strided_slice %12 {offsets = [6, 0], sizes = [6, 32], strides = [1, 1]} : vector<48x32xf32> to vector<6x32xf32>
    %cst_13 = arith.constant dense<0.000000e+00> : vector<6x96xf32>
    %41 = tpu.matmul %38, %13, %cst_13 {dimension_numbers = #tpu.dot_dimension_numbers<[1], [0], [0], [1], [0, 0, 1, 1], [], []>} : vector<6x32xf32>, vector<32x96xf32>, vector<6x96xf32> -> vector<6x96xf32>
    %42 = vector.broadcast %14 : vector<1x96xf32> to vector<6x96xf32>
    %43 = arith.addf %41, %42 : vector<6x96xf32>
    %44 = vector.extract_strided_slice %43 {offsets = [0, 0], sizes = [6, 64], strides = [1, 1]} : vector<6x96xf32> to vector<6x64xf32>
    %45 = arith.addf %39, %44 : vector<6x64xf32>
    %46 = arith.negf %45 : vector<6x64xf32>
    %47 = math.exp %46 : vector<6x64xf32>
    %cst_14 = arith.constant 1.000000e+00 : f32
    %48 = vector.broadcast %cst_14 : f32 to vector<6x64xf32>
    %49 = arith.addf %48, %47 : vector<6x64xf32>
    %50 = arith.divf %48, %49 : vector<6x64xf32>
    %51 = vector.extract_strided_slice %50 {offsets = [0, 0], sizes = [6, 32], strides = [1, 1]} : vector<6x64xf32> to vector<6x32xf32>
    %52 = vector.extract_strided_slice %50 {offsets = [0, 32], sizes = [6, 32], strides = [1, 1]} : vector<6x64xf32> to vector<6x32xf32>
    %53 = vector.extract_strided_slice %43 {offsets = [0, 64], sizes = [6, 32], strides = [1, 1]} : vector<6x96xf32> to vector<6x32xf32>
    %54 = arith.mulf %51, %53 : vector<6x32xf32>
    %55 = arith.addf %40, %54 : vector<6x32xf32>
    %56 = math.tanh %55 : vector<6x32xf32>
    %cst_15 = arith.constant 1.000000e+00 : f32
    %57 = vector.broadcast %cst_15 : f32 to vector<6x32xf32>
    %58 = arith.subf %57, %52 : vector<6x32xf32>
    %59 = arith.mulf %58, %56 : vector<6x32xf32>
    %60 = arith.mulf %52, %38 : vector<6x32xf32>
    %61 = arith.addf %59, %60 : vector<6x32xf32>
    %62 = vector.extract_strided_slice %11 {offsets = [12, 0], sizes = [6, 64], strides = [1, 1]} : vector<48x64xf32> to vector<6x64xf32>
    %63 = vector.extract_strided_slice %12 {offsets = [12, 0], sizes = [6, 32], strides = [1, 1]} : vector<48x32xf32> to vector<6x32xf32>
    %cst_16 = arith.constant dense<0.000000e+00> : vector<6x96xf32>
    %64 = tpu.matmul %61, %13, %cst_16 {dimension_numbers = #tpu.dot_dimension_numbers<[1], [0], [0], [1], [0, 0, 1, 1], [], []>} : vector<6x32xf32>, vector<32x96xf32>, vector<6x96xf32> -> vector<6x96xf32>
    %65 = vector.broadcast %14 : vector<1x96xf32> to vector<6x96xf32>
    %66 = arith.addf %64, %65 : vector<6x96xf32>
    %67 = vector.extract_strided_slice %66 {offsets = [0, 0], sizes = [6, 64], strides = [1, 1]} : vector<6x96xf32> to vector<6x64xf32>
    %68 = arith.addf %62, %67 : vector<6x64xf32>
    %69 = arith.negf %68 : vector<6x64xf32>
    %70 = math.exp %69 : vector<6x64xf32>
    %cst_17 = arith.constant 1.000000e+00 : f32
    %71 = vector.broadcast %cst_17 : f32 to vector<6x64xf32>
    %72 = arith.addf %71, %70 : vector<6x64xf32>
    %73 = arith.divf %71, %72 : vector<6x64xf32>
    %74 = vector.extract_strided_slice %73 {offsets = [0, 0], sizes = [6, 32], strides = [1, 1]} : vector<6x64xf32> to vector<6x32xf32>
    %75 = vector.extract_strided_slice %73 {offsets = [0, 32], sizes = [6, 32], strides = [1, 1]} : vector<6x64xf32> to vector<6x32xf32>
    %76 = vector.extract_strided_slice %66 {offsets = [0, 64], sizes = [6, 32], strides = [1, 1]} : vector<6x96xf32> to vector<6x32xf32>
    %77 = arith.mulf %74, %76 : vector<6x32xf32>
    %78 = arith.addf %63, %77 : vector<6x32xf32>
    %79 = math.tanh %78 : vector<6x32xf32>
    %cst_18 = arith.constant 1.000000e+00 : f32
    %80 = vector.broadcast %cst_18 : f32 to vector<6x32xf32>
    %81 = arith.subf %80, %75 : vector<6x32xf32>
    %82 = arith.mulf %81, %79 : vector<6x32xf32>
    %83 = arith.mulf %75, %61 : vector<6x32xf32>
    %84 = arith.addf %82, %83 : vector<6x32xf32>
    %85 = vector.extract_strided_slice %11 {offsets = [18, 0], sizes = [6, 64], strides = [1, 1]} : vector<48x64xf32> to vector<6x64xf32>
    %86 = vector.extract_strided_slice %12 {offsets = [18, 0], sizes = [6, 32], strides = [1, 1]} : vector<48x32xf32> to vector<6x32xf32>
    %cst_19 = arith.constant dense<0.000000e+00> : vector<6x96xf32>
    %87 = tpu.matmul %84, %13, %cst_19 {dimension_numbers = #tpu.dot_dimension_numbers<[1], [0], [0], [1], [0, 0, 1, 1], [], []>} : vector<6x32xf32>, vector<32x96xf32>, vector<6x96xf32> -> vector<6x96xf32>
    %88 = vector.broadcast %14 : vector<1x96xf32> to vector<6x96xf32>
    %89 = arith.addf %87, %88 : vector<6x96xf32>
    %90 = vector.extract_strided_slice %89 {offsets = [0, 0], sizes = [6, 64], strides = [1, 1]} : vector<6x96xf32> to vector<6x64xf32>
    %91 = arith.addf %85, %90 : vector<6x64xf32>
    %92 = arith.negf %91 : vector<6x64xf32>
    %93 = math.exp %92 : vector<6x64xf32>
    %cst_20 = arith.constant 1.000000e+00 : f32
    %94 = vector.broadcast %cst_20 : f32 to vector<6x64xf32>
    %95 = arith.addf %94, %93 : vector<6x64xf32>
    %96 = arith.divf %94, %95 : vector<6x64xf32>
    %97 = vector.extract_strided_slice %96 {offsets = [0, 0], sizes = [6, 32], strides = [1, 1]} : vector<6x64xf32> to vector<6x32xf32>
    %98 = vector.extract_strided_slice %96 {offsets = [0, 32], sizes = [6, 32], strides = [1, 1]} : vector<6x64xf32> to vector<6x32xf32>
    %99 = vector.extract_strided_slice %89 {offsets = [0, 64], sizes = [6, 32], strides = [1, 1]} : vector<6x96xf32> to vector<6x32xf32>
    %100 = arith.mulf %97, %99 : vector<6x32xf32>
    %101 = arith.addf %86, %100 : vector<6x32xf32>
    %102 = math.tanh %101 : vector<6x32xf32>
    %cst_21 = arith.constant 1.000000e+00 : f32
    %103 = vector.broadcast %cst_21 : f32 to vector<6x32xf32>
    %104 = arith.subf %103, %98 : vector<6x32xf32>
    %105 = arith.mulf %104, %102 : vector<6x32xf32>
    %106 = arith.mulf %98, %84 : vector<6x32xf32>
    %107 = arith.addf %105, %106 : vector<6x32xf32>
    %108 = vector.extract_strided_slice %11 {offsets = [24, 0], sizes = [6, 64], strides = [1, 1]} : vector<48x64xf32> to vector<6x64xf32>
    %109 = vector.extract_strided_slice %12 {offsets = [24, 0], sizes = [6, 32], strides = [1, 1]} : vector<48x32xf32> to vector<6x32xf32>
    %cst_22 = arith.constant dense<0.000000e+00> : vector<6x96xf32>
    %110 = tpu.matmul %107, %13, %cst_22 {dimension_numbers = #tpu.dot_dimension_numbers<[1], [0], [0], [1], [0, 0, 1, 1], [], []>} : vector<6x32xf32>, vector<32x96xf32>, vector<6x96xf32> -> vector<6x96xf32>
    %111 = vector.broadcast %14 : vector<1x96xf32> to vector<6x96xf32>
    %112 = arith.addf %110, %111 : vector<6x96xf32>
    %113 = vector.extract_strided_slice %112 {offsets = [0, 0], sizes = [6, 64], strides = [1, 1]} : vector<6x96xf32> to vector<6x64xf32>
    %114 = arith.addf %108, %113 : vector<6x64xf32>
    %115 = arith.negf %114 : vector<6x64xf32>
    %116 = math.exp %115 : vector<6x64xf32>
    %cst_23 = arith.constant 1.000000e+00 : f32
    %117 = vector.broadcast %cst_23 : f32 to vector<6x64xf32>
    %118 = arith.addf %117, %116 : vector<6x64xf32>
    %119 = arith.divf %117, %118 : vector<6x64xf32>
    %120 = vector.extract_strided_slice %119 {offsets = [0, 0], sizes = [6, 32], strides = [1, 1]} : vector<6x64xf32> to vector<6x32xf32>
    %121 = vector.extract_strided_slice %119 {offsets = [0, 32], sizes = [6, 32], strides = [1, 1]} : vector<6x64xf32> to vector<6x32xf32>
    %122 = vector.extract_strided_slice %112 {offsets = [0, 64], sizes = [6, 32], strides = [1, 1]} : vector<6x96xf32> to vector<6x32xf32>
    %123 = arith.mulf %120, %122 : vector<6x32xf32>
    %124 = arith.addf %109, %123 : vector<6x32xf32>
    %125 = math.tanh %124 : vector<6x32xf32>
    %cst_24 = arith.constant 1.000000e+00 : f32
    %126 = vector.broadcast %cst_24 : f32 to vector<6x32xf32>
    %127 = arith.subf %126, %121 : vector<6x32xf32>
    %128 = arith.mulf %127, %125 : vector<6x32xf32>
    %129 = arith.mulf %121, %107 : vector<6x32xf32>
    %130 = arith.addf %128, %129 : vector<6x32xf32>
    %131 = vector.extract_strided_slice %11 {offsets = [30, 0], sizes = [6, 64], strides = [1, 1]} : vector<48x64xf32> to vector<6x64xf32>
    %132 = vector.extract_strided_slice %12 {offsets = [30, 0], sizes = [6, 32], strides = [1, 1]} : vector<48x32xf32> to vector<6x32xf32>
    %cst_25 = arith.constant dense<0.000000e+00> : vector<6x96xf32>
    %133 = tpu.matmul %130, %13, %cst_25 {dimension_numbers = #tpu.dot_dimension_numbers<[1], [0], [0], [1], [0, 0, 1, 1], [], []>} : vector<6x32xf32>, vector<32x96xf32>, vector<6x96xf32> -> vector<6x96xf32>
    %134 = vector.broadcast %14 : vector<1x96xf32> to vector<6x96xf32>
    %135 = arith.addf %133, %134 : vector<6x96xf32>
    %136 = vector.extract_strided_slice %135 {offsets = [0, 0], sizes = [6, 64], strides = [1, 1]} : vector<6x96xf32> to vector<6x64xf32>
    %137 = arith.addf %131, %136 : vector<6x64xf32>
    %138 = arith.negf %137 : vector<6x64xf32>
    %139 = math.exp %138 : vector<6x64xf32>
    %cst_26 = arith.constant 1.000000e+00 : f32
    %140 = vector.broadcast %cst_26 : f32 to vector<6x64xf32>
    %141 = arith.addf %140, %139 : vector<6x64xf32>
    %142 = arith.divf %140, %141 : vector<6x64xf32>
    %143 = vector.extract_strided_slice %142 {offsets = [0, 0], sizes = [6, 32], strides = [1, 1]} : vector<6x64xf32> to vector<6x32xf32>
    %144 = vector.extract_strided_slice %142 {offsets = [0, 32], sizes = [6, 32], strides = [1, 1]} : vector<6x64xf32> to vector<6x32xf32>
    %145 = vector.extract_strided_slice %135 {offsets = [0, 64], sizes = [6, 32], strides = [1, 1]} : vector<6x96xf32> to vector<6x32xf32>
    %146 = arith.mulf %143, %145 : vector<6x32xf32>
    %147 = arith.addf %132, %146 : vector<6x32xf32>
    %148 = math.tanh %147 : vector<6x32xf32>
    %cst_27 = arith.constant 1.000000e+00 : f32
    %149 = vector.broadcast %cst_27 : f32 to vector<6x32xf32>
    %150 = arith.subf %149, %144 : vector<6x32xf32>
    %151 = arith.mulf %150, %148 : vector<6x32xf32>
    %152 = arith.mulf %144, %130 : vector<6x32xf32>
    %153 = arith.addf %151, %152 : vector<6x32xf32>
    %154 = vector.extract_strided_slice %11 {offsets = [36, 0], sizes = [6, 64], strides = [1, 1]} : vector<48x64xf32> to vector<6x64xf32>
    %155 = vector.extract_strided_slice %12 {offsets = [36, 0], sizes = [6, 32], strides = [1, 1]} : vector<48x32xf32> to vector<6x32xf32>
    %cst_28 = arith.constant dense<0.000000e+00> : vector<6x96xf32>
    %156 = tpu.matmul %153, %13, %cst_28 {dimension_numbers = #tpu.dot_dimension_numbers<[1], [0], [0], [1], [0, 0, 1, 1], [], []>} : vector<6x32xf32>, vector<32x96xf32>, vector<6x96xf32> -> vector<6x96xf32>
    %157 = vector.broadcast %14 : vector<1x96xf32> to vector<6x96xf32>
    %158 = arith.addf %156, %157 : vector<6x96xf32>
    %159 = vector.extract_strided_slice %158 {offsets = [0, 0], sizes = [6, 64], strides = [1, 1]} : vector<6x96xf32> to vector<6x64xf32>
    %160 = arith.addf %154, %159 : vector<6x64xf32>
    %161 = arith.negf %160 : vector<6x64xf32>
    %162 = math.exp %161 : vector<6x64xf32>
    %cst_29 = arith.constant 1.000000e+00 : f32
    %163 = vector.broadcast %cst_29 : f32 to vector<6x64xf32>
    %164 = arith.addf %163, %162 : vector<6x64xf32>
    %165 = arith.divf %163, %164 : vector<6x64xf32>
    %166 = vector.extract_strided_slice %165 {offsets = [0, 0], sizes = [6, 32], strides = [1, 1]} : vector<6x64xf32> to vector<6x32xf32>
    %167 = vector.extract_strided_slice %165 {offsets = [0, 32], sizes = [6, 32], strides = [1, 1]} : vector<6x64xf32> to vector<6x32xf32>
    %168 = vector.extract_strided_slice %158 {offsets = [0, 64], sizes = [6, 32], strides = [1, 1]} : vector<6x96xf32> to vector<6x32xf32>
    %169 = arith.mulf %166, %168 : vector<6x32xf32>
    %170 = arith.addf %155, %169 : vector<6x32xf32>
    %171 = math.tanh %170 : vector<6x32xf32>
    %cst_30 = arith.constant 1.000000e+00 : f32
    %172 = vector.broadcast %cst_30 : f32 to vector<6x32xf32>
    %173 = arith.subf %172, %167 : vector<6x32xf32>
    %174 = arith.mulf %173, %171 : vector<6x32xf32>
    %175 = arith.mulf %167, %153 : vector<6x32xf32>
    %176 = arith.addf %174, %175 : vector<6x32xf32>
    %177 = vector.extract_strided_slice %11 {offsets = [42, 0], sizes = [6, 64], strides = [1, 1]} : vector<48x64xf32> to vector<6x64xf32>
    %178 = vector.extract_strided_slice %12 {offsets = [42, 0], sizes = [6, 32], strides = [1, 1]} : vector<48x32xf32> to vector<6x32xf32>
    %cst_31 = arith.constant dense<0.000000e+00> : vector<6x96xf32>
    %179 = tpu.matmul %176, %13, %cst_31 {dimension_numbers = #tpu.dot_dimension_numbers<[1], [0], [0], [1], [0, 0, 1, 1], [], []>} : vector<6x32xf32>, vector<32x96xf32>, vector<6x96xf32> -> vector<6x96xf32>
    %180 = vector.broadcast %14 : vector<1x96xf32> to vector<6x96xf32>
    %181 = arith.addf %179, %180 : vector<6x96xf32>
    %182 = vector.extract_strided_slice %181 {offsets = [0, 0], sizes = [6, 64], strides = [1, 1]} : vector<6x96xf32> to vector<6x64xf32>
    %183 = arith.addf %177, %182 : vector<6x64xf32>
    %184 = arith.negf %183 : vector<6x64xf32>
    %185 = math.exp %184 : vector<6x64xf32>
    %cst_32 = arith.constant 1.000000e+00 : f32
    %186 = vector.broadcast %cst_32 : f32 to vector<6x64xf32>
    %187 = arith.addf %186, %185 : vector<6x64xf32>
    %188 = arith.divf %186, %187 : vector<6x64xf32>
    %189 = vector.extract_strided_slice %188 {offsets = [0, 0], sizes = [6, 32], strides = [1, 1]} : vector<6x64xf32> to vector<6x32xf32>
    %190 = vector.extract_strided_slice %188 {offsets = [0, 32], sizes = [6, 32], strides = [1, 1]} : vector<6x64xf32> to vector<6x32xf32>
    %191 = vector.extract_strided_slice %181 {offsets = [0, 64], sizes = [6, 32], strides = [1, 1]} : vector<6x96xf32> to vector<6x32xf32>
    %192 = arith.mulf %189, %191 : vector<6x32xf32>
    %193 = arith.addf %178, %192 : vector<6x32xf32>
    %194 = math.tanh %193 : vector<6x32xf32>
    %cst_33 = arith.constant 1.000000e+00 : f32
    %195 = vector.broadcast %cst_33 : f32 to vector<6x32xf32>
    %196 = arith.subf %195, %190 : vector<6x32xf32>
    %197 = arith.mulf %196, %194 : vector<6x32xf32>
    %198 = arith.mulf %190, %176 : vector<6x32xf32>
    %199 = arith.addf %197, %198 : vector<6x32xf32>
    %200 = vector.extract_strided_slice %5 {offsets = [42, 0], sizes = [6, 50], strides = [1, 1]} : vector<48x50xf32> to vector<6x50xf32>
    %c0_34 = arith.constant 0 : index
    %c0_35 = arith.constant 0 : index
    %201 = vector.load %arg5[%c0_34, %c0_35] : memref<50x96xf32, #tpu.memory_space<vmem>>, vector<50x96xf32>
    %cst_36 = arith.constant dense<0.000000e+00> : vector<6x96xf32>
    %202 = tpu.matmul %200, %201, %cst_36 {dimension_numbers = #tpu.dot_dimension_numbers<[1], [0], [0], [1], [0, 0, 1, 1], [], []>} : vector<6x50xf32>, vector<50x96xf32>, vector<6x96xf32> -> vector<6x96xf32>
    %c0_37 = arith.constant 0 : index
    %c0_38 = arith.constant 0 : index
    %203 = vector.load %arg6[%c0_37, %c0_38] : memref<1x96xf32, #tpu.memory_space<vmem>>, vector<1x96xf32>
    %204 = vector.broadcast %203 : vector<1x96xf32> to vector<6x96xf32>
    %205 = arith.addf %202, %204 : vector<6x96xf32>
    %c0_39 = arith.constant 0 : index
    %c0_40 = arith.constant 0 : index
    %206 = vector.load %arg7[%c0_39, %c0_40] : memref<1x96xf32, #tpu.memory_space<vmem>>, vector<1x96xf32>
    %207 = vector.extract_strided_slice %205 {offsets = [0, 0], sizes = [6, 64], strides = [1, 1]} : vector<6x96xf32> to vector<6x64xf32>
    %208 = vector.extract_strided_slice %206 {offsets = [0, 0], sizes = [1, 64], strides = [1, 1]} : vector<1x96xf32> to vector<1x64xf32>
    %209 = vector.broadcast %208 : vector<1x64xf32> to vector<6x64xf32>
    %210 = arith.addf %207, %209 : vector<6x64xf32>
    %211 = arith.negf %210 : vector<6x64xf32>
    %212 = math.exp %211 : vector<6x64xf32>
    %cst_41 = arith.constant 1.000000e+00 : f32
    %213 = vector.broadcast %cst_41 : f32 to vector<6x64xf32>
    %214 = arith.addf %213, %212 : vector<6x64xf32>
    %215 = arith.divf %213, %214 : vector<6x64xf32>
    %216 = vector.extract_strided_slice %205 {offsets = [0, 64], sizes = [6, 32], strides = [1, 1]} : vector<6x96xf32> to vector<6x32xf32>
    %217 = vector.extract_strided_slice %215 {offsets = [0, 0], sizes = [6, 32], strides = [1, 1]} : vector<6x64xf32> to vector<6x32xf32>
    %218 = vector.extract_strided_slice %206 {offsets = [0, 64], sizes = [1, 32], strides = [1, 1]} : vector<1x96xf32> to vector<1x32xf32>
    %219 = vector.broadcast %218 : vector<1x32xf32> to vector<6x32xf32>
    %220 = arith.mulf %217, %219 : vector<6x32xf32>
    %221 = arith.addf %216, %220 : vector<6x32xf32>
    %222 = math.tanh %221 : vector<6x32xf32>
    %223 = vector.extract_strided_slice %215 {offsets = [0, 32], sizes = [6, 32], strides = [1, 1]} : vector<6x64xf32> to vector<6x32xf32>
    %cst_42 = arith.constant 1.000000e+00 : f32
    %224 = vector.broadcast %cst_42 : f32 to vector<6x32xf32>
    %225 = arith.subf %224, %223 : vector<6x32xf32>
    %226 = arith.mulf %225, %222 : vector<6x32xf32>
    %227 = tpu.concatenate %199, %226 in 1 : vector<6x32xf32>, vector<6x32xf32> -> vector<6x64xf32>
    %c0_43 = arith.constant 0 : index
    %c0_44 = arith.constant 0 : index
    %228 = vector.load %arg8[%c0_43, %c0_44] : memref<1x64xf32, #tpu.memory_space<vmem>>, vector<1x64xf32>
    %c0_45 = arith.constant 0 : index
    %c0_46 = arith.constant 0 : index
    %229 = vector.load %arg9[%c0_45, %c0_46] : memref<1x64xf32, #tpu.memory_space<vmem>>, vector<1x64xf32>
    %cst_47 = arith.constant dense<0.000000e+00> : vector<6xf32>
    %230 = vector.multi_reduction <add>, %227, %cst_47 [1] : vector<6x64xf32> to vector<6xf32>
    %231 = vector.shape_cast %230 : vector<6xf32> to vector<6x1xf32>
    %cst_48 = arith.constant 6.400000e+01 : f32
    %232 = vector.broadcast %cst_48 : f32 to vector<6x1xf32>
    %233 = arith.divf %231, %232 : vector<6x1xf32>
    %234 = vector.broadcast %233 : vector<6x1xf32> to vector<6x64xf32>
    %235 = arith.subf %227, %234 : vector<6x64xf32>
    %236 = arith.mulf %235, %235 : vector<6x64xf32>
    %cst_49 = arith.constant dense<0.000000e+00> : vector<6xf32>
    %237 = vector.multi_reduction <add>, %236, %cst_49 [1] : vector<6x64xf32> to vector<6xf32>
    %238 = vector.shape_cast %237 : vector<6xf32> to vector<6x1xf32>
    %cst_50 = arith.constant 6.400000e+01 : f32
    %239 = vector.broadcast %cst_50 : f32 to vector<6x1xf32>
    %240 = arith.divf %238, %239 : vector<6x1xf32>
    %241 = vector.broadcast %233 : vector<6x1xf32> to vector<6x64xf32>
    %242 = arith.subf %227, %241 : vector<6x64xf32>
    %cst_51 = arith.constant 9.99999974E-6 : f32
    %243 = vector.broadcast %cst_51 : f32 to vector<6x1xf32>
    %244 = arith.addf %240, %243 : vector<6x1xf32>
    %245 = math.rsqrt %244 : vector<6x1xf32>
    %246 = vector.broadcast %245 : vector<6x1xf32> to vector<6x64xf32>
    %247 = arith.mulf %242, %246 : vector<6x64xf32>
    %248 = vector.broadcast %228 : vector<1x64xf32> to vector<6x64xf32>
    %249 = arith.mulf %247, %248 : vector<6x64xf32>
    %250 = vector.broadcast %229 : vector<1x64xf32> to vector<6x64xf32>
    %251 = arith.addf %249, %250 : vector<6x64xf32>
    %c0_52 = arith.constant 0 : index
    %c0_53 = arith.constant 0 : index
    %252 = vector.load %arg10[%c0_52, %c0_53] : memref<64x32xf32, #tpu.memory_space<vmem>>, vector<64x32xf32>
    %cst_54 = arith.constant dense<0.000000e+00> : vector<6x32xf32>
    %253 = tpu.matmul %251, %252, %cst_54 {dimension_numbers = #tpu.dot_dimension_numbers<[1], [0], [0], [1], [0, 0, 1, 1], [], []>} : vector<6x64xf32>, vector<64x32xf32>, vector<6x32xf32> -> vector<6x32xf32>
    %c0_55 = arith.constant 0 : index
    %c0_56 = arith.constant 0 : index
    %254 = vector.load %arg11[%c0_55, %c0_56] : memref<1x32xf32, #tpu.memory_space<vmem>>, vector<1x32xf32>
    %255 = vector.broadcast %254 : vector<1x32xf32> to vector<6x32xf32>
    %256 = arith.addf %253, %255 : vector<6x32xf32>
    %c0_57 = arith.constant 0 : index
    %c0_58 = arith.constant 0 : index
    %257 = vector.load %arg12[%c0_57, %c0_58] : memref<32x32xf32, #tpu.memory_space<vmem>>, vector<32x32xf32>
    %cst_59 = arith.constant dense<0.000000e+00> : vector<6x32xf32>
    %258 = tpu.matmul %256, %257, %cst_59 {dimension_numbers = #tpu.dot_dimension_numbers<[1], [0], [0], [1], [0, 0, 1, 1], [], []>} : vector<6x32xf32>, vector<32x32xf32>, vector<6x32xf32> -> vector<6x32xf32>
    %c0_60 = arith.constant 0 : index
    %c0_61 = arith.constant 0 : index
    %259 = vector.load %arg13[%c0_60, %c0_61] : memref<1x32xf32, #tpu.memory_space<vmem>>, vector<1x32xf32>
    %260 = vector.broadcast %259 : vector<1x32xf32> to vector<6x32xf32>
    %261 = arith.addf %258, %260 : vector<6x32xf32>
    %262 = math.tanh %261 : vector<6x32xf32>
    %c0_62 = arith.constant 0 : index
    %c0_63 = arith.constant 0 : index
    %263 = vector.load %arg14[%c0_62, %c0_63] : memref<32x96xf32, #tpu.memory_space<vmem>>, vector<32x96xf32>
    %cst_64 = arith.constant dense<0.000000e+00> : vector<6x96xf32>
    %264 = tpu.matmul %262, %263, %cst_64 {dimension_numbers = #tpu.dot_dimension_numbers<[1], [0], [0], [1], [0, 0, 1, 1], [], []>} : vector<6x32xf32>, vector<32x96xf32>, vector<6x96xf32> -> vector<6x96xf32>
    %c0_65 = arith.constant 0 : index
    %c0_66 = arith.constant 0 : index
    %265 = vector.load %arg16[%c0_65, %c0_66] : memref<1x96xf32, #tpu.memory_space<vmem>>, vector<1x96xf32>
    %266 = vector.broadcast %265 : vector<1x96xf32> to vector<6x96xf32>
    %267 = arith.addf %264, %266 : vector<6x96xf32>
    %268 = vector.extract_strided_slice %267 {offsets = [0, 0], sizes = [6, 64], strides = [1, 1]} : vector<6x96xf32> to vector<6x64xf32>
    %269 = vector.extract_strided_slice %267 {offsets = [0, 64], sizes = [6, 32], strides = [1, 1]} : vector<6x96xf32> to vector<6x32xf32>
    %c0_67 = arith.constant 0 : index
    %c0_68 = arith.constant 0 : index
    %270 = vector.load %arg15[%c0_67, %c0_68] : memref<32x96xf32, #tpu.memory_space<vmem>>, vector<32x96xf32>
    %c0_69 = arith.constant 0 : index
    %c0_70 = arith.constant 0 : index
    %271 = vector.load %arg17[%c0_69, %c0_70] : memref<1x96xf32, #tpu.memory_space<vmem>>, vector<1x96xf32>
    %cst_71 = arith.constant 0.000000e+00 : f32
    %272 = vector.broadcast %cst_71 : f32 to vector<2x32xf32>
    %273 = vector.extract_strided_slice %268 {offsets = [0, 0], sizes = [2, 64], strides = [1, 1]} : vector<6x64xf32> to vector<2x64xf32>
    %274 = vector.extract_strided_slice %269 {offsets = [0, 0], sizes = [2, 32], strides = [1, 1]} : vector<6x32xf32> to vector<2x32xf32>
    %cst_72 = arith.constant dense<0.000000e+00> : vector<2x96xf32>
    %275 = tpu.matmul %272, %270, %cst_72 {dimension_numbers = #tpu.dot_dimension_numbers<[1], [0], [0], [1], [0, 0, 1, 1], [], []>} : vector<2x32xf32>, vector<32x96xf32>, vector<2x96xf32> -> vector<2x96xf32>
    %276 = vector.broadcast %271 : vector<1x96xf32> to vector<2x96xf32>
    %277 = arith.addf %275, %276 : vector<2x96xf32>
    %278 = vector.extract_strided_slice %277 {offsets = [0, 0], sizes = [2, 64], strides = [1, 1]} : vector<2x96xf32> to vector<2x64xf32>
    %279 = arith.addf %273, %278 : vector<2x64xf32>
    %280 = arith.negf %279 : vector<2x64xf32>
    %281 = math.exp %280 : vector<2x64xf32>
    %cst_73 = arith.constant 1.000000e+00 : f32
    %282 = vector.broadcast %cst_73 : f32 to vector<2x64xf32>
    %283 = arith.addf %282, %281 : vector<2x64xf32>
    %284 = arith.divf %282, %283 : vector<2x64xf32>
    %285 = vector.extract_strided_slice %284 {offsets = [0, 0], sizes = [2, 32], strides = [1, 1]} : vector<2x64xf32> to vector<2x32xf32>
    %286 = vector.extract_strided_slice %284 {offsets = [0, 32], sizes = [2, 32], strides = [1, 1]} : vector<2x64xf32> to vector<2x32xf32>
    %287 = vector.extract_strided_slice %277 {offsets = [0, 64], sizes = [2, 32], strides = [1, 1]} : vector<2x96xf32> to vector<2x32xf32>
    %288 = arith.mulf %285, %287 : vector<2x32xf32>
    %289 = arith.addf %274, %288 : vector<2x32xf32>
    %290 = math.tanh %289 : vector<2x32xf32>
    %cst_74 = arith.constant 1.000000e+00 : f32
    %291 = vector.broadcast %cst_74 : f32 to vector<2x32xf32>
    %292 = arith.subf %291, %286 : vector<2x32xf32>
    %293 = arith.mulf %292, %290 : vector<2x32xf32>
    %294 = arith.mulf %286, %272 : vector<2x32xf32>
    %295 = arith.addf %293, %294 : vector<2x32xf32>
    %296 = vector.extract_strided_slice %268 {offsets = [2, 0], sizes = [2, 64], strides = [1, 1]} : vector<6x64xf32> to vector<2x64xf32>
    %297 = vector.extract_strided_slice %269 {offsets = [2, 0], sizes = [2, 32], strides = [1, 1]} : vector<6x32xf32> to vector<2x32xf32>
    %cst_75 = arith.constant dense<0.000000e+00> : vector<2x96xf32>
    %298 = tpu.matmul %295, %270, %cst_75 {dimension_numbers = #tpu.dot_dimension_numbers<[1], [0], [0], [1], [0, 0, 1, 1], [], []>} : vector<2x32xf32>, vector<32x96xf32>, vector<2x96xf32> -> vector<2x96xf32>
    %299 = vector.broadcast %271 : vector<1x96xf32> to vector<2x96xf32>
    %300 = arith.addf %298, %299 : vector<2x96xf32>
    %301 = vector.extract_strided_slice %300 {offsets = [0, 0], sizes = [2, 64], strides = [1, 1]} : vector<2x96xf32> to vector<2x64xf32>
    %302 = arith.addf %296, %301 : vector<2x64xf32>
    %303 = arith.negf %302 : vector<2x64xf32>
    %304 = math.exp %303 : vector<2x64xf32>
    %cst_76 = arith.constant 1.000000e+00 : f32
    %305 = vector.broadcast %cst_76 : f32 to vector<2x64xf32>
    %306 = arith.addf %305, %304 : vector<2x64xf32>
    %307 = arith.divf %305, %306 : vector<2x64xf32>
    %308 = vector.extract_strided_slice %307 {offsets = [0, 0], sizes = [2, 32], strides = [1, 1]} : vector<2x64xf32> to vector<2x32xf32>
    %309 = vector.extract_strided_slice %307 {offsets = [0, 32], sizes = [2, 32], strides = [1, 1]} : vector<2x64xf32> to vector<2x32xf32>
    %310 = vector.extract_strided_slice %300 {offsets = [0, 64], sizes = [2, 32], strides = [1, 1]} : vector<2x96xf32> to vector<2x32xf32>
    %311 = arith.mulf %308, %310 : vector<2x32xf32>
    %312 = arith.addf %297, %311 : vector<2x32xf32>
    %313 = math.tanh %312 : vector<2x32xf32>
    %cst_77 = arith.constant 1.000000e+00 : f32
    %314 = vector.broadcast %cst_77 : f32 to vector<2x32xf32>
    %315 = arith.subf %314, %309 : vector<2x32xf32>
    %316 = arith.mulf %315, %313 : vector<2x32xf32>
    %317 = arith.mulf %309, %295 : vector<2x32xf32>
    %318 = arith.addf %316, %317 : vector<2x32xf32>
    %319 = vector.extract_strided_slice %268 {offsets = [4, 0], sizes = [2, 64], strides = [1, 1]} : vector<6x64xf32> to vector<2x64xf32>
    %320 = vector.extract_strided_slice %269 {offsets = [4, 0], sizes = [2, 32], strides = [1, 1]} : vector<6x32xf32> to vector<2x32xf32>
    %cst_78 = arith.constant dense<0.000000e+00> : vector<2x96xf32>
    %321 = tpu.matmul %318, %270, %cst_78 {dimension_numbers = #tpu.dot_dimension_numbers<[1], [0], [0], [1], [0, 0, 1, 1], [], []>} : vector<2x32xf32>, vector<32x96xf32>, vector<2x96xf32> -> vector<2x96xf32>
    %322 = vector.broadcast %271 : vector<1x96xf32> to vector<2x96xf32>
    %323 = arith.addf %321, %322 : vector<2x96xf32>
    %324 = vector.extract_strided_slice %323 {offsets = [0, 0], sizes = [2, 64], strides = [1, 1]} : vector<2x96xf32> to vector<2x64xf32>
    %325 = arith.addf %319, %324 : vector<2x64xf32>
    %326 = arith.negf %325 : vector<2x64xf32>
    %327 = math.exp %326 : vector<2x64xf32>
    %cst_79 = arith.constant 1.000000e+00 : f32
    %328 = vector.broadcast %cst_79 : f32 to vector<2x64xf32>
    %329 = arith.addf %328, %327 : vector<2x64xf32>
    %330 = arith.divf %328, %329 : vector<2x64xf32>
    %331 = vector.extract_strided_slice %330 {offsets = [0, 0], sizes = [2, 32], strides = [1, 1]} : vector<2x64xf32> to vector<2x32xf32>
    %332 = vector.extract_strided_slice %330 {offsets = [0, 32], sizes = [2, 32], strides = [1, 1]} : vector<2x64xf32> to vector<2x32xf32>
    %333 = vector.extract_strided_slice %323 {offsets = [0, 64], sizes = [2, 32], strides = [1, 1]} : vector<2x96xf32> to vector<2x32xf32>
    %334 = arith.mulf %331, %333 : vector<2x32xf32>
    %335 = arith.addf %320, %334 : vector<2x32xf32>
    %336 = math.tanh %335 : vector<2x32xf32>
    %cst_80 = arith.constant 1.000000e+00 : f32
    %337 = vector.broadcast %cst_80 : f32 to vector<2x32xf32>
    %338 = arith.subf %337, %332 : vector<2x32xf32>
    %339 = arith.mulf %338, %336 : vector<2x32xf32>
    %340 = arith.mulf %332, %318 : vector<2x32xf32>
    %341 = arith.addf %339, %340 : vector<2x32xf32>
    %342 = tpu.concatenate %295, %318, %341 in 0 : vector<2x32xf32>, vector<2x32xf32>, vector<2x32xf32> -> vector<6x32xf32>
    %c0_81 = arith.constant 0 : index
    %c0_82 = arith.constant 0 : index
    %343 = vector.load %arg18[%c0_81, %c0_82] : memref<1x32xf32, #tpu.memory_space<vmem>>, vector<1x32xf32>
    %c0_83 = arith.constant 0 : index
    %c0_84 = arith.constant 0 : index
    %344 = vector.load %arg19[%c0_83, %c0_84] : memref<1x32xf32, #tpu.memory_space<vmem>>, vector<1x32xf32>
    %cst_85 = arith.constant dense<0.000000e+00> : vector<6xf32>
    %345 = vector.multi_reduction <add>, %342, %cst_85 [1] : vector<6x32xf32> to vector<6xf32>
    %346 = vector.shape_cast %345 : vector<6xf32> to vector<6x1xf32>
    %cst_86 = arith.constant 3.200000e+01 : f32
    %347 = vector.broadcast %cst_86 : f32 to vector<6x1xf32>
    %348 = arith.divf %346, %347 : vector<6x1xf32>
    %349 = vector.broadcast %348 : vector<6x1xf32> to vector<6x32xf32>
    %350 = arith.subf %342, %349 : vector<6x32xf32>
    %351 = arith.mulf %350, %350 : vector<6x32xf32>
    %cst_87 = arith.constant dense<0.000000e+00> : vector<6xf32>
    %352 = vector.multi_reduction <add>, %351, %cst_87 [1] : vector<6x32xf32> to vector<6xf32>
    %353 = vector.shape_cast %352 : vector<6xf32> to vector<6x1xf32>
    %cst_88 = arith.constant 3.200000e+01 : f32
    %354 = vector.broadcast %cst_88 : f32 to vector<6x1xf32>
    %355 = arith.divf %353, %354 : vector<6x1xf32>
    %356 = vector.broadcast %348 : vector<6x1xf32> to vector<6x32xf32>
    %357 = arith.subf %342, %356 : vector<6x32xf32>
    %cst_89 = arith.constant 9.99999974E-6 : f32
    %358 = vector.broadcast %cst_89 : f32 to vector<6x1xf32>
    %359 = arith.addf %355, %358 : vector<6x1xf32>
    %360 = math.rsqrt %359 : vector<6x1xf32>
    %361 = vector.broadcast %360 : vector<6x1xf32> to vector<6x32xf32>
    %362 = arith.mulf %357, %361 : vector<6x32xf32>
    %363 = vector.broadcast %343 : vector<1x32xf32> to vector<6x32xf32>
    %364 = arith.mulf %362, %363 : vector<6x32xf32>
    %365 = vector.broadcast %344 : vector<1x32xf32> to vector<6x32xf32>
    %366 = arith.addf %364, %365 : vector<6x32xf32>
    %367 = tpu.concatenate %366, %262 in 1 : vector<6x32xf32>, vector<6x32xf32> -> vector<6x64xf32>
    %c0_90 = arith.constant 0 : index
    %c0_91 = arith.constant 0 : index
    %368 = vector.load %arg20[%c0_90, %c0_91] : memref<64x32xf32, #tpu.memory_space<vmem>>, vector<64x32xf32>
    %cst_92 = arith.constant dense<0.000000e+00> : vector<6x32xf32>
    %369 = tpu.matmul %367, %368, %cst_92 {dimension_numbers = #tpu.dot_dimension_numbers<[1], [0], [0], [1], [0, 0, 1, 1], [], []>} : vector<6x64xf32>, vector<64x32xf32>, vector<6x32xf32> -> vector<6x32xf32>
    %c0_93 = arith.constant 0 : index
    %c0_94 = arith.constant 0 : index
    %370 = vector.load %arg21[%c0_93, %c0_94] : memref<1x32xf32, #tpu.memory_space<vmem>>, vector<1x32xf32>
    %371 = vector.broadcast %370 : vector<1x32xf32> to vector<6x32xf32>
    %372 = arith.addf %369, %371 : vector<6x32xf32>
    %c0_95 = arith.constant 0 : index
    %c0_96 = arith.constant 0 : index
    %373 = vector.load %arg22[%c0_95, %c0_96] : memref<32x192xf32, #tpu.memory_space<vmem>>, vector<32x192xf32>
    %cst_97 = arith.constant dense<0.000000e+00> : vector<6x192xf32>
    %374 = tpu.matmul %372, %373, %cst_97 {dimension_numbers = #tpu.dot_dimension_numbers<[1], [0], [0], [1], [0, 0, 1, 1], [], []>} : vector<6x32xf32>, vector<32x192xf32>, vector<6x192xf32> -> vector<6x192xf32>
    %c0_98 = arith.constant 0 : index
    %c0_99 = arith.constant 0 : index
    %375 = vector.load %arg23[%c0_98, %c0_99] : memref<1x192xf32, #tpu.memory_space<vmem>>, vector<1x192xf32>
    %376 = vector.broadcast %375 : vector<1x192xf32> to vector<6x192xf32>
    %377 = arith.addf %374, %376 : vector<6x192xf32>
    %378 = vector.extract_strided_slice %377 {offsets = [0, 0], sizes = [6, 96], strides = [1, 1]} : vector<6x192xf32> to vector<6x96xf32>
    %379 = vector.extract_strided_slice %377 {offsets = [0, 96], sizes = [6, 96], strides = [1, 1]} : vector<6x192xf32> to vector<6x96xf32>
    %380 = vector.extract_strided_slice %378 {offsets = [0, 0], sizes = [2, 96], strides = [1, 1]} : vector<6x96xf32> to vector<2x96xf32>
    %381 = vector.extract_strided_slice %379 {offsets = [4, 0], sizes = [2, 96], strides = [1, 1]} : vector<6x96xf32> to vector<2x96xf32>
    %382 = vector.extract_strided_slice %380 {offsets = [0, 0], sizes = [2, 32], strides = [1, 1]} : vector<2x96xf32> to vector<2x32xf32>
    %383 = vector.extract_strided_slice %381 {offsets = [0, 0], sizes = [2, 32], strides = [1, 1]} : vector<2x96xf32> to vector<2x32xf32>
    %384 = vector.extract_strided_slice %380 {offsets = [0, 32], sizes = [2, 32], strides = [1, 1]} : vector<2x96xf32> to vector<2x32xf32>
    %385 = vector.extract_strided_slice %381 {offsets = [0, 32], sizes = [2, 32], strides = [1, 1]} : vector<2x96xf32> to vector<2x32xf32>
    %386 = tpu.concatenate %382, %383, %384, %385 in 1 : vector<2x32xf32>, vector<2x32xf32>, vector<2x32xf32>, vector<2x32xf32> -> vector<2x128xf32>
    %387 = vector.extract_strided_slice %380 {offsets = [0, 64], sizes = [2, 32], strides = [1, 1]} : vector<2x96xf32> to vector<2x32xf32>
    %388 = vector.extract_strided_slice %381 {offsets = [0, 64], sizes = [2, 32], strides = [1, 1]} : vector<2x96xf32> to vector<2x32xf32>
    %389 = tpu.concatenate %387, %388 in 1 : vector<2x32xf32>, vector<2x32xf32> -> vector<2x64xf32>
    %390 = vector.extract_strided_slice %378 {offsets = [2, 0], sizes = [2, 96], strides = [1, 1]} : vector<6x96xf32> to vector<2x96xf32>
    %391 = vector.extract_strided_slice %379 {offsets = [2, 0], sizes = [2, 96], strides = [1, 1]} : vector<6x96xf32> to vector<2x96xf32>
    %392 = vector.extract_strided_slice %390 {offsets = [0, 0], sizes = [2, 32], strides = [1, 1]} : vector<2x96xf32> to vector<2x32xf32>
    %393 = vector.extract_strided_slice %391 {offsets = [0, 0], sizes = [2, 32], strides = [1, 1]} : vector<2x96xf32> to vector<2x32xf32>
    %394 = vector.extract_strided_slice %390 {offsets = [0, 32], sizes = [2, 32], strides = [1, 1]} : vector<2x96xf32> to vector<2x32xf32>
    %395 = vector.extract_strided_slice %391 {offsets = [0, 32], sizes = [2, 32], strides = [1, 1]} : vector<2x96xf32> to vector<2x32xf32>
    %396 = tpu.concatenate %392, %393, %394, %395 in 1 : vector<2x32xf32>, vector<2x32xf32>, vector<2x32xf32>, vector<2x32xf32> -> vector<2x128xf32>
    %397 = vector.extract_strided_slice %390 {offsets = [0, 64], sizes = [2, 32], strides = [1, 1]} : vector<2x96xf32> to vector<2x32xf32>
    %398 = vector.extract_strided_slice %391 {offsets = [0, 64], sizes = [2, 32], strides = [1, 1]} : vector<2x96xf32> to vector<2x32xf32>
    %399 = tpu.concatenate %397, %398 in 1 : vector<2x32xf32>, vector<2x32xf32> -> vector<2x64xf32>
    %400 = vector.extract_strided_slice %378 {offsets = [4, 0], sizes = [2, 96], strides = [1, 1]} : vector<6x96xf32> to vector<2x96xf32>
    %401 = vector.extract_strided_slice %379 {offsets = [0, 0], sizes = [2, 96], strides = [1, 1]} : vector<6x96xf32> to vector<2x96xf32>
    %402 = vector.extract_strided_slice %400 {offsets = [0, 0], sizes = [2, 32], strides = [1, 1]} : vector<2x96xf32> to vector<2x32xf32>
    %403 = vector.extract_strided_slice %401 {offsets = [0, 0], sizes = [2, 32], strides = [1, 1]} : vector<2x96xf32> to vector<2x32xf32>
    %404 = vector.extract_strided_slice %400 {offsets = [0, 32], sizes = [2, 32], strides = [1, 1]} : vector<2x96xf32> to vector<2x32xf32>
    %405 = vector.extract_strided_slice %401 {offsets = [0, 32], sizes = [2, 32], strides = [1, 1]} : vector<2x96xf32> to vector<2x32xf32>
    %406 = tpu.concatenate %402, %403, %404, %405 in 1 : vector<2x32xf32>, vector<2x32xf32>, vector<2x32xf32>, vector<2x32xf32> -> vector<2x128xf32>
    %407 = vector.extract_strided_slice %400 {offsets = [0, 64], sizes = [2, 32], strides = [1, 1]} : vector<2x96xf32> to vector<2x32xf32>
    %408 = vector.extract_strided_slice %401 {offsets = [0, 64], sizes = [2, 32], strides = [1, 1]} : vector<2x96xf32> to vector<2x32xf32>
    %409 = tpu.concatenate %407, %408 in 1 : vector<2x32xf32>, vector<2x32xf32> -> vector<2x64xf32>
    %c0_100 = arith.constant 0 : index
    %c0_101 = arith.constant 0 : index
    %410 = vector.load %arg24[%c0_100, %c0_101] : memref<64x192xf32, #tpu.memory_space<vmem>>, vector<64x192xf32>
    %c0_102 = arith.constant 0 : index
    %c0_103 = arith.constant 0 : index
    %411 = vector.load %arg25[%c0_102, %c0_103] : memref<1x192xf32, #tpu.memory_space<vmem>>, vector<1x192xf32>
    %cst_104 = arith.constant 0.000000e+00 : f32
    %412 = vector.broadcast %cst_104 : f32 to vector<2x64xf32>
    %cst_105 = arith.constant dense<0.000000e+00> : vector<2x192xf32>
    %413 = tpu.matmul %412, %410, %cst_105 {dimension_numbers = #tpu.dot_dimension_numbers<[1], [0], [0], [1], [0, 0, 1, 1], [], []>} : vector<2x64xf32>, vector<64x192xf32>, vector<2x192xf32> -> vector<2x192xf32>
    %414 = vector.broadcast %411 : vector<1x192xf32> to vector<2x192xf32>
    %415 = arith.addf %413, %414 : vector<2x192xf32>
    %416 = vector.extract_strided_slice %415 {offsets = [0, 0], sizes = [2, 128], strides = [1, 1]} : vector<2x192xf32> to vector<2x128xf32>
    %417 = arith.addf %386, %416 : vector<2x128xf32>
    %418 = arith.negf %417 : vector<2x128xf32>
    %419 = math.exp %418 : vector<2x128xf32>
    %cst_106 = arith.constant 1.000000e+00 : f32
    %420 = vector.broadcast %cst_106 : f32 to vector<2x128xf32>
    %421 = arith.addf %420, %419 : vector<2x128xf32>
    %422 = arith.divf %420, %421 : vector<2x128xf32>
    %423 = vector.extract_strided_slice %422 {offsets = [0, 0], sizes = [2, 64], strides = [1, 1]} : vector<2x128xf32> to vector<2x64xf32>
    %424 = vector.extract_strided_slice %422 {offsets = [0, 64], sizes = [2, 64], strides = [1, 1]} : vector<2x128xf32> to vector<2x64xf32>
    %425 = vector.extract_strided_slice %415 {offsets = [0, 128], sizes = [2, 64], strides = [1, 1]} : vector<2x192xf32> to vector<2x64xf32>
    %426 = arith.mulf %423, %425 : vector<2x64xf32>
    %427 = arith.addf %389, %426 : vector<2x64xf32>
    %428 = math.tanh %427 : vector<2x64xf32>
    %cst_107 = arith.constant 1.000000e+00 : f32
    %429 = vector.broadcast %cst_107 : f32 to vector<2x64xf32>
    %430 = arith.subf %429, %424 : vector<2x64xf32>
    %431 = arith.mulf %430, %428 : vector<2x64xf32>
    %432 = arith.mulf %424, %412 : vector<2x64xf32>
    %433 = arith.addf %431, %432 : vector<2x64xf32>
    %cst_108 = arith.constant dense<0.000000e+00> : vector<2x192xf32>
    %434 = tpu.matmul %433, %410, %cst_108 {dimension_numbers = #tpu.dot_dimension_numbers<[1], [0], [0], [1], [0, 0, 1, 1], [], []>} : vector<2x64xf32>, vector<64x192xf32>, vector<2x192xf32> -> vector<2x192xf32>
    %435 = vector.broadcast %411 : vector<1x192xf32> to vector<2x192xf32>
    %436 = arith.addf %434, %435 : vector<2x192xf32>
    %437 = vector.extract_strided_slice %436 {offsets = [0, 0], sizes = [2, 128], strides = [1, 1]} : vector<2x192xf32> to vector<2x128xf32>
    %438 = arith.addf %396, %437 : vector<2x128xf32>
    %439 = arith.negf %438 : vector<2x128xf32>
    %440 = math.exp %439 : vector<2x128xf32>
    %cst_109 = arith.constant 1.000000e+00 : f32
    %441 = vector.broadcast %cst_109 : f32 to vector<2x128xf32>
    %442 = arith.addf %441, %440 : vector<2x128xf32>
    %443 = arith.divf %441, %442 : vector<2x128xf32>
    %444 = vector.extract_strided_slice %443 {offsets = [0, 0], sizes = [2, 64], strides = [1, 1]} : vector<2x128xf32> to vector<2x64xf32>
    %445 = vector.extract_strided_slice %443 {offsets = [0, 64], sizes = [2, 64], strides = [1, 1]} : vector<2x128xf32> to vector<2x64xf32>
    %446 = vector.extract_strided_slice %436 {offsets = [0, 128], sizes = [2, 64], strides = [1, 1]} : vector<2x192xf32> to vector<2x64xf32>
    %447 = arith.mulf %444, %446 : vector<2x64xf32>
    %448 = arith.addf %399, %447 : vector<2x64xf32>
    %449 = math.tanh %448 : vector<2x64xf32>
    %cst_110 = arith.constant 1.000000e+00 : f32
    %450 = vector.broadcast %cst_110 : f32 to vector<2x64xf32>
    %451 = arith.subf %450, %445 : vector<2x64xf32>
    %452 = arith.mulf %451, %449 : vector<2x64xf32>
    %453 = arith.mulf %445, %433 : vector<2x64xf32>
    %454 = arith.addf %452, %453 : vector<2x64xf32>
    %cst_111 = arith.constant dense<0.000000e+00> : vector<2x192xf32>
    %455 = tpu.matmul %454, %410, %cst_111 {dimension_numbers = #tpu.dot_dimension_numbers<[1], [0], [0], [1], [0, 0, 1, 1], [], []>} : vector<2x64xf32>, vector<64x192xf32>, vector<2x192xf32> -> vector<2x192xf32>
    %456 = vector.broadcast %411 : vector<1x192xf32> to vector<2x192xf32>
    %457 = arith.addf %455, %456 : vector<2x192xf32>
    %458 = vector.extract_strided_slice %457 {offsets = [0, 0], sizes = [2, 128], strides = [1, 1]} : vector<2x192xf32> to vector<2x128xf32>
    %459 = arith.addf %406, %458 : vector<2x128xf32>
    %460 = arith.negf %459 : vector<2x128xf32>
    %461 = math.exp %460 : vector<2x128xf32>
    %cst_112 = arith.constant 1.000000e+00 : f32
    %462 = vector.broadcast %cst_112 : f32 to vector<2x128xf32>
    %463 = arith.addf %462, %461 : vector<2x128xf32>
    %464 = arith.divf %462, %463 : vector<2x128xf32>
    %465 = vector.extract_strided_slice %464 {offsets = [0, 0], sizes = [2, 64], strides = [1, 1]} : vector<2x128xf32> to vector<2x64xf32>
    %466 = vector.extract_strided_slice %464 {offsets = [0, 64], sizes = [2, 64], strides = [1, 1]} : vector<2x128xf32> to vector<2x64xf32>
    %467 = vector.extract_strided_slice %457 {offsets = [0, 128], sizes = [2, 64], strides = [1, 1]} : vector<2x192xf32> to vector<2x64xf32>
    %468 = arith.mulf %465, %467 : vector<2x64xf32>
    %469 = arith.addf %409, %468 : vector<2x64xf32>
    %470 = math.tanh %469 : vector<2x64xf32>
    %cst_113 = arith.constant 1.000000e+00 : f32
    %471 = vector.broadcast %cst_113 : f32 to vector<2x64xf32>
    %472 = arith.subf %471, %466 : vector<2x64xf32>
    %473 = arith.mulf %472, %470 : vector<2x64xf32>
    %474 = arith.mulf %466, %454 : vector<2x64xf32>
    %475 = arith.addf %473, %474 : vector<2x64xf32>
    %476 = vector.extract_strided_slice %433 {offsets = [0, 0], sizes = [2, 32], strides = [1, 1]} : vector<2x64xf32> to vector<2x32xf32>
    %477 = vector.extract_strided_slice %475 {offsets = [0, 32], sizes = [2, 32], strides = [1, 1]} : vector<2x64xf32> to vector<2x32xf32>
    %478 = tpu.concatenate %476, %477 in 1 : vector<2x32xf32>, vector<2x32xf32> -> vector<2x64xf32>
    %479 = vector.extract_strided_slice %454 {offsets = [0, 0], sizes = [2, 32], strides = [1, 1]} : vector<2x64xf32> to vector<2x32xf32>
    %480 = vector.extract_strided_slice %454 {offsets = [0, 32], sizes = [2, 32], strides = [1, 1]} : vector<2x64xf32> to vector<2x32xf32>
    %481 = tpu.concatenate %479, %480 in 1 : vector<2x32xf32>, vector<2x32xf32> -> vector<2x64xf32>
    %482 = vector.extract_strided_slice %475 {offsets = [0, 0], sizes = [2, 32], strides = [1, 1]} : vector<2x64xf32> to vector<2x32xf32>
    %483 = vector.extract_strided_slice %433 {offsets = [0, 32], sizes = [2, 32], strides = [1, 1]} : vector<2x64xf32> to vector<2x32xf32>
    %484 = tpu.concatenate %482, %483 in 1 : vector<2x32xf32>, vector<2x32xf32> -> vector<2x64xf32>
    %485 = tpu.concatenate %478, %481, %484 in 0 : vector<2x64xf32>, vector<2x64xf32>, vector<2x64xf32> -> vector<6x64xf32>
    %c0_114 = arith.constant 0 : index
    %c0_115 = arith.constant 0 : index
    %486 = vector.load %arg26[%c0_114, %c0_115] : memref<1x64xf32, #tpu.memory_space<vmem>>, vector<1x64xf32>
    %c0_116 = arith.constant 0 : index
    %c0_117 = arith.constant 0 : index
    %487 = vector.load %arg27[%c0_116, %c0_117] : memref<1x64xf32, #tpu.memory_space<vmem>>, vector<1x64xf32>
    %cst_118 = arith.constant dense<0.000000e+00> : vector<6xf32>
    %488 = vector.multi_reduction <add>, %485, %cst_118 [1] : vector<6x64xf32> to vector<6xf32>
    %489 = vector.shape_cast %488 : vector<6xf32> to vector<6x1xf32>
    %cst_119 = arith.constant 6.400000e+01 : f32
    %490 = vector.broadcast %cst_119 : f32 to vector<6x1xf32>
    %491 = arith.divf %489, %490 : vector<6x1xf32>
    %492 = vector.broadcast %491 : vector<6x1xf32> to vector<6x64xf32>
    %493 = arith.subf %485, %492 : vector<6x64xf32>
    %494 = arith.mulf %493, %493 : vector<6x64xf32>
    %cst_120 = arith.constant dense<0.000000e+00> : vector<6xf32>
    %495 = vector.multi_reduction <add>, %494, %cst_120 [1] : vector<6x64xf32> to vector<6xf32>
    %496 = vector.shape_cast %495 : vector<6xf32> to vector<6x1xf32>
    %cst_121 = arith.constant 6.400000e+01 : f32
    %497 = vector.broadcast %cst_121 : f32 to vector<6x1xf32>
    %498 = arith.divf %496, %497 : vector<6x1xf32>
    %499 = vector.broadcast %491 : vector<6x1xf32> to vector<6x64xf32>
    %500 = arith.subf %485, %499 : vector<6x64xf32>
    %cst_122 = arith.constant 9.99999974E-6 : f32
    %501 = vector.broadcast %cst_122 : f32 to vector<6x1xf32>
    %502 = arith.addf %498, %501 : vector<6x1xf32>
    %503 = math.rsqrt %502 : vector<6x1xf32>
    %504 = vector.broadcast %503 : vector<6x1xf32> to vector<6x64xf32>
    %505 = arith.mulf %500, %504 : vector<6x64xf32>
    %506 = vector.broadcast %486 : vector<1x64xf32> to vector<6x64xf32>
    %507 = arith.mulf %505, %506 : vector<6x64xf32>
    %508 = vector.broadcast %487 : vector<1x64xf32> to vector<6x64xf32>
    %509 = arith.addf %507, %508 : vector<6x64xf32>
    %c0_123 = arith.constant 0 : index
    %c0_124 = arith.constant 0 : index
    %510 = vector.load %arg28[%c0_123, %c0_124] : memref<64x8xf32, #tpu.memory_space<vmem>>, vector<64x8xf32>
    %cst_125 = arith.constant dense<0.000000e+00> : vector<6x8xf32>
    %511 = tpu.matmul %509, %510, %cst_125 {dimension_numbers = #tpu.dot_dimension_numbers<[1], [0], [0], [1], [0, 0, 1, 1], [], []>} : vector<6x64xf32>, vector<64x8xf32>, vector<6x8xf32> -> vector<6x8xf32>
    %c0_126 = arith.constant 0 : index
    %c0_127 = arith.constant 0 : index
    %512 = vector.load %arg29[%c0_126, %c0_127] : memref<1x8xf32, #tpu.memory_space<vmem>>, vector<1x8xf32>
    %513 = vector.broadcast %512 : vector<1x8xf32> to vector<6x8xf32>
    %514 = arith.addf %511, %513 : vector<6x8xf32>
    %c0_128 = arith.constant 0 : index
    %c0_129 = arith.constant 0 : index
    %515 = vector.load %arg30[%c0_128, %c0_129] : memref<6x8xf32, #tpu.memory_space<vmem>>, vector<6x8xf32>
    tpu.vector_store %arg30[%c0_128, %c0_129], %514 {strides = array<i32>} : memref<6x8xf32, #tpu.memory_space<vmem>>, vector<6x8xf32>,
    %516 = vector.extract_strided_slice %475 {offsets = [0, 0], sizes = [2, 32], strides = [1, 1]} : vector<2x64xf32> to vector<2x32xf32>
    %517 = vector.extract_strided_slice %475 {offsets = [0, 32], sizes = [2, 32], strides = [1, 1]} : vector<2x64xf32> to vector<2x32xf32>
    %518 = tpu.concatenate %516, %517 in 0 : vector<2x32xf32>, vector<2x32xf32> -> vector<4x32xf32>
    %c0_130 = arith.constant 0 : index
    %c0_131 = arith.constant 0 : index
    %519 = vector.load %arg31[%c0_130, %c0_131] : memref<4x32xf32, #tpu.memory_space<vmem>>, vector<4x32xf32>
    tpu.vector_store %arg31[%c0_130, %c0_131], %518 {strides = array<i32>} : memref<4x32xf32, #tpu.memory_space<vmem>>, vector<4x32xf32>,
    return
  }
}

</mosaic_0001>

<llo_original>
// kernel: sequence_taggle1_forward.1
$region0: #{sequence_taggle1_forward.1}
  #allocation0 [shape = 'u32[]', space=smem, size = 0x4, offset = 0x4, fixed_abs, tag = 'smem constant byte address 0x4 - core index']
  #allocation1 [shape = 'u32[72,128]{1,0:T(1,128)}', space=vmem, size = 0x9000, scoped, tag = 'internal scratch']
  %s0 = inlined_call_operand.smem [shape: u32[32], index: -1, kind: input, shape index: {}]
  %s1 = sld [smem:[%s0]]
  %s2 = scalar_lea.smem %s0, 1
  %s3 = sld [smem:[%s2]]
  %s4 = scalar_lea.smem %s0, 2
  %s5 = sld [smem:[%s4]]
  %s6 = scalar_lea.smem %s0, 3
  %s7 = sld [smem:[%s6]]
  %s8 = scalar_lea.smem %s0, 4
  %s9 = sld [smem:[%s8]]
  %s10 = scalar_lea.smem %s0, 5
  %s11 = sld [smem:[%s10]]
  %s12 = scalar_lea.smem %s0, 6
  %s13 = sld [smem:[%s12]]
  %s14 = scalar_lea.smem %s0, 7
  %s15 = sld [smem:[%s14]]
  %s16 = scalar_lea.smem %s0, 8
  %s17 = sld [smem:[%s16]]
  %s18 = scalar_lea.smem %s0, 9
  %s19 = sld [smem:[%s18]]
  %s20 = scalar_lea.smem %s0, 10
  %s21 = sld [smem:[%s20]]
  %s22 = scalar_lea.smem %s0, 11
  %s23 = sld [smem:[%s22]]
  %s24 = scalar_lea.smem %s0, 12
  %s25 = sld [smem:[%s24]]
  %s26 = scalar_lea.smem %s0, 13
  %s27 = sld [smem:[%s26]]
  %s28 = scalar_lea.smem %s0, 14
  %s29 = sld [smem:[%s28]]
  %s30 = scalar_lea.smem %s0, 15
  %s31 = sld [smem:[%s30]]
  %s32 = scalar_lea.smem %s0, 16
  %s33 = sld [smem:[%s32]]
  %s34 = scalar_lea.smem %s0, 17
  %s35 = sld [smem:[%s34]]
  %s36 = scalar_lea.smem %s0, 18
  %s37 = sld [smem:[%s36]]
  %s38 = scalar_lea.smem %s0, 19
  %s39 = sld [smem:[%s38]]
  %s40 = scalar_lea.smem %s0, 20
  %s41 = sld [smem:[%s40]]
  %s42 = scalar_lea.smem %s0, 21
  %s43 = sld [smem:[%s42]]
  %s44 = scalar_lea.smem %s0, 22
  %s45 = sld [smem:[%s44]]
  %s46 = scalar_lea.smem %s0, 23
  %s47 = sld [smem:[%s46]]
  %s48 = scalar_lea.smem %s0, 24
  %s49 = sld [smem:[%s48]]
  %s50 = scalar_lea.smem %s0, 25
  %s51 = sld [smem:[%s50]]
  %s52 = scalar_lea.smem %s0, 26
  %s53 = sld [smem:[%s52]]
  %s54 = scalar_lea.smem %s0, 27
  %s55 = sld [smem:[%s54]]
  %s56 = scalar_lea.smem %s0, 28
  %s57 = sld [smem:[%s56]]
  %s58 = scalar_lea.smem %s0, 29
  %s59 = sld [smem:[%s58]]
  %s60 = scalar_lea.smem %s0, 30
  %s61 = sld [smem:[%s60]]
  %s62 = scalar_lea.smem %s0, 31
  %s63 = sld [smem:[%s62]]
  %64 = xla_tuple %s61, %s63
  %s65 = sld [smem:[#allocation0]]
  $region178: #{sequence_taggle1_forward.1} parent=0
    _
  %s67 = ssub.s32 1, %s65
  %s68 = scalar_select 0, %s67, %s65
  $region1: #{sequence_taggle1_forward.1} parent=0
    #allocation2 [shape = 'u8[28672]{0}', space=vmem, size = 0x7000, scoped, tag = 'input window, operand 5, single buffered']
    #allocation3 [shape = 's32[1]{0}', space=sflag, size = 0x4, scoped, tag = 'scoped memory for sequence_taggle1_forward.1']
    #allocation4 [shape = 's32[1]{0}', space=sflag, size = 0x4, scoped, tag = 'scoped memory for sequence_taggle1_forward.1']
    #allocation5 [shape = 'u8[512]{0}', space=vmem, size = 0x400, scoped, tag = 'input window, operand 13, single buffered']
    #allocation6 [shape = 's32[1]{0}', space=sflag, size = 0x4, scoped, tag = 'scoped memory for sequence_taggle1_forward.1']
    #allocation7 [shape = 'u8[16384]{0}', space=vmem, size = 0x4000, scoped, tag = 'input window, operand 14, single buffered']
    #allocation8 [shape = 'u8[16384]{0}', space=vmem, size = 0x4000, scoped, tag = 'input window, operand 15, single buffered']
    #allocation9 [shape = 's32[1]{0}', space=sflag, size = 0x4, scoped, tag = 'scoped memory for sequence_taggle1_forward.1']
    #allocation10 [shape = 'u8[512]{0}', space=vmem, size = 0x400, scoped, tag = 'input window, operand 16, single buffered']
    #allocation11 [shape = 'u8[512]{0}', space=vmem, size = 0x400, scoped, tag = 'input window, operand 17, single buffered']
    #allocation12 [shape = 's32[1]{0}', space=sflag, size = 0x4, scoped, tag = 'scoped memory for sequence_taggle1_forward.1']
    #allocation13 [shape = 'u8[512]{0}', space=vmem, size = 0x400, scoped, tag = 'input window, operand 21, single buffered']
    #allocation14 [shape = 'u8[1024]{0}', space=vmem, size = 0x400, scoped, tag = 'input window, operand 25, single buffered']
    #allocation15 [shape = 's32[1]{0}', space=sflag, size = 0x4, scoped, tag = 'scoped memory for sequence_taggle1_forward.1']
    #allocation16 [shape = 'u8[512]{0}', space=vmem, size = 0x400, scoped, tag = 'input window, operand 27, single buffered']
    #allocation17 [shape = 'u8[512]{0}', space=vmem, size = 0x400, scoped, tag = 'input window, operand 29, single buffered']
    #allocation18 [shape = 's32[1]{0}', space=sflag, size = 0x4, scoped, tag = 'scoped memory for sequence_taggle1_forward.1']
    #allocation19 [shape = 'u8[2048]{0}', space=vmem, size = 0x800, scoped, tag = 'output window, operand 1, single buffered']
    %69 = vsyncpa [#allocation3], 0
    %70 = vsyncpa [#allocation6], 0
    %71 = vsyncpa [#allocation9], 0
    %72 = vsyncpa [#allocation12], 0
    %73 = vsyncpa [#allocation15], 0
    %74 = vsyncpa [#allocation18], 0
    %75 = vsyncpa [#allocation4], 0
    // Predicated region
    $region2: #{sequence_taggle1_forward.1} parent=1 // pred_check
      _
    $region3: #{sequence_taggle1_forward.1} parent=1 // pred_check_branch
      %77 = sbr.rel (0) target = $region5
    $region4: #{sequence_taggle1_forward.1} parent=1 // pred_region
      _
    $region5: #{sequence_taggle1_forward.1} parent=1 // pred_fallthru
      _
    // Predicated region
    $region6: #{sequence_taggle1_forward.1} parent=1 // pred_check
      _
    $region7: #{sequence_taggle1_forward.1} parent=1 // pred_check_branch
      %79 = sbr.rel (0) target = $region9
    $region8: #{sequence_taggle1_forward.1} parent=1 // pred_region
      _
    $region9: #{sequence_taggle1_forward.1} parent=1 // pred_fallthru
      _
    // Predicated region
    $region10: #{sequence_taggle1_forward.1} parent=1 // pred_check
      _
    $region11: #{sequence_taggle1_forward.1} parent=1 // pred_check_branch
      %81 = sbr.rel (0) target = $region13
    $region12: #{sequence_taggle1_forward.1} parent=1 // pred_region
      _
    $region13: #{sequence_taggle1_forward.1} parent=1 // pred_fallthru
      _
    // Predicated region
    $region14: #{sequence_taggle1_forward.1} parent=1 // pred_check
      _
    $region15: #{sequence_taggle1_forward.1} parent=1 // pred_check_branch
      %83 = sbr.rel (0) target = $region17
    $region16: #{sequence_taggle1_forward.1} parent=1 // pred_region
      _
    $region17: #{sequence_taggle1_forward.1} parent=1 // pred_fallthru
      _
    // Predicated region
    $region18: #{sequence_taggle1_forward.1} parent=1 // pred_check
      _
    $region19: #{sequence_taggle1_forward.1} parent=1 // pred_check_branch
      %85 = sbr.rel (0) target = $region21
    $region20: #{sequence_taggle1_forward.1} parent=1 // pred_region
      _
    $region21: #{sequence_taggle1_forward.1} parent=1 // pred_fallthru
      _
    // Predicated region
    $region22: #{sequence_taggle1_forward.1} parent=1 // pred_check
      _
    $region23: #{sequence_taggle1_forward.1} parent=1 // pred_check_branch
      %87 = sbr.rel (0) target = $region25
    $region24: #{sequence_taggle1_forward.1} parent=1 // pred_region
      %89 = vsyncadd [#allocation3], 0
      %s90 = sshll.u32 %s11, 4
      %s91 = int_to_ptr.hbm [resolvable:$true] %s90
      %s92 = sshll.u32 [#allocation2], 4
      %s93 = int_to_ptr.vmem [resolvable:$true] %s92
      %98 = dma.hbm_to_vmem [thread:$0]  %s91, 896, %s93, [#allocation3], 128, 128, 8
    $region25: #{sequence_taggle1_forward.1} parent=1 // pred_fallthru
      _
    // Predicated region
    $region26: #{sequence_taggle1_forward.1} parent=1 // pred_check
      _
    $region27: #{sequence_taggle1_forward.1} parent=1 // pred_check_branch
      %100 = sbr.rel (0) target = $region29
    $region28: #{sequence_taggle1_forward.1} parent=1 // pred_region
      _
    $region29: #{sequence_taggle1_forward.1} parent=1 // pred_fallthru
      _
    // Predicated region
    $region30: #{sequence_taggle1_forward.1} parent=1 // pred_check
      _
    $region31: #{sequence_taggle1_forward.1} parent=1 // pred_check_branch
      %102 = sbr.rel (0) target = $region33
    $region32: #{sequence_taggle1_forward.1} parent=1 // pred_region
      _
    $region33: #{sequence_taggle1_forward.1} parent=1 // pred_fallthru
      _
    // Predicated region
    $region34: #{sequence_taggle1_forward.1} parent=1 // pred_check
      _
    $region35: #{sequence_taggle1_forward.1} parent=1 // pred_check_branch
      %104 = sbr.rel (0) target = $region37
    $region36: #{sequence_taggle1_forward.1} parent=1 // pred_region
      _
    $region37: #{sequence_taggle1_forward.1} parent=1 // pred_fallthru
      _
    // Predicated region
    $region38: #{sequence_taggle1_forward.1} parent=1 // pred_check
      _
    $region39: #{sequence_taggle1_forward.1} parent=1 // pred_check_branch
      %106 = sbr.rel (0) target = $region41
    $region40: #{sequence_taggle1_forward.1} parent=1 // pred_region
      _
    $region41: #{sequence_taggle1_forward.1} parent=1 // pred_fallthru
      _
    // Predicated region
    $region42: #{sequence_taggle1_forward.1} parent=1 // pred_check
      _
    $region43: #{sequence_taggle1_forward.1} parent=1 // pred_check_branch
      %108 = sbr.rel (0) target = $region45
    $region44: #{sequence_taggle1_forward.1} parent=1 // pred_region
      _
    $region45: #{sequence_taggle1_forward.1} parent=1 // pred_fallthru
      _
    // Predicated region
    $region46: #{sequence_taggle1_forward.1} parent=1 // pred_check
      _
    $region47: #{sequence_taggle1_forward.1} parent=1 // pred_check_branch
      %110 = sbr.rel (0) target = $region49
    $region48: #{sequence_taggle1_forward.1} parent=1 // pred_region
      _
    $region49: #{sequence_taggle1_forward.1} parent=1 // pred_fallthru
      _
    // Predicated region
    $region50: #{sequence_taggle1_forward.1} parent=1 // pred_check
      _
    $region51: #{sequence_taggle1_forward.1} parent=1 // pred_check_branch
      %112 = sbr.rel (0) target = $region53
    $region52: #{sequence_taggle1_forward.1} parent=1 // pred_region
      _
    $region53: #{sequence_taggle1_forward.1} parent=1 // pred_fallthru
      _
    // Predicated region
    $region54: #{sequence_taggle1_forward.1} parent=1 // pred_check
      _
    $region55: #{sequence_taggle1_forward.1} parent=1 // pred_check_branch
      %114 = sbr.rel (0) target = $region57
    $region56: #{sequence_taggle1_forward.1} parent=1 // pred_region
      %116 = vsyncadd [#allocation6], 0
      %s118 = sshll.u32 %s27, 4
      %s119 = int_to_ptr.hbm [resolvable:$true] %s118
      %s120 = sshll.u32 [#allocation5], 4
      %s121 = int_to_ptr.vmem [resolvable:$true] %s120
      %123 = dma.hbm_to_vmem [thread:$0]  %s119, 16, %s121, [#allocation6]
    $region57: #{sequence_taggle1_forward.1} parent=1 // pred_fallthru
      _
    // Predicated region
    $region58: #{sequence_taggle1_forward.1} parent=1 // pred_check
      _
    $region59: #{sequence_taggle1_forward.1} parent=1 // pred_check_branch
      %125 = sbr.rel (0) target = $region61
    $region60: #{sequence_taggle1_forward.1} parent=1 // pred_region
      %127 = vsyncadd [#allocation6], 0
      %s128 = sshll.u32 %s29, 4
      %s129 = int_to_ptr.hbm [resolvable:$true] %s128
      %s130 = sshll.u32 [#allocation7], 4
      %s131 = int_to_ptr.vmem [resolvable:$true] %s130
      %136 = dma.hbm_to_vmem [thread:$0]  %s129, 512, %s131, [#allocation6], 128, 128, 8
    $region61: #{sequence_taggle1_forward.1} parent=1 // pred_fallthru
      _
    // Predicated region
    $region62: #{sequence_taggle1_forward.1} parent=1 // pred_check
      _
    $region63: #{sequence_taggle1_forward.1} parent=1 // pred_check_branch
      %138 = sbr.rel (0) target = $region65
    $region64: #{sequence_taggle1_forward.1} parent=1 // pred_region
      %140 = vsyncadd [#allocation9], 0
      %s141 = sshll.u32 %s31, 4
      %s142 = int_to_ptr.hbm [resolvable:$true] %s141
      %s143 = sshll.u32 [#allocation8], 4
      %s144 = int_to_ptr.vmem [resolvable:$true] %s143
      %149 = dma.hbm_to_vmem [thread:$0]  %s142, 512, %s144, [#allocation9], 128, 128, 8
    $region65: #{sequence_taggle1_forward.1} parent=1 // pred_fallthru
      _
    // Predicated region
    $region66: #{sequence_taggle1_forward.1} parent=1 // pred_check
      _
    $region67: #{sequence_taggle1_forward.1} parent=1 // pred_check_branch
      %151 = sbr.rel (0) target = $region69
    $region68: #{sequence_taggle1_forward.1} parent=1 // pred_region
      %153 = vsyncadd [#allocation9], 0
      %s155 = sshll.u32 %s33, 4
      %s156 = int_to_ptr.hbm [resolvable:$true] %s155
      %s157 = sshll.u32 [#allocation10], 4
      %s158 = int_to_ptr.vmem [resolvable:$true] %s157
      %160 = dma.hbm_to_vmem [thread:$0]  %s156, 16, %s158, [#allocation9]
    $region69: #{sequence_taggle1_forward.1} parent=1 // pred_fallthru
      _
    // Predicated region
    $region70: #{sequence_taggle1_forward.1} parent=1 // pred_check
      _
    $region71: #{sequence_taggle1_forward.1} parent=1 // pred_check_branch
      %162 = sbr.rel (0) target = $region73
    $region72: #{sequence_taggle1_forward.1} parent=1 // pred_region
      %164 = vsyncadd [#allocation12], 0
      %s166 = sshll.u32 %s35, 4
      %s167 = int_to_ptr.hbm [resolvable:$true] %s166
      %s168 = sshll.u32 [#allocation11], 4
      %s169 = int_to_ptr.vmem [resolvable:$true] %s168
      %171 = dma.hbm_to_vmem [thread:$0]  %s167, 16, %s169, [#allocation12]
    $region73: #{sequence_taggle1_forward.1} parent=1 // pred_fallthru
      _
    // Predicated region
    $region74: #{sequence_taggle1_forward.1} parent=1 // pred_check
      _
    $region75: #{sequence_taggle1_forward.1} parent=1 // pred_check_branch
      %173 = sbr.rel (0) target = $region77
    $region76: #{sequence_taggle1_forward.1} parent=1 // pred_region
      _
    $region77: #{sequence_taggle1_forward.1} parent=1 // pred_fallthru
      _
    // Predicated region
    $region78: #{sequence_taggle1_forward.1} parent=1 // pred_check
      _
    $region79: #{sequence_taggle1_forward.1} parent=1 // pred_check_branch
      %175 = sbr.rel (0) target = $region81
    $region80: #{sequence_taggle1_forward.1} parent=1 // pred_region
      _
    $region81: #{sequence_taggle1_forward.1} parent=1 // pred_fallthru
      _
    // Predicated region
    $region82: #{sequence_taggle1_forward.1} parent=1 // pred_check
      _
    $region83: #{sequence_taggle1_forward.1} parent=1 // pred_check_branch
      %177 = sbr.rel (0) target = $region85
    $region84: #{sequence_taggle1_forward.1} parent=1 // pred_region
      _
    $region85: #{sequence_taggle1_forward.1} parent=1 // pred_fallthru
      _
    // Predicated region
    $region86: #{sequence_taggle1_forward.1} parent=1 // pred_check
      _
    $region87: #{sequence_taggle1_forward.1} parent=1 // pred_check_branch
      %179 = sbr.rel (0) target = $region89
    $region88: #{sequence_taggle1_forward.1} parent=1 // pred_region
      %181 = vsyncadd [#allocation12], 0
      %s183 = sshll.u32 %s43, 4
      %s184 = int_to_ptr.hbm [resolvable:$true] %s183
      %s185 = sshll.u32 [#allocation13], 4
      %s186 = int_to_ptr.vmem [resolvable:$true] %s185
      %188 = dma.hbm_to_vmem [thread:$0]  %s184, 16, %s186, [#allocation12]
    $region89: #{sequence_taggle1_forward.1} parent=1 // pred_fallthru
      _
    // Predicated region
    $region90: #{sequence_taggle1_forward.1} parent=1 // pred_check
      _
    $region91: #{sequence_taggle1_forward.1} parent=1 // pred_check_branch
      %190 = sbr.rel (0) target = $region93
    $region92: #{sequence_taggle1_forward.1} parent=1 // pred_region
      _
    $region93: #{sequence_taggle1_forward.1} parent=1 // pred_fallthru
      _
    // Predicated region
    $region94: #{sequence_taggle1_forward.1} parent=1 // pred_check
      _
    $region95: #{sequence_taggle1_forward.1} parent=1 // pred_check_branch
      %192 = sbr.rel (0) target = $region97
    $region96: #{sequence_taggle1_forward.1} parent=1 // pred_region
      _
    $region97: #{sequence_taggle1_forward.1} parent=1 // pred_fallthru
      _
    // Predicated region
    $region98: #{sequence_taggle1_forward.1} parent=1 // pred_check
      _
    $region99: #{sequence_taggle1_forward.1} parent=1 // pred_check_branch
      %194 = sbr.rel (0) target = $region101
    $region100: #{sequence_taggle1_forward.1} parent=1 // pred_region
      _
    $region101: #{sequence_taggle1_forward.1} parent=1 // pred_fallthru
      _
    // Predicated region
    $region102: #{sequence_taggle1_forward.1} parent=1 // pred_check
      _
    $region103: #{sequence_taggle1_forward.1} parent=1 // pred_check_branch
      %196 = sbr.rel (0) target = $region105
    $region104: #{sequence_taggle1_forward.1} parent=1 // pred_region
      %198 = vsyncadd [#allocation15], 0
      %s200 = sshll.u32 %s51, 4
      %s201 = int_to_ptr.hbm [resolvable:$true] %s200
      %s202 = sshll.u32 [#allocation14], 4
      %s203 = int_to_ptr.vmem [resolvable:$true] %s202
      %205 = dma.hbm_to_vmem [thread:$0]  %s201, 32, %s203, [#allocation15]
    $region105: #{sequence_taggle1_forward.1} parent=1 // pred_fallthru
      _
    // Predicated region
    $region106: #{sequence_taggle1_forward.1} parent=1 // pred_check
      _
    $region107: #{sequence_taggle1_forward.1} parent=1 // pred_check_branch
      %207 = sbr.rel (0) target = $region109
    $region108: #{sequence_taggle1_forward.1} parent=1 // pred_region
      _
    $region109: #{sequence_taggle1_forward.1} parent=1 // pred_fallthru
      _
    // Predicated region
    $region110: #{sequence_taggle1_forward.1} parent=1 // pred_check
      _
    $region111: #{sequence_taggle1_forward.1} parent=1 // pred_check_branch
      %209 = sbr.rel (0) target = $region113
    $region112: #{sequence_taggle1_forward.1} parent=1 // pred_region
      %211 = vsyncadd [#allocation15], 0
      %s213 = sshll.u32 %s55, 4
      %s214 = int_to_ptr.hbm [resolvable:$true] %s213
      %s215 = sshll.u32 [#allocation16], 4
      %s216 = int_to_ptr.vmem [resolvable:$true] %s215
      %218 = dma.hbm_to_vmem [thread:$0]  %s214, 16, %s216, [#allocation15]
    $region113: #{sequence_taggle1_forward.1} parent=1 // pred_fallthru
      _
    // Predicated region
    $region114: #{sequence_taggle1_forward.1} parent=1 // pred_check
      _
    $region115: #{sequence_taggle1_forward.1} parent=1 // pred_check_branch
      %220 = sbr.rel (0) target = $region117
    $region116: #{sequence_taggle1_forward.1} parent=1 // pred_region
      _
    $region117: #{sequence_taggle1_forward.1} parent=1 // pred_fallthru
      _
    // Predicated region
    $region118: #{sequence_taggle1_forward.1} parent=1 // pred_check
      _
    $region119: #{sequence_taggle1_forward.1} parent=1 // pred_check_branch
      %222 = sbr.rel (0) target = $region121
    $region120: #{sequence_taggle1_forward.1} parent=1 // pred_region
      %224 = vsyncadd [#allocation18], 0
      %s226 = sshll.u32 %s59, 4
      %s227 = int_to_ptr.hbm [resolvable:$true] %s226
      %s228 = sshll.u32 [#allocation17], 4
      %s229 = int_to_ptr.vmem [resolvable:$true] %s228
      %231 = dma.hbm_to_vmem [thread:$0]  %s227, 16, %s229, [#allocation18]
    $region121: #{sequence_taggle1_forward.1} parent=1 // pred_fallthru
      _
    // Predicated region
    $region122: #{sequence_taggle1_forward.1} parent=1 // pred_check
      _
    $region123: #{sequence_taggle1_forward.1} parent=1 // pred_check_branch
      %233 = sbr.rel (0) target = $region125
    $region124: #{sequence_taggle1_forward.1} parent=1 // pred_region
      %235 = dma.done [#allocation3], 896
    $region125: #{sequence_taggle1_forward.1} parent=1 // pred_fallthru
      _
    // Predicated region
    $region126: #{sequence_taggle1_forward.1} parent=1 // pred_check
      _
    $region127: #{sequence_taggle1_forward.1} parent=1 // pred_check_branch
      %237 = sbr.rel (0) target = $region129
    $region128: #{sequence_taggle1_forward.1} parent=1 // pred_region
      %239 = dma.done [#allocation6], 16
    $region129: #{sequence_taggle1_forward.1} parent=1 // pred_fallthru
      _
    // Predicated region
    $region130: #{sequence_taggle1_forward.1} parent=1 // pred_check
      _
    $region131: #{sequence_taggle1_forward.1} parent=1 // pred_check_branch
      %241 = sbr.rel (0) target = $region133
    $region132: #{sequence_taggle1_forward.1} parent=1 // pred_region
      %243 = dma.done [#allocation6], 512
    $region133: #{sequence_taggle1_forward.1} parent=1 // pred_fallthru
      _
    // Predicated region
    $region134: #{sequence_taggle1_forward.1} parent=1 // pred_check
      _
    $region135: #{sequence_taggle1_forward.1} parent=1 // pred_check_branch
      %245 = sbr.rel (0) target = $region137
    $region136: #{sequence_taggle1_forward.1} parent=1 // pred_region
      %247 = dma.done [#allocation9], 512
    $region137: #{sequence_taggle1_forward.1} parent=1 // pred_fallthru
      _
    // Predicated region
    $region138: #{sequence_taggle1_forward.1} parent=1 // pred_check
      _
    $region139: #{sequence_taggle1_forward.1} parent=1 // pred_check_branch
      %249 = sbr.rel (0) target = $region141
    $region140: #{sequence_taggle1_forward.1} parent=1 // pred_region
      %251 = dma.done [#allocation9], 16
    $region141: #{sequence_taggle1_forward.1} parent=1 // pred_fallthru
      _
    // Predicated region
    $region142: #{sequence_taggle1_forward.1} parent=1 // pred_check
      _
    $region143: #{sequence_taggle1_forward.1} parent=1 // pred_check_branch
      %253 = sbr.rel (0) target = $region145
    $region144: #{sequence_taggle1_forward.1} parent=1 // pred_region
      %255 = dma.done [#allocation12], 16
    $region145: #{sequence_taggle1_forward.1} parent=1 // pred_fallthru
      _
    // Predicated region
    $region146: #{sequence_taggle1_forward.1} parent=1 // pred_check
      _
    $region147: #{sequence_taggle1_forward.1} parent=1 // pred_check_branch
      %257 = sbr.rel (0) target = $region149
    $region148: #{sequence_taggle1_forward.1} parent=1 // pred_region
      %259 = dma.done [#allocation12], 16
    $region149: #{sequence_taggle1_forward.1} parent=1 // pred_fallthru
      _
    // Predicated region
    $region150: #{sequence_taggle1_forward.1} parent=1 // pred_check
      _
    $region151: #{sequence_taggle1_forward.1} parent=1 // pred_check_branch
      %261 = sbr.rel (0) target = $region153
    $region152: #{sequence_taggle1_forward.1} parent=1 // pred_region
      %263 = dma.done [#allocation15], 32
    $region153: #{sequence_taggle1_forward.1} parent=1 // pred_fallthru
      _
    // Predicated region
    $region154: #{sequence_taggle1_forward.1} parent=1 // pred_check
      _
    $region155: #{sequence_taggle1_forward.1} parent=1 // pred_check_branch
      %265 = sbr.rel (0) target = $region157
    $region156: #{sequence_taggle1_forward.1} parent=1 // pred_region
      %267 = dma.done [#allocation15], 16
    $region157: #{sequence_taggle1_forward.1} parent=1 // pred_fallthru
      _
    // Predicated region
    $region158: #{sequence_taggle1_forward.1} parent=1 // pred_check
      _
    $region159: #{sequence_taggle1_forward.1} parent=1 // pred_check_branch
      %269 = sbr.rel (0) target = $region161
    $region160: #{sequence_taggle1_forward.1} parent=1 // pred_region
      %271 = dma.done [#allocation18], 16
    $region161: #{sequence_taggle1_forward.1} parent=1 // pred_fallthru
      _
    %v272 = vld [vmem:[%s1] sm:$0xff]
    %v273 = vld [vmem:[%s1 + $0x8] sm:$0xff]
    %v274 = vld [vmem:[%s1 + $0x10] sm:$0xff]
    %v275 = vld [vmem:[%s1 + $0x18] sm:$0xff]
    %v276 = vld [vmem:[%s1 + $0x20] sm:$0xff]
    %v277 = vld [vmem:[%s1 + $0x28] sm:$0xff]
    %v278 = vlaneseq
    %v279 = vand.u32 %v278, 127
    %280 = vset.pattern.permute.xlu0 0
    %281 = vperm.xlu0 %280, %v272
    %v282 = vpop.permute.xlu0 %281
    %283 = vset.pattern.permute.xlu0 0
    %284 = vperm.xlu0 %283, %v273
    %v285 = vpop.permute.xlu0 %284
    %286 = vset.pattern.permute.xlu0 0
    %287 = vperm.xlu0 %286, %v274
    %v288 = vpop.permute.xlu0 %287
    %289 = vset.pattern.permute.xlu0 0
    %290 = vperm.xlu0 %289, %v275
    %v291 = vpop.permute.xlu0 %290
    %292 = vset.pattern.permute.xlu0 0
    %293 = vperm.xlu0 %292, %v276
    %v294 = vpop.permute.xlu0 %293
    %295 = vset.pattern.permute.xlu0 0
    %296 = vperm.xlu0 %295, %v277
    %v297 = vpop.permute.xlu0 %296
    %vm298 = vcmp.eq.s32.totalorder %v279, %v282
    %vm299 = vcmp.eq.s32.totalorder %v279, %v285
    %vm300 = vcmp.eq.s32.totalorder %v279, %v288
    %vm301 = vcmp.eq.s32.totalorder %v279, %v291
    %vm302 = vcmp.eq.s32.totalorder %v279, %v294
    %vm303 = vcmp.eq.s32.totalorder %v279, %v297
    %v304 = vsel %vm298, 1, 0
    %v305 = vsel %vm299, 1, 0
    %v306 = vsel %vm300, 1, 0
    %v307 = vsel %vm301, 1, 0
    %v308 = vsel %vm302, 1, 0
    %v309 = vsel %vm303, 1, 0
    %v310 = vcvt.s32.f32 %v304
    %v311 = vcvt.s32.f32 %v305
    %v312 = vcvt.s32.f32 %v306
    %v313 = vcvt.s32.f32 %v307
    %v314 = vcvt.s32.f32 %v308
    %v315 = vcvt.s32.f32 %v309
    %v316 = vld [vmem:[%s3] sm:$0xff]
    %v317 = vld [vmem:[%s3 + $0x8] sm:$0xff]
    %v318 = vld [vmem:[%s3 + $0x10] sm:$0xff]
    %v319 = vld [vmem:[%s3 + $0x18] sm:$0xff]
    %v320 = vld [vmem:[%s3 + $0x20] sm:$0xff]
    %v321 = vld [vmem:[%s3 + $0x28] sm:$0xff]
    %v322 = vld [vmem:[%s3 + $0x30] sm:$0x3]
    %v323 = vld [vmem:[%s5] sm:$0x1]
    %v325 = vperm.slane %v323, 0
    %vm327 = vcmask 408576
    %v329 = vsel %vm327, %v310, 0
    %v332 = vsel %vm327, %v311, 0
    %v335 = vsel %vm327, %v312, 0
    %v338 = vsel %vm327, %v313, 0
    %v341 = vsel %vm327, %v314, 0
    %v344 = vsel %vm327, %v315, 0
    %vm346 = vcmask 1041408
    %v348 = vsel %vm346, %v322, 0
    %350 = vmatpush.msra.mxu0 0.0
    %351 = vmatpush.msra.mxu0 0.0
    %352 = vmatpush.msra.mxu0 0.0
    %353 = vmatpush.msra.mxu0 0.0
    %354 = vmatpush.msra.mxu0 0.0
    %355 = vmatpush.msra.mxu0 0.0
    %356 = vmatpush.msra.mxu0 0.0
    %357 = vmatpush.msra.mxu0 0.0
    %358 = vmatpush.msra.mxu0 0.0
    %359 = vmatpush.msra.mxu0 %v348
    %360 = vmatpush.msra.mxu0 %v321
    %361 = vmatpush.msra.mxu0 %v320
    %362 = vmatpush.msra.mxu0 %v319
    %363 = vmatpush.msra.mxu0 %v318
    %364 = vmatpush.msra.mxu0 %v317
    %365 = vmatpush.msra.mxu0 %v316
    %366 = vmatmul.f32.gmra.mxu0 %v329
    %v367 = vpop.f32.mrf.mxu0
    %v368 = vadd.f32 %v325, %v367
    %369 = vmatmul.f32.gmra.mxu0 %v332
    %v370 = vpop.f32.mrf.mxu0
    %v371 = vadd.f32 %v325, %v370
    %372 = vmatmul.f32.gmra.mxu0 %v335
    %v373 = vpop.f32.mrf.mxu0
    %v374 = vadd.f32 %v325, %v373
    %375 = vmatmul.f32.gmra.mxu0 %v338
    %v376 = vpop.f32.mrf.mxu0
    %v377 = vadd.f32 %v325, %v376
    %378 = vmatmul.f32.gmra.mxu0 %v341
    %v379 = vpop.f32.mrf.mxu0
    %v380 = vadd.f32 %v325, %v379
    %381 = vmatmul.f32.gmra.mxu0 %v344
    %v382 = vpop.f32.mrf.mxu0
    %v383 = vadd.f32 %v325, %v382
    %384 = vdwg.mxu0
    %v385 = vld [vmem:[%s7] sm:$0xff]
    %v386 = vld [vmem:[%s7 + $0x8] sm:$0xff]
    %v387 = vld [vmem:[%s7 + $0x10] sm:$0xff]
    %v388 = vld [vmem:[%s7 + $0x18] sm:$0xff]
    %v389 = vld [vmem:[%s9] sm:$0x1]
    %v391 = vperm.slane %v389, 0
    %vm393 = vcmask 261120
    %v395 = vsel %vm393, 0.0, 0
    %397 = vmatpush.msra.mxu0 0.0
    %398 = vmatpush.msra.mxu0 0.0
    %399 = vmatpush.msra.mxu0 0.0
    %400 = vmatpush.msra.mxu0 0.0
    %401 = vmatpush.msra.mxu0 0.0
    %402 = vmatpush.msra.mxu0 0.0
    %403 = vmatpush.msra.mxu0 0.0
    %404 = vmatpush.msra.mxu0 0.0
    %405 = vmatpush.msra.mxu0 0.0
    %406 = vmatpush.msra.mxu0 0.0
    %407 = vmatpush.msra.mxu0 0.0
    %408 = vmatpush.msra.mxu0 0.0
    %409 = vmatpush.msra.mxu0 %v388
    %410 = vmatpush.msra.mxu0 %v387
    %411 = vmatpush.msra.mxu0 %v386
    %412 = vmatpush.msra.mxu0 %v385
    %413 = vmatmul.f32.gmra.mxu0 %v395
    %v414 = vpop.f32.mrf.mxu0
    %v415 = vadd.f32 %v391, %v414
    %416 = vdwg.mxu0
    %v417 = vadd.f32 %v368, %v415
    %v418 = vxor.u32 %v417, 2147483648
    %v419 = vmul.f32 %v418, 1.442695
    %v420 = vpow.pop %v419
    %v421 = vadd.f32 %v420, 1.0
    %v422 = vrcp.pop %v421
    %v423 = vmul.f32 %v421, %v422
    %v424 = vsub.f32 1.0, %v423
    %v425 = vmul.f32 %v422, %v424
    %v426 = vadd.f32 %v422, %v425
    %vm427 = vweird.f32 %v421
    %vm428 = vweird.f32 %v422
    %vm429 = vmor %vm427, %vm428
    %v430 = vsel %vm429, %v422, %v426
    %v431 = vand.u32 2147483647, %v421
    %vm432 = vcmp.eq.f32.partialorder %v431, 8.507059e+37
    %v433 = vand.u32 %v421, 2147483648
    %v434 = vor.u32 1.1754944e-38, %v433
    %v435 = vsel %vm432, %v434, %v430
    %v436 = vmul.f32 1.0, %v435
    %438 = vrot.lane.b32.xlu0 %v415, 64
    %v439 = vpop.permute.xlu0 %438
    %v441 = vmul.f32 %v436, %v439
    %443 = vrot.lane.b32.xlu0 %v441, 64
    %v444 = vpop.permute.xlu0 %443
    %v446 = vadd.f32 %v368, %v444
    %v447 = vtanh.pop %v446
    %v448 = vsub.f32 1.0, %v436
    %450 = vrot.lane.b32.xlu0 %v447, 96
    %v451 = vpop.permute.xlu0 %450
    %v453 = vmul.f32 %v448, %v451
    %v454 = vmul.f32 %v436, 0.0
    %v455 = vadd.f32 %v453, %v454
    %457 = vrot.lane.b32.xlu0 %v455, 96
    %v458 = vpop.permute.xlu0 %457
    %v459 = vsel %vm393, %v458, 0
    %461 = vmatpush.msra.mxu0 0.0
    %462 = vmatpush.msra.mxu0 0.0
    %463 = vmatpush.msra.mxu0 0.0
    %464 = vmatpush.msra.mxu0 0.0
    %465 = vmatpush.msra.mxu0 0.0
    %466 = vmatpush.msra.mxu0 0.0
    %467 = vmatpush.msra.mxu0 0.0
    %468 = vmatpush.msra.mxu0 0.0
    %469 = vmatpush.msra.mxu0 0.0
    %470 = vmatpush.msra.mxu0 0.0
    %471 = vmatpush.msra.mxu0 0.0
    %472 = vmatpush.msra.mxu0 0.0
    %473 = vmatpush.msra.mxu0 %v388
    %474 = vmatpush.msra.mxu0 %v387
    %475 = vmatpush.msra.mxu0 %v386
    %476 = vmatpush.msra.mxu0 %v385
    %477 = vmatmul.f32.gmra.mxu0 %v459
    %v478 = vpop.f32.mrf.mxu0
    %v479 = vadd.f32 %v391, %v478
    %480 = vdwg.mxu0
    %v482 = vrot.slane %v479, 2
    %v484 = vadd.f32 %v368, %v482
    %v485 = vadd.f32 %v371, %v482
    %v486 = vxor.u32 %v484, 2147483648
    %v487 = vxor.u32 %v485, 2147483648
    %v488 = vmul.f32 %v486, 1.442695
    %v489 = vpow.pop %v488
    %v490 = vmul.f32 %v487, 1.442695
    %v491 = vpow.pop %v490
    %v492 = vadd.f32 %v489, 1.0
    %v493 = vadd.f32 %v491, 1.0
    %v494 = vrcp.pop %v492
    %v495 = vmul.f32 %v492, %v494
    %v496 = vsub.f32 1.0, %v495
    %v497 = vmul.f32 %v494, %v496
    %v498 = vadd.f32 %v494, %v497
    %vm499 = vweird.f32 %v492
    %vm500 = vweird.f32 %v494
    %vm501 = vmor %vm499, %vm500
    %v502 = vsel %vm501, %v494, %v498
    %v503 = vand.u32 2147483647, %v492
    %vm504 = vcmp.eq.f32.partialorder %v503, 8.507059e+37
    %v505 = vand.u32 %v492, 2147483648
    %v506 = vor.u32 1.1754944e-38, %v505
    %v507 = vsel %vm504, %v506, %v502
    %v508 = vmul.f32 1.0, %v507
    %v509 = vrcp.pop %v493
    %v510 = vmul.f32 %v493, %v509
    %v511 = vsub.f32 1.0, %v510
    %v512 = vmul.f32 %v509, %v511
    %v513 = vadd.f32 %v509, %v512
    %vm514 = vweird.f32 %v493
    %vm515 = vweird.f32 %v509
    %vm516 = vmor %vm514, %vm515
    %v517 = vsel %vm516, %v509, %v513
    %v518 = vand.u32 2147483647, %v493
    %vm519 = vcmp.eq.f32.partialorder %v518, 8.507059e+37
    %v520 = vand.u32 %v493, 2147483648
    %v521 = vor.u32 1.1754944e-38, %v520
    %v522 = vsel %vm519, %v521, %v517
    %v523 = vmul.f32 1.0, %v522
    %524 = vrot.lane.b32.xlu0 %v482, 64
    %v525 = vpop.permute.xlu0 %524
    %v527 = vmul.f32 %v508, %v525
    %v528 = vmul.f32 %v523, %v525
    %531 = vrot.lane.b32.xlu0 %v527, 64
    %v532 = vpop.permute.xlu0 %531
    %533 = vrot.lane.b32.xlu0 %v528, 64
    %v534 = vpop.permute.xlu0 %533
    %v537 = vadd.f32 %v368, %v532
    %v538 = vadd.f32 %v371, %v534
    %v539 = vtanh.pop %v537
    %v540 = vtanh.pop %v538
    %v541 = vsub.f32 1.0, %v508
    %v542 = vsub.f32 1.0, %v523
    %545 = vrot.lane.b32.xlu0 %v539, 96
    %v546 = vpop.permute.xlu0 %545
    %547 = vrot.lane.b32.xlu0 %v540, 96
    %v548 = vpop.permute.xlu0 %547
    %v551 = vmul.f32 %v541, %v546
    %v552 = vmul.f32 %v542, %v548
    %v553 = vrot.slane %v455, 2
    %v555 = vmul.f32 %v508, %v553
    %v556 = vmul.f32 %v523, %v553
    %v557 = vadd.f32 %v551, %v555
    %v558 = vadd.f32 %v552, %v556
    %v561 = vrot.slane %v557, 6
    %v562 = vrot.slane %v558, 6
    %v563 = vsel %vm346, %v561, %v562
    %564 = vrot.lane.b32.xlu0 %v563, 96
    %v565 = vpop.permute.xlu0 %564
    %v566 = vsel %vm393, %v565, 0
    %568 = vmatpush.msra.mxu0 0.0
    %569 = vmatpush.msra.mxu0 0.0
    %570 = vmatpush.msra.mxu0 0.0
    %571 = vmatpush.msra.mxu0 0.0
    %572 = vmatpush.msra.mxu0 0.0
    %573 = vmatpush.msra.mxu0 0.0
    %574 = vmatpush.msra.mxu0 0.0
    %575 = vmatpush.msra.mxu0 0.0
    %576 = vmatpush.msra.mxu0 0.0
    %577 = vmatpush.msra.mxu0 0.0
    %578 = vmatpush.msra.mxu0 0.0
    %579 = vmatpush.msra.mxu0 0.0
    %580 = vmatpush.msra.mxu0 %v388
    %581 = vmatpush.msra.mxu0 %v387
    %582 = vmatpush.msra.mxu0 %v386
    %583 = vmatpush.msra.mxu0 %v385
    %584 = vmatmul.f32.gmra.mxu0 %v566
    %v585 = vpop.f32.mrf.mxu0
    %v586 = vadd.f32 %v391, %v585
    %587 = vdwg.mxu0
    %v589 = vrot.slane %v586, 4
    %v591 = vadd.f32 %v371, %v589
    %v592 = vadd.f32 %v374, %v589
    %v593 = vxor.u32 %v591, 2147483648
    %v594 = vxor.u32 %v592, 2147483648
    %v595 = vmul.f32 %v593, 1.442695
    %v596 = vpow.pop %v595
    %v597 = vmul.f32 %v594, 1.442695
    %v598 = vpow.pop %v597
    %v599 = vadd.f32 %v596, 1.0
    %v600 = vadd.f32 %v598, 1.0
    %v601 = vrcp.pop %v599
    %v602 = vmul.f32 %v599, %v601
    %v603 = vsub.f32 1.0, %v602
    %v604 = vmul.f32 %v601, %v603
    %v605 = vadd.f32 %v601, %v604
    %vm606 = vweird.f32 %v599
    %vm607 = vweird.f32 %v601
    %vm608 = vmor %vm606, %vm607
    %v609 = vsel %vm608, %v601, %v605
    %v610 = vand.u32 2147483647, %v599
    %vm611 = vcmp.eq.f32.partialorder %v610, 8.507059e+37
    %v612 = vand.u32 %v599, 2147483648
    %v613 = vor.u32 1.1754944e-38, %v612
    %v614 = vsel %vm611, %v613, %v609
    %v615 = vmul.f32 1.0, %v614
    %v616 = vrcp.pop %v600
    %v617 = vmul.f32 %v600, %v616
    %v618 = vsub.f32 1.0, %v617
    %v619 = vmul.f32 %v616, %v618
    %v620 = vadd.f32 %v616, %v619
    %vm621 = vweird.f32 %v600
    %vm622 = vweird.f32 %v616
    %vm623 = vmor %vm621, %vm622
    %v624 = vsel %vm623, %v616, %v620
    %v625 = vand.u32 2147483647, %v600
    %vm626 = vcmp.eq.f32.partialorder %v625, 8.507059e+37
    %v627 = vand.u32 %v600, 2147483648
    %v628 = vor.u32 1.1754944e-38, %v627
    %v629 = vsel %vm626, %v628, %v624
    %v630 = vmul.f32 1.0, %v629
    %631 = vrot.lane.b32.xlu0 %v589, 64
    %v632 = vpop.permute.xlu0 %631
    %v634 = vmul.f32 %v615, %v632
    %v635 = vmul.f32 %v630, %v632
    %638 = vrot.lane.b32.xlu0 %v634, 64
    %v639 = vpop.permute.xlu0 %638
    %640 = vrot.lane.b32.xlu0 %v635, 64
    %v641 = vpop.permute.xlu0 %640
    %v644 = vadd.f32 %v371, %v639
    %v645 = vadd.f32 %v374, %v641
    %v646 = vtanh.pop %v644
    %v647 = vtanh.pop %v645
    %v648 = vsub.f32 1.0, %v615
    %v649 = vsub.f32 1.0, %v630
    %652 = vrot.lane.b32.xlu0 %v646, 96
    %v653 = vpop.permute.xlu0 %652
    %654 = vrot.lane.b32.xlu0 %v647, 96
    %v655 = vpop.permute.xlu0 %654
    %v658 = vmul.f32 %v648, %v653
    %v659 = vmul.f32 %v649, %v655
    %vm660 = vcmask 1045504
    %v661 = vrot.slane %v557, 2
    %v662 = vrot.slane %v558, 2
    %v663 = vsel %vm660, %v661, %v662
    %v666 = vmul.f32 %v615, %v663
    %v667 = vmul.f32 %v630, %v662
    %v668 = vadd.f32 %v658, %v666
    %v669 = vadd.f32 %v659, %v667
    %vm672 = vcmask 1043456
    %v673 = vrot.slane %v668, 4
    %v674 = vrot.slane %v669, 4
    %v675 = vsel %vm672, %v673, %v674
    %676 = vrot.lane.b32.xlu0 %v675, 96
    %v677 = vpop.permute.xlu0 %676
    %v678 = vsel %vm393, %v677, 0
    %680 = vmatpush.msra.mxu0 0.0
    %681 = vmatpush.msra.mxu0 0.0
    %682 = vmatpush.msra.mxu0 0.0
    %683 = vmatpush.msra.mxu0 0.0
    %684 = vmatpush.msra.mxu0 0.0
    %685 = vmatpush.msra.mxu0 0.0
    %686 = vmatpush.msra.mxu0 0.0
    %687 = vmatpush.msra.mxu0 0.0
    %688 = vmatpush.msra.mxu0 0.0
    %689 = vmatpush.msra.mxu0 0.0
    %690 = vmatpush.msra.mxu0 0.0
    %691 = vmatpush.msra.mxu0 0.0
    %692 = vmatpush.msra.mxu0 %v388
    %693 = vmatpush.msra.mxu0 %v387
    %694 = vmatpush.msra.mxu0 %v386
    %695 = vmatpush.msra.mxu0 %v385
    %696 = vmatmul.f32.gmra.mxu0 %v678
    %v697 = vpop.f32.mrf.mxu0
    %v698 = vadd.f32 %v391, %v697
    %699 = vdwg.mxu0
    %v701 = vrot.slane %v698, 6
    %v703 = vadd.f32 %v374, %v701
    %v704 = vxor.u32 %v703, 2147483648
    %v705 = vmul.f32 %v704, 1.442695
    %v706 = vpow.pop %v705
    %v707 = vadd.f32 %v706, 1.0
    %v708 = vrcp.pop %v707
    %v709 = vmul.f32 %v707, %v708
    %v710 = vsub.f32 1.0, %v709
    %v711 = vmul.f32 %v708, %v710
    %v712 = vadd.f32 %v708, %v711
    %vm713 = vweird.f32 %v707
    %vm714 = vweird.f32 %v708
    %vm715 = vmor %vm713, %vm714
    %v716 = vsel %vm715, %v708, %v712
    %v717 = vand.u32 2147483647, %v707
    %vm718 = vcmp.eq.f32.partialorder %v717, 8.507059e+37
    %v719 = vand.u32 %v707, 2147483648
    %v720 = vor.u32 1.1754944e-38, %v719
    %v721 = vsel %vm718, %v720, %v716
    %v722 = vmul.f32 1.0, %v721
    %723 = vrot.lane.b32.xlu0 %v701, 64
    %v724 = vpop.permute.xlu0 %723
    %v726 = vmul.f32 %v722, %v724
    %728 = vrot.lane.b32.xlu0 %v726, 64
    %v729 = vpop.permute.xlu0 %728
    %v731 = vadd.f32 %v374, %v729
    %v732 = vtanh.pop %v731
    %v733 = vsub.f32 1.0, %v722
    %735 = vrot.lane.b32.xlu0 %v732, 96
    %v736 = vpop.permute.xlu0 %735
    %v738 = vmul.f32 %v733, %v736
    %v739 = vrot.slane %v668, 2
    %v740 = vrot.slane %v669, 2
    %v741 = vsel %vm660, %v739, %v740
    %v743 = vmul.f32 %v722, %v741
    %v744 = vadd.f32 %v738, %v743
    %v746 = vrot.slane %v744, 2
    %747 = vrot.lane.b32.xlu0 %v746, 96
    %v748 = vpop.permute.xlu0 %747
    %v749 = vsel %vm393, %v748, 0
    %751 = vmatpush.msra.mxu0 0.0
    %752 = vmatpush.msra.mxu0 0.0
    %753 = vmatpush.msra.mxu0 0.0
    %754 = vmatpush.msra.mxu0 0.0
    %755 = vmatpush.msra.mxu0 0.0
    %756 = vmatpush.msra.mxu0 0.0
    %757 = vmatpush.msra.mxu0 0.0
    %758 = vmatpush.msra.mxu0 0.0
    %759 = vmatpush.msra.mxu0 0.0
    %760 = vmatpush.msra.mxu0 0.0
    %761 = vmatpush.msra.mxu0 0.0
    %762 = vmatpush.msra.mxu0 0.0
    %763 = vmatpush.msra.mxu0 %v388
    %764 = vmatpush.msra.mxu0 %v387
    %765 = vmatpush.msra.mxu0 %v386
    %766 = vmatpush.msra.mxu0 %v385
    %767 = vmatmul.f32.gmra.mxu0 %v749
    %v768 = vpop.f32.mrf.mxu0
    %v769 = vadd.f32 %v391, %v768
    %770 = vdwg.mxu0
    %v771 = vadd.f32 %v377, %v769
    %v772 = vxor.u32 %v771, 2147483648
    %v773 = vmul.f32 %v772, 1.442695
    %v774 = vpow.pop %v773
    %v775 = vadd.f32 %v774, 1.0
    %v776 = vrcp.pop %v775
    %v777 = vmul.f32 %v775, %v776
    %v778 = vsub.f32 1.0, %v777
    %v779 = vmul.f32 %v776, %v778
    %v780 = vadd.f32 %v776, %v779
    %vm781 = vweird.f32 %v775
    %vm782 = vweird.f32 %v776
    %vm783 = vmor %vm781, %vm782
    %v784 = vsel %vm783, %v776, %v780
    %v785 = vand.u32 2147483647, %v775
    %vm786 = vcmp.eq.f32.partialorder %v785, 8.507059e+37
    %v787 = vand.u32 %v775, 2147483648
    %v788 = vor.u32 1.1754944e-38, %v787
    %v789 = vsel %vm786, %v788, %v784
    %v790 = vmul.f32 1.0, %v789
    %792 = vrot.lane.b32.xlu0 %v769, 64
    %v793 = vpop.permute.xlu0 %792
    %v795 = vmul.f32 %v790, %v793
    %797 = vrot.lane.b32.xlu0 %v795, 64
    %v798 = vpop.permute.xlu0 %797
    %v800 = vadd.f32 %v377, %v798
    %v801 = vtanh.pop %v800
    %v802 = vsub.f32 1.0, %v790
    %804 = vrot.lane.b32.xlu0 %v801, 96
    %v805 = vpop.permute.xlu0 %804
    %v807 = vmul.f32 %v802, %v805
    %v809 = vmul.f32 %v790, %v746
    %v810 = vadd.f32 %v807, %v809
    %812 = vrot.lane.b32.xlu0 %v810, 96
    %v813 = vpop.permute.xlu0 %812
    %v814 = vsel %vm393, %v813, 0
    %816 = vmatpush.msra.mxu0 0.0
    %817 = vmatpush.msra.mxu0 0.0
    %818 = vmatpush.msra.mxu0 0.0
    %819 = vmatpush.msra.mxu0 0.0
    %820 = vmatpush.msra.mxu0 0.0
    %821 = vmatpush.msra.mxu0 0.0
    %822 = vmatpush.msra.mxu0 0.0
    %823 = vmatpush.msra.mxu0 0.0
    %824 = vmatpush.msra.mxu0 0.0
    %825 = vmatpush.msra.mxu0 0.0
    %826 = vmatpush.msra.mxu0 0.0
    %827 = vmatpush.msra.mxu0 0.0
    %828 = vmatpush.msra.mxu0 %v388
    %829 = vmatpush.msra.mxu0 %v387
    %830 = vmatpush.msra.mxu0 %v386
    %831 = vmatpush.msra.mxu0 %v385
    %832 = vmatmul.f32.gmra.mxu0 %v814
    %v833 = vpop.f32.mrf.mxu0
    %v834 = vadd.f32 %v391, %v833
    %835 = vdwg.mxu0
    %v837 = vrot.slane %v834, 2
    %v839 = vadd.f32 %v377, %v837
    %v840 = vadd.f32 %v380, %v837
    %v841 = vxor.u32 %v839, 2147483648
    %v842 = vxor.u32 %v840, 2147483648
    %v843 = vmul.f32 %v841, 1.442695
    %v844 = vpow.pop %v843
    %v845 = vmul.f32 %v842, 1.442695
    %v846 = vpow.pop %v845
    %v847 = vadd.f32 %v844, 1.0
    %v848 = vadd.f32 %v846, 1.0
    %v849 = vrcp.pop %v847
    %v850 = vmul.f32 %v847, %v849
    %v851 = vsub.f32 1.0, %v850
    %v852 = vmul.f32 %v849, %v851
    %v853 = vadd.f32 %v849, %v852
    %vm854 = vweird.f32 %v847
    %vm855 = vweird.f32 %v849
    %vm856 = vmor %vm854, %vm855
    %v857 = vsel %vm856, %v849, %v853
    %v858 = vand.u32 2147483647, %v847
    %vm859 = vcmp.eq.f32.partialorder %v858, 8.507059e+37
    %v860 = vand.u32 %v847, 2147483648
    %v861 = vor.u32 1.1754944e-38, %v860
    %v862 = vsel %vm859, %v861, %v857
    %v863 = vmul.f32 1.0, %v862
    %v864 = vrcp.pop %v848
    %v865 = vmul.f32 %v848, %v864
    %v866 = vsub.f32 1.0, %v865
    %v867 = vmul.f32 %v864, %v866
    %v868 = vadd.f32 %v864, %v867
    %vm869 = vweird.f32 %v848
    %vm870 = vweird.f32 %v864
    %vm871 = vmor %vm869, %vm870
    %v872 = vsel %vm871, %v864, %v868
    %v873 = vand.u32 2147483647, %v848
    %vm874 = vcmp.eq.f32.partialorder %v873, 8.507059e+37
    %v875 = vand.u32 %v848, 2147483648
    %v876 = vor.u32 1.1754944e-38, %v875
    %v877 = vsel %vm874, %v876, %v872
    %v878 = vmul.f32 1.0, %v877
    %879 = vrot.lane.b32.xlu0 %v837, 64
    %v880 = vpop.permute.xlu0 %879
    %v882 = vmul.f32 %v863, %v880
    %v883 = vmul.f32 %v878, %v880
    %886 = vrot.lane.b32.xlu0 %v882, 64
    %v887 = vpop.permute.xlu0 %886
    %888 = vrot.lane.b32.xlu0 %v883, 64
    %v889 = vpop.permute.xlu0 %888
    %v892 = vadd.f32 %v377, %v887
    %v893 = vadd.f32 %v380, %v889
    %v894 = vtanh.pop %v892
    %v895 = vtanh.pop %v893
    %v896 = vsub.f32 1.0, %v863
    %v897 = vsub.f32 1.0, %v878
    %900 = vrot.lane.b32.xlu0 %v894, 96
    %v901 = vpop.permute.xlu0 %900
    %902 = vrot.lane.b32.xlu0 %v895, 96
    %v903 = vpop.permute.xlu0 %902
    %v906 = vmul.f32 %v896, %v901
    %v907 = vmul.f32 %v897, %v903
    %v908 = vrot.slane %v810, 2
    %v910 = vmul.f32 %v863, %v908
    %v911 = vmul.f32 %v878, %v908
    %v912 = vadd.f32 %v906, %v910
    %v913 = vadd.f32 %v907, %v911
    %v916 = vrot.slane %v912, 6
    %v917 = vrot.slane %v913, 6
    %v918 = vsel %vm346, %v916, %v917
    %919 = vrot.lane.b32.xlu0 %v918, 96
    %v920 = vpop.permute.xlu0 %919
    %v921 = vsel %vm393, %v920, 0
    %923 = vmatpush.msra.mxu0 0.0
    %924 = vmatpush.msra.mxu0 0.0
    %925 = vmatpush.msra.mxu0 0.0
    %926 = vmatpush.msra.mxu0 0.0
    %927 = vmatpush.msra.mxu0 0.0
    %928 = vmatpush.msra.mxu0 0.0
    %929 = vmatpush.msra.mxu0 0.0
    %930 = vmatpush.msra.mxu0 0.0
    %931 = vmatpush.msra.mxu0 0.0
    %932 = vmatpush.msra.mxu0 0.0
    %933 = vmatpush.msra.mxu0 0.0
    %934 = vmatpush.msra.mxu0 0.0
    %935 = vmatpush.msra.mxu0 %v388
    %936 = vmatpush.msra.mxu0 %v387
    %937 = vmatpush.msra.mxu0 %v386
    %938 = vmatpush.msra.mxu0 %v385
    %939 = vmatmul.f32.gmra.mxu0 %v921
    %v940 = vpop.f32.mrf.mxu0
    %v941 = vadd.f32 %v391, %v940
    %942 = vdwg.mxu0
    %v944 = vrot.slane %v941, 4
    %v946 = vadd.f32 %v380, %v944
    %v947 = vadd.f32 %v383, %v944
    %v948 = vxor.u32 %v946, 2147483648
    %v949 = vxor.u32 %v947, 2147483648
    %v950 = vmul.f32 %v948, 1.442695
    %v951 = vpow.pop %v950
    %v952 = vmul.f32 %v949, 1.442695
    %v953 = vpow.pop %v952
    %v954 = vadd.f32 %v951, 1.0
    %v955 = vadd.f32 %v953, 1.0
    %v956 = vrcp.pop %v954
    %v957 = vmul.f32 %v954, %v956
    %v958 = vsub.f32 1.0, %v957
    %v959 = vmul.f32 %v956, %v958
    %v960 = vadd.f32 %v956, %v959
    %vm961 = vweird.f32 %v954
    %vm962 = vweird.f32 %v956
    %vm963 = vmor %vm961, %vm962
    %v964 = vsel %vm963, %v956, %v960
    %v965 = vand.u32 2147483647, %v954
    %vm966 = vcmp.eq.f32.partialorder %v965, 8.507059e+37
    %v967 = vand.u32 %v954, 2147483648
    %v968 = vor.u32 1.1754944e-38, %v967
    %v969 = vsel %vm966, %v968, %v964
    %v970 = vmul.f32 1.0, %v969
    %v971 = vrcp.pop %v955
    %v972 = vmul.f32 %v955, %v971
    %v973 = vsub.f32 1.0, %v972
    %v974 = vmul.f32 %v971, %v973
    %v975 = vadd.f32 %v971, %v974
    %vm976 = vweird.f32 %v955
    %vm977 = vweird.f32 %v971
    %vm978 = vmor %vm976, %vm977
    %v979 = vsel %vm978, %v971, %v975
    %v980 = vand.u32 2147483647, %v955
    %vm981 = vcmp.eq.f32.partialorder %v980, 8.507059e+37
    %v982 = vand.u32 %v955, 2147483648
    %v983 = vor.u32 1.1754944e-38, %v982
    %v984 = vsel %vm981, %v983, %v979
    %v985 = vmul.f32 1.0, %v984
    %986 = vrot.lane.b32.xlu0 %v944, 64
    %v987 = vpop.permute.xlu0 %986
    %v989 = vmul.f32 %v970, %v987
    %v990 = vmul.f32 %v985, %v987
    %993 = vrot.lane.b32.xlu0 %v989, 64
    %v994 = vpop.permute.xlu0 %993
    %995 = vrot.lane.b32.xlu0 %v990, 64
    %v996 = vpop.permute.xlu0 %995
    %v999 = vadd.f32 %v380, %v994
    %v1000 = vadd.f32 %v383, %v996
    %v1001 = vtanh.pop %v999
    %v1002 = vtanh.pop %v1000
    %v1003 = vsub.f32 1.0, %v970
    %v1004 = vsub.f32 1.0, %v985
    %1007 = vrot.lane.b32.xlu0 %v1001, 96
    %v1008 = vpop.permute.xlu0 %1007
    %1009 = vrot.lane.b32.xlu0 %v1002, 96
    %v1010 = vpop.permute.xlu0 %1009
    %v1013 = vmul.f32 %v1003, %v1008
    %v1014 = vmul.f32 %v1004, %v1010
    %v1015 = vrot.slane %v912, 2
    %v1016 = vrot.slane %v913, 2
    %v1017 = vsel %vm660, %v1015, %v1016
    %v1020 = vmul.f32 %v970, %v1017
    %v1021 = vmul.f32 %v985, %v1016
    %v1022 = vadd.f32 %v1013, %v1020
    %v1023 = vadd.f32 %v1014, %v1021
    %v1026 = vrot.slane %v1022, 4
    %v1027 = vrot.slane %v1023, 4
    %v1028 = vsel %vm672, %v1026, %v1027
    %1029 = vrot.lane.b32.xlu0 %v1028, 96
    %v1030 = vpop.permute.xlu0 %1029
    %v1031 = vsel %vm393, %v1030, 0
    %1033 = vmatpush.msra.mxu0 0.0
    %1034 = vmatpush.msra.mxu0 0.0
    %1035 = vmatpush.msra.mxu0 0.0
    %1036 = vmatpush.msra.mxu0 0.0
    %1037 = vmatpush.msra.mxu0 0.0
    %1038 = vmatpush.msra.mxu0 0.0
    %1039 = vmatpush.msra.mxu0 0.0
    %1040 = vmatpush.msra.mxu0 0.0
    %1041 = vmatpush.msra.mxu0 0.0
    %1042 = vmatpush.msra.mxu0 0.0
    %1043 = vmatpush.msra.mxu0 0.0
    %1044 = vmatpush.msra.mxu0 0.0
    %1045 = vmatpush.msra.mxu0 %v388
    %1046 = vmatpush.msra.mxu0 %v387
    %1047 = vmatpush.msra.mxu0 %v386
    %1048 = vmatpush.msra.mxu0 %v385
    %1049 = vmatmul.f32.gmra.mxu0 %v1031
    %v1050 = vpop.f32.mrf.mxu0
    %v1051 = vadd.f32 %v391, %v1050
    %1052 = vdwg.mxu0
    %v1054 = vrot.slane %v1051, 6
    %v1056 = vadd.f32 %v383, %v1054
    %v1057 = vxor.u32 %v1056, 2147483648
    %v1058 = vmul.f32 %v1057, 1.442695
    %v1059 = vpow.pop %v1058
    %v1060 = vadd.f32 %v1059, 1.0
    %v1061 = vrcp.pop %v1060
    %v1062 = vmul.f32 %v1060, %v1061
    %v1063 = vsub.f32 1.0, %v1062
    %v1064 = vmul.f32 %v1061, %v1063
    %v1065 = vadd.f32 %v1061, %v1064
    %vm1066 = vweird.f32 %v1060
    %vm1067 = vweird.f32 %v1061
    %vm1068 = vmor %vm1066, %vm1067
    %v1069 = vsel %vm1068, %v1061, %v1065
    %v1070 = vand.u32 2147483647, %v1060
    %vm1071 = vcmp.eq.f32.partialorder %v1070, 8.507059e+37
    %v1072 = vand.u32 %v1060, 2147483648
    %v1073 = vor.u32 1.1754944e-38, %v1072
    %v1074 = vsel %vm1071, %v1073, %v1069
    %v1075 = vmul.f32 1.0, %v1074
    %1076 = vrot.lane.b32.xlu0 %v1054, 64
    %v1077 = vpop.permute.xlu0 %1076
    %v1079 = vmul.f32 %v1075, %v1077
    %1081 = vrot.lane.b32.xlu0 %v1079, 64
    %v1082 = vpop.permute.xlu0 %1081
    %v1084 = vadd.f32 %v383, %v1082
    %v1085 = vtanh.pop %v1084
    %v1086 = vsub.f32 1.0, %v1075
    %1088 = vrot.lane.b32.xlu0 %v1085, 96
    %v1089 = vpop.permute.xlu0 %1088
    %v1091 = vmul.f32 %v1086, %v1089
    %v1092 = vrot.slane %v1022, 2
    %v1093 = vrot.slane %v1023, 2
    %v1094 = vsel %vm660, %v1092, %v1093
    %v1096 = vmul.f32 %v1075, %v1094
    %v1097 = vadd.f32 %v1091, %v1096
    %v1098 = vld [vmem:[#allocation2] sm:$0xff]
    %v1099 = vld [vmem:[#allocation2 + $0x8] sm:$0xff]
    %v1100 = vld [vmem:[#allocation2 + $0x10] sm:$0xff]
    %v1101 = vld [vmem:[#allocation2 + $0x18] sm:$0xff]
    %v1102 = vld [vmem:[#allocation2 + $0x20] sm:$0xff]
    %v1103 = vld [vmem:[#allocation2 + $0x28] sm:$0xff]
    %v1104 = vld [vmem:[#allocation2 + $0x30] sm:$0x3]
    %v1105 = vld [vmem:[%s13] sm:$0x1]
    %v1107 = vperm.slane %v1105, 0
    %v1109 = vrot.slane %v315, 2
    %v1110 = vsel %vm327, %v1109, 0
    %v1113 = vsel %vm346, %v1104, 0
    %1115 = vmatpush.msra.mxu0 0.0
    %1116 = vmatpush.msra.mxu0 0.0
    %1117 = vmatpush.msra.mxu0 0.0
    %1118 = vmatpush.msra.mxu0 0.0
    %1119 = vmatpush.msra.mxu0 0.0
    %1120 = vmatpush.msra.mxu0 0.0
    %1121 = vmatpush.msra.mxu0 0.0
    %1122 = vmatpush.msra.mxu0 0.0
    %1123 = vmatpush.msra.mxu0 0.0
    %1124 = vmatpush.msra.mxu0 %v1113
    %1125 = vmatpush.msra.mxu0 %v1103
    %1126 = vmatpush.msra.mxu0 %v1102
    %1127 = vmatpush.msra.mxu0 %v1101
    %1128 = vmatpush.msra.mxu0 %v1100
    %1129 = vmatpush.msra.mxu0 %v1099
    %1130 = vmatpush.msra.mxu0 %v1098
    %1131 = vmatmul.f32.gmra.mxu0 %v1110
    %v1132 = vpop.f32.mrf.mxu0
    %v1133 = vadd.f32 %v1107, %v1132
    %1134 = vdwg.mxu0
    %v1135 = vld [vmem:[%s15] sm:$0x1]
    %v1137 = vperm.slane %v1135, 0
    %v1139 = vadd.f32 %v1133, %v1137
    %v1140 = vxor.u32 %v1139, 2147483648
    %v1141 = vmul.f32 %v1140, 1.442695
    %v1142 = vpow.pop %v1141
    %v1143 = vadd.f32 %v1142, 1.0
    %v1144 = vrcp.pop %v1143
    %v1145 = vmul.f32 %v1143, %v1144
    %v1146 = vsub.f32 1.0, %v1145
    %v1147 = vmul.f32 %v1144, %v1146
    %v1148 = vadd.f32 %v1144, %v1147
    %vm1149 = vweird.f32 %v1143
    %vm1150 = vweird.f32 %v1144
    %vm1151 = vmor %vm1149, %vm1150
    %v1152 = vsel %vm1151, %v1144, %v1148
    %v1153 = vand.u32 2147483647, %v1143
    %vm1154 = vcmp.eq.f32.partialorder %v1153, 8.507059e+37
    %v1155 = vand.u32 %v1143, 2147483648
    %v1156 = vor.u32 1.1754944e-38, %v1155
    %v1157 = vsel %vm1154, %v1156, %v1152
    %v1158 = vmul.f32 1.0, %v1157
    %1159 = vrot.lane.b32.xlu0 %v1137, 64
    %v1160 = vpop.permute.xlu0 %1159
    %v1162 = vmul.f32 %v1158, %v1160
    %1164 = vrot.lane.b32.xlu0 %v1162, 64
    %v1165 = vpop.permute.xlu0 %1164
    %v1167 = vadd.f32 %v1133, %v1165
    %v1168 = vtanh.pop %v1167
    %v1169 = vsub.f32 1.0, %v1158
    %1171 = vrot.lane.b32.xlu0 %v1168, 96
    %v1172 = vpop.permute.xlu0 %1171
    %v1174 = vmul.f32 %v1169, %v1172
    %1176 = vrot.lane.b32.xlu0 %v1097, 96
    %v1177 = vpop.permute.xlu0 %1176
    %v1180 = vrot.slane %v1174, 6
    %v1182 = vsel %vm393, %v1177, %v1180
    %v1183 = vld [vmem:[%s17] sm:$0x1]
    %v1184 = vld [vmem:[%s19] sm:$0x1]
    %vm1185 = vcmask 523266
    %v1186 = vsel %vm1185, %v1182, 0.0
    %1187 = vadd.xlane.f32.xlu0 %v1186
    %v1188 = vpop.xlane.xlu0 %1187
    %v1189 = vrcp.pop 64.0
    %v1190 = vmul.f32 64.0, %v1189
    %v1191 = vsub.f32 1.0, %v1190
    %v1192 = vmul.f32 %v1189, %v1191
    %v1193 = vadd.f32 %v1189, %v1192
    %vm1194 = vweird.f32 %v1189
    %v1195 = vsel %vm1194, %v1189, %v1193
    %v1196 = vmul.f32 %v1188, %v1195
    %v1197 = vsub.f32 %v1182, %v1196
    %v1198 = vmul.f32 %v1197, %v1197
    %v1199 = vsel %vm1185, %v1198, 0.0
    %1200 = vadd.xlane.f32.xlu0 %v1199
    %v1201 = vpop.xlane.xlu0 %1200
    %v1202 = vmul.f32 %v1201, %v1195
    %v1203 = vadd.f32 %v1202, 1e-05
    %v1204 = vrsqrt.pop %v1203
    %v1205 = vmul.f32 %v1204, %v1203
    %v1206 = vmul.f32 %v1205, %v1204
    %v1207 = vmul.f32 0.5, %v1206
    %v1208 = vsub.f32 1.5, %v1207
    %v1209 = vmul.f32 %v1204, %v1208
    %vm1210 = vweird.f32 %v1203
    %vm1211 = vweird.f32 %v1204
    %vm1212 = vmor %vm1210, %vm1211
    %v1213 = vsel %vm1212, %v1204, %v1209
    %v1214 = vmul.f32 %v1197, %v1213
    %v1216 = vperm.slane %v1183, 0
    %v1218 = vmul.f32 %v1214, %v1216
    %v1220 = vperm.slane %v1184, 0
    %v1222 = vadd.f32 %v1218, %v1220
    %v1223 = vld [vmem:[%s21] sm:$0xff]
    %v1224 = vld [vmem:[%s21 + $0x8] sm:$0xff]
    %v1225 = vld [vmem:[%s21 + $0x10] sm:$0xff]
    %v1226 = vld [vmem:[%s21 + $0x18] sm:$0xff]
    %v1227 = vld [vmem:[%s21 + $0x20] sm:$0xff]
    %v1228 = vld [vmem:[%s21 + $0x28] sm:$0xff]
    %v1229 = vld [vmem:[%s21 + $0x30] sm:$0xff]
    %v1230 = vld [vmem:[%s21 + $0x38] sm:$0xff]
    %v1231 = vld [vmem:[%s23] sm:$0x1]
    %v1233 = vperm.slane %v1231, 0
    %v1236 = vrot.slane %v1222, 2
    %vm1237 = vcmask 523264
    %v1238 = vsel %vm1237, %v1236, 0
    %1240 = vmatpush.msra.mxu0 0.0
    %1241 = vmatpush.msra.mxu0 0.0
    %1242 = vmatpush.msra.mxu0 0.0
    %1243 = vmatpush.msra.mxu0 0.0
    %1244 = vmatpush.msra.mxu0 0.0
    %1245 = vmatpush.msra.mxu0 0.0
    %1246 = vmatpush.msra.mxu0 0.0
    %1247 = vmatpush.msra.mxu0 0.0
    %1248 = vmatpush.msra.mxu0 %v1230
    %1249 = vmatpush.msra.mxu0 %v1229
    %1250 = vmatpush.msra.mxu0 %v1228
    %1251 = vmatpush.msra.mxu0 %v1227
    %1252 = vmatpush.msra.mxu0 %v1226
    %1253 = vmatpush.msra.mxu0 %v1225
    %1254 = vmatpush.msra.mxu0 %v1224
    %1255 = vmatpush.msra.mxu0 %v1223
    %1256 = vmatmul.f32.gmra.mxu0 %v1238
    %v1257 = vpop.f32.mrf.mxu0
    %v1258 = vadd.f32 %v1233, %v1257
    %1259 = vdwg.mxu0
    %v1260 = vld [vmem:[%s25] sm:$0xff]
    %v1261 = vld [vmem:[%s25 + $0x8] sm:$0xff]
    %v1262 = vld [vmem:[%s25 + $0x10] sm:$0xff]
    %v1263 = vld [vmem:[%s25 + $0x18] sm:$0xff]
    %v1264 = vld [vmem:[#allocation5] sm:$0x1]
    %v1266 = vperm.slane %v1264, 0
    %v1269 = vsel %vm393, %v1258, 0
    %1271 = vmatpush.msra.mxu0 0.0
    %1272 = vmatpush.msra.mxu0 0.0
    %1273 = vmatpush.msra.mxu0 0.0
    %1274 = vmatpush.msra.mxu0 0.0
    %1275 = vmatpush.msra.mxu0 0.0
    %1276 = vmatpush.msra.mxu0 0.0
    %1277 = vmatpush.msra.mxu0 0.0
    %1278 = vmatpush.msra.mxu0 0.0
    %1279 = vmatpush.msra.mxu0 0.0
    %1280 = vmatpush.msra.mxu0 0.0
    %1281 = vmatpush.msra.mxu0 0.0
    %1282 = vmatpush.msra.mxu0 0.0
    %1283 = vmatpush.msra.mxu0 %v1263
    %1284 = vmatpush.msra.mxu0 %v1262
    %1285 = vmatpush.msra.mxu0 %v1261
    %1286 = vmatpush.msra.mxu0 %v1260
    %1287 = vmatmul.f32.gmra.mxu0 %v1269
    %v1288 = vpop.f32.mrf.mxu0
    %v1289 = vadd.f32 %v1266, %v1288
    %1290 = vdwg.mxu0
    %v1291 = vtanh.pop %v1289
    %v1292 = vld [vmem:[#allocation7] sm:$0xff]
    %v1293 = vld [vmem:[#allocation7 + $0x8] sm:$0xff]
    %v1294 = vld [vmem:[#allocation7 + $0x10] sm:$0xff]
    %v1295 = vld [vmem:[#allocation7 + $0x18] sm:$0xff]
    %v1296 = vld [vmem:[#allocation10] sm:$0x1]
    %v1298 = vperm.slane %v1296, 0
    %v1301 = vsel %vm393, %v1291, 0
    %1303 = vmatpush.msra.mxu0 0.0
    %1304 = vmatpush.msra.mxu0 0.0
    %1305 = vmatpush.msra.mxu0 0.0
    %1306 = vmatpush.msra.mxu0 0.0
    %1307 = vmatpush.msra.mxu0 0.0
    %1308 = vmatpush.msra.mxu0 0.0
    %1309 = vmatpush.msra.mxu0 0.0
    %1310 = vmatpush.msra.mxu0 0.0
    %1311 = vmatpush.msra.mxu0 0.0
    %1312 = vmatpush.msra.mxu0 0.0
    %1313 = vmatpush.msra.mxu0 0.0
    %1314 = vmatpush.msra.mxu0 0.0
    %1315 = vmatpush.msra.mxu0 %v1295
    %1316 = vmatpush.msra.mxu0 %v1294
    %1317 = vmatpush.msra.mxu0 %v1293
    %1318 = vmatpush.msra.mxu0 %v1292
    %1319 = vmatmul.f32.gmra.mxu0 %v1301
    %v1320 = vpop.f32.mrf.mxu0
    %v1321 = vadd.f32 %v1298, %v1320
    %1322 = vdwg.mxu0
    %v1323 = vld [vmem:[#allocation8] sm:$0xff]
    %v1324 = vld [vmem:[#allocation8 + $0x8] sm:$0xff]
    %v1325 = vld [vmem:[#allocation8 + $0x10] sm:$0xff]
    %v1326 = vld [vmem:[#allocation8 + $0x18] sm:$0xff]
    %v1327 = vld [vmem:[#allocation11] sm:$0x1]
    %v1329 = vperm.slane %v1327, 0
    %1331 = vmatpush.msra.mxu0 0.0
    %1332 = vmatpush.msra.mxu0 0.0
    %1333 = vmatpush.msra.mxu0 0.0
    %1334 = vmatpush.msra.mxu0 0.0
    %1335 = vmatpush.msra.mxu0 0.0
    %1336 = vmatpush.msra.mxu0 0.0
    %1337 = vmatpush.msra.mxu0 0.0
    %1338 = vmatpush.msra.mxu0 0.0
    %1339 = vmatpush.msra.mxu0 0.0
    %1340 = vmatpush.msra.mxu0 0.0
    %1341 = vmatpush.msra.mxu0 0.0
    %1342 = vmatpush.msra.mxu0 0.0
    %1343 = vmatpush.msra.mxu0 %v1326
    %1344 = vmatpush.msra.mxu0 %v1325
    %1345 = vmatpush.msra.mxu0 %v1324
    %1346 = vmatpush.msra.mxu0 %v1323
    %1347 = vmatmul.f32.gmra.mxu0 %v395
    %v1348 = vpop.f32.mrf.mxu0
    %v1349 = vadd.f32 %v1329, %v1348
    %1350 = vdwg.mxu0
    %v1351 = vadd.f32 %v1321, %v1349
    %v1352 = vxor.u32 %v1351, 2147483648
    %v1353 = vmul.f32 %v1352, 1.442695
    %v1354 = vpow.pop %v1353
    %v1355 = vadd.f32 %v1354, 1.0
    %v1356 = vrcp.pop %v1355
    %v1357 = vmul.f32 %v1355, %v1356
    %v1358 = vsub.f32 1.0, %v1357
    %v1359 = vmul.f32 %v1356, %v1358
    %v1360 = vadd.f32 %v1356, %v1359
    %vm1361 = vweird.f32 %v1355
    %vm1362 = vweird.f32 %v1356
    %vm1363 = vmor %vm1361, %vm1362
    %v1364 = vsel %vm1363, %v1356, %v1360
    %v1365 = vand.u32 2147483647, %v1355
    %vm1366 = vcmp.eq.f32.partialorder %v1365, 8.507059e+37
    %v1367 = vand.u32 %v1355, 2147483648
    %v1368 = vor.u32 1.1754944e-38, %v1367
    %v1369 = vsel %vm1366, %v1368, %v1364
    %v1370 = vmul.f32 1.0, %v1369
    %1372 = vrot.lane.b32.xlu0 %v1349, 64
    %v1373 = vpop.permute.xlu0 %1372
    %v1375 = vmul.f32 %v1370, %v1373
    %1377 = vrot.lane.b32.xlu0 %v1375, 64
    %v1378 = vpop.permute.xlu0 %1377
    %v1380 = vadd.f32 %v1321, %v1378
    %v1381 = vtanh.pop %v1380
    %v1382 = vsub.f32 1.0, %v1370
    %1384 = vrot.lane.b32.xlu0 %v1381, 96
    %v1385 = vpop.permute.xlu0 %1384
    %v1387 = vmul.f32 %v1382, %v1385
    %v1388 = vmul.f32 %v1370, 0.0
    %v1389 = vadd.f32 %v1387, %v1388
    %1391 = vrot.lane.b32.xlu0 %v1389, 96
    %v1392 = vpop.permute.xlu0 %1391
    %v1393 = vsel %vm393, %v1392, 0
    %1395 = vmatpush.msra.mxu0 0.0
    %1396 = vmatpush.msra.mxu0 0.0
    %1397 = vmatpush.msra.mxu0 0.0
    %1398 = vmatpush.msra.mxu0 0.0
    %1399 = vmatpush.msra.mxu0 0.0
    %1400 = vmatpush.msra.mxu0 0.0
    %1401 = vmatpush.msra.mxu0 0.0
    %1402 = vmatpush.msra.mxu0 0.0
    %1403 = vmatpush.msra.mxu0 0.0
    %1404 = vmatpush.msra.mxu0 0.0
    %1405 = vmatpush.msra.mxu0 0.0
    %1406 = vmatpush.msra.mxu0 0.0
    %1407 = vmatpush.msra.mxu0 %v1326
    %1408 = vmatpush.msra.mxu0 %v1325
    %1409 = vmatpush.msra.mxu0 %v1324
    %1410 = vmatpush.msra.mxu0 %v1323
    %1411 = vmatmul.f32.gmra.mxu0 %v1393
    %v1412 = vpop.f32.mrf.mxu0
    %v1413 = vadd.f32 %v1329, %v1412
    %1414 = vdwg.mxu0
    %v1416 = vrot.slane %v1413, 6
    %v1418 = vadd.f32 %v1321, %v1416
    %v1419 = vxor.u32 %v1418, 2147483648
    %v1420 = vmul.f32 %v1419, 1.442695
    %v1421 = vpow.pop %v1420
    %v1422 = vadd.f32 %v1421, 1.0
    %v1423 = vrcp.pop %v1422
    %v1424 = vmul.f32 %v1422, %v1423
    %v1425 = vsub.f32 1.0, %v1424
    %v1426 = vmul.f32 %v1423, %v1425
    %v1427 = vadd.f32 %v1423, %v1426
    %vm1428 = vweird.f32 %v1422
    %vm1429 = vweird.f32 %v1423
    %vm1430 = vmor %vm1428, %vm1429
    %v1431 = vsel %vm1430, %v1423, %v1427
    %v1432 = vand.u32 2147483647, %v1422
    %vm1433 = vcmp.eq.f32.partialorder %v1432, 8.507059e+37
    %v1434 = vand.u32 %v1422, 2147483648
    %v1435 = vor.u32 1.1754944e-38, %v1434
    %v1436 = vsel %vm1433, %v1435, %v1431
    %v1437 = vmul.f32 1.0, %v1436
    %1438 = vrot.lane.b32.xlu0 %v1416, 64
    %v1439 = vpop.permute.xlu0 %1438
    %v1441 = vmul.f32 %v1437, %v1439
    %1443 = vrot.lane.b32.xlu0 %v1441, 64
    %v1444 = vpop.permute.xlu0 %1443
    %v1446 = vadd.f32 %v1321, %v1444
    %v1447 = vtanh.pop %v1446
    %v1448 = vsub.f32 1.0, %v1437
    %1450 = vrot.lane.b32.xlu0 %v1447, 96
    %v1451 = vpop.permute.xlu0 %1450
    %v1453 = vmul.f32 %v1448, %v1451
    %v1454 = vrot.slane %v1389, 6
    %v1456 = vmul.f32 %v1437, %v1454
    %v1457 = vadd.f32 %v1453, %v1456
    %v1459 = vrot.slane %v1457, 2
    %1460 = vrot.lane.b32.xlu0 %v1459, 96
    %v1461 = vpop.permute.xlu0 %1460
    %v1462 = vsel %vm393, %v1461, 0
    %1464 = vmatpush.msra.mxu0 0.0
    %1465 = vmatpush.msra.mxu0 0.0
    %1466 = vmatpush.msra.mxu0 0.0
    %1467 = vmatpush.msra.mxu0 0.0
    %1468 = vmatpush.msra.mxu0 0.0
    %1469 = vmatpush.msra.mxu0 0.0
    %1470 = vmatpush.msra.mxu0 0.0
    %1471 = vmatpush.msra.mxu0 0.0
    %1472 = vmatpush.msra.mxu0 0.0
    %1473 = vmatpush.msra.mxu0 0.0
    %1474 = vmatpush.msra.mxu0 0.0
    %1475 = vmatpush.msra.mxu0 0.0
    %1476 = vmatpush.msra.mxu0 %v1326
    %1477 = vmatpush.msra.mxu0 %v1325
    %1478 = vmatpush.msra.mxu0 %v1324
    %1479 = vmatpush.msra.mxu0 %v1323
    %1480 = vmatmul.f32.gmra.mxu0 %v1462
    %v1481 = vpop.f32.mrf.mxu0
    %v1482 = vadd.f32 %v1329, %v1481
    %1483 = vdwg.mxu0
    %v1485 = vrot.slane %v1482, 4
    %v1487 = vadd.f32 %v1321, %v1485
    %v1488 = vxor.u32 %v1487, 2147483648
    %v1489 = vmul.f32 %v1488, 1.442695
    %v1490 = vpow.pop %v1489
    %v1491 = vadd.f32 %v1490, 1.0
    %v1492 = vrcp.pop %v1491
    %v1493 = vmul.f32 %v1491, %v1492
    %v1494 = vsub.f32 1.0, %v1493
    %v1495 = vmul.f32 %v1492, %v1494
    %v1496 = vadd.f32 %v1492, %v1495
    %vm1497 = vweird.f32 %v1491
    %vm1498 = vweird.f32 %v1492
    %vm1499 = vmor %vm1497, %vm1498
    %v1500 = vsel %vm1499, %v1492, %v1496
    %v1501 = vand.u32 2147483647, %v1491
    %vm1502 = vcmp.eq.f32.partialorder %v1501, 8.507059e+37
    %v1503 = vand.u32 %v1491, 2147483648
    %v1504 = vor.u32 1.1754944e-38, %v1503
    %v1505 = vsel %vm1502, %v1504, %v1500
    %v1506 = vmul.f32 1.0, %v1505
    %1507 = vrot.lane.b32.xlu0 %v1485, 64
    %v1508 = vpop.permute.xlu0 %1507
    %v1510 = vmul.f32 %v1506, %v1508
    %1512 = vrot.lane.b32.xlu0 %v1510, 64
    %v1513 = vpop.permute.xlu0 %1512
    %v1515 = vadd.f32 %v1321, %v1513
    %v1516 = vtanh.pop %v1515
    %v1517 = vsub.f32 1.0, %v1506
    %1519 = vrot.lane.b32.xlu0 %v1516, 96
    %v1520 = vpop.permute.xlu0 %1519
    %v1522 = vmul.f32 %v1517, %v1520
    %v1523 = vrot.slane %v1457, 6
    %v1525 = vmul.f32 %v1506, %v1523
    %v1526 = vadd.f32 %v1522, %v1525
    %v1527 = vsel %vm346, %v1389, %v1457
    %v1528 = vsel %vm672, %v1527, %v1526
    %v1529 = vld [vmem:[%s37] sm:$0x1]
    %v1530 = vld [vmem:[%s39] sm:$0x1]
    %1532 = vrot.lane.b32.xlu0 %v1528, 96
    %v1533 = vpop.permute.xlu0 %1532
    %vm1535 = vcmask 259072
    %v1536 = vsel %vm1535, %v1533, 0.0
    %1537 = vadd.xlane.f32.xlu0 %v1536
    %v1538 = vpop.xlane.xlu0 %1537
    %v1539 = vrcp.pop 32.0
    %v1540 = vmul.f32 32.0, %v1539
    %v1541 = vsub.f32 1.0, %v1540
    %v1542 = vmul.f32 %v1539, %v1541
    %v1543 = vadd.f32 %v1539, %v1542
    %vm1544 = vweird.f32 %v1539
    %v1545 = vsel %vm1544, %v1539, %v1543
    %v1546 = vmul.f32 %v1538, %v1545
    %v1547 = vsub.f32 %v1528, %v1546
    %v1548 = vmul.f32 %v1547, %v1547
    %1550 = vrot.lane.b32.xlu0 %v1548, 96
    %v1551 = vpop.permute.xlu0 %1550
    %v1553 = vsel %vm1535, %v1551, 0.0
    %1554 = vadd.xlane.f32.xlu0 %v1553
    %v1555 = vpop.xlane.xlu0 %1554
    %v1556 = vmul.f32 %v1555, %v1545
    %v1557 = vadd.f32 %v1556, 1e-05
    %v1558 = vrsqrt.pop %v1557
    %v1559 = vmul.f32 %v1558, %v1557
    %v1560 = vmul.f32 %v1559, %v1558
    %v1561 = vmul.f32 0.5, %v1560
    %v1562 = vsub.f32 1.5, %v1561
    %v1563 = vmul.f32 %v1558, %v1562
    %vm1564 = vweird.f32 %v1557
    %vm1565 = vweird.f32 %v1558
    %vm1566 = vmor %vm1564, %vm1565
    %v1567 = vsel %vm1566, %v1558, %v1563
    %v1568 = vmul.f32 %v1547, %v1567
    %v1570 = vperm.slane %v1529, 0
    %1571 = vrot.lane.b32.xlu0 %v1570, 32
    %v1572 = vpop.permute.xlu0 %1571
    %v1574 = vmul.f32 %v1568, %v1572
    %v1576 = vperm.slane %v1530, 0
    %1577 = vrot.lane.b32.xlu0 %v1576, 32
    %v1578 = vpop.permute.xlu0 %1577
    %v1580 = vadd.f32 %v1574, %v1578
    %1582 = vrot.lane.b32.xlu0 %v1580, 96
    %v1583 = vpop.permute.xlu0 %1582
    %1585 = vrot.lane.b32.xlu0 %v1291, 32
    %v1586 = vpop.permute.xlu0 %1585
    %v1588 = vsel %vm393, %v1583, %v1586
    %v1589 = vld [vmem:[%s41] sm:$0xff]
    %v1590 = vld [vmem:[%s41 + $0x8] sm:$0xff]
    %v1591 = vld [vmem:[%s41 + $0x10] sm:$0xff]
    %v1592 = vld [vmem:[%s41 + $0x18] sm:$0xff]
    %v1593 = vld [vmem:[%s41 + $0x20] sm:$0xff]
    %v1594 = vld [vmem:[%s41 + $0x28] sm:$0xff]
    %v1595 = vld [vmem:[%s41 + $0x30] sm:$0xff]
    %v1596 = vld [vmem:[%s41 + $0x38] sm:$0xff]
    %v1597 = vld [vmem:[#allocation13] sm:$0x1]
    %v1599 = vperm.slane %v1597, 0
    %v1602 = vsel %vm1237, %v1588, 0
    %1604 = vmatpush.msra.mxu0 0.0
    %1605 = vmatpush.msra.mxu0 0.0
    %1606 = vmatpush.msra.mxu0 0.0
    %1607 = vmatpush.msra.mxu0 0.0
    %1608 = vmatpush.msra.mxu0 0.0
    %1609 = vmatpush.msra.mxu0 0.0
    %1610 = vmatpush.msra.mxu0 0.0
    %1611 = vmatpush.msra.mxu0 0.0
    %1612 = vmatpush.msra.mxu0 %v1596
    %1613 = vmatpush.msra.mxu0 %v1595
    %1614 = vmatpush.msra.mxu0 %v1594
    %1615 = vmatpush.msra.mxu0 %v1593
    %1616 = vmatpush.msra.mxu0 %v1592
    %1617 = vmatpush.msra.mxu0 %v1591
    %1618 = vmatpush.msra.mxu0 %v1590
    %1619 = vmatpush.msra.mxu0 %v1589
    %1620 = vmatmul.f32.gmra.mxu0 %v1602
    %v1621 = vpop.f32.mrf.mxu0
    %v1622 = vadd.f32 %v1599, %v1621
    %1623 = vdwg.mxu0
    %v1624 = vld [vmem:[%s45] sm:$0xff]
    %v1625 = vld [vmem:[%s45 + $0x8] sm:$0xff]
    %v1626 = vld [vmem:[%s45 + $0x10] sm:$0xff]
    %v1627 = vld [vmem:[%s45 + $0x18] sm:$0xff]
    %v1628 = vld [vmem:[%s45 + $0x20] sm:$0xff]
    %v1629 = vld [vmem:[%s45 + $0x28] sm:$0xff]
    %v1630 = vld [vmem:[%s45 + $0x30] sm:$0xff]
    %v1631 = vld [vmem:[%s45 + $0x38] sm:$0xff]
    %v1632 = vld [vmem:[%s47] sm:$0x3]
    %v1634 = vperm.slane %v1632, 0
    %v1635 = vperm.slane %v1632, 1
    %v1639 = vsel %vm393, %v1622, 0
    %1641 = vmatpush.msra.mxu0 0.0
    %1642 = vmatpush.msra.mxu0 0.0
    %1643 = vmatpush.msra.mxu0 0.0
    %1644 = vmatpush.msra.mxu0 0.0
    %1645 = vmatpush.msra.mxu0 0.0
    %1646 = vmatpush.msra.mxu0 0.0
    %1647 = vmatpush.msra.mxu0 0.0
    %1648 = vmatpush.msra.mxu0 0.0
    %1649 = vmatpush.msra.mxu0 0.0
    %1650 = vmatpush.msra.mxu0 0.0
    %1651 = vmatpush.msra.mxu0 0.0
    %1652 = vmatpush.msra.mxu0 0.0
    %1653 = vmatpush.msra.mxu0 %v1630
    %1654 = vmatpush.msra.mxu0 %v1628
    %1655 = vmatpush.msra.mxu0 %v1626
    %1656 = vmatpush.msra.mxu0 %v1624
    %1657 = vmatmul.f32.gmra.mxu0 %v1639
    %v1658 = vpop.f32.mrf.mxu0
    %v1659 = vadd.f32 %v1634, %v1658
    %1660 = vdwg.mxu0
    %1661 = vmatpush.msra.mxu0 0.0
    %1662 = vmatpush.msra.mxu0 0.0
    %1663 = vmatpush.msra.mxu0 0.0
    %1664 = vmatpush.msra.mxu0 0.0
    %1665 = vmatpush.msra.mxu0 0.0
    %1666 = vmatpush.msra.mxu0 0.0
    %1667 = vmatpush.msra.mxu0 0.0
    %1668 = vmatpush.msra.mxu0 0.0
    %1669 = vmatpush.msra.mxu0 0.0
    %1670 = vmatpush.msra.mxu0 0.0
    %1671 = vmatpush.msra.mxu0 0.0
    %1672 = vmatpush.msra.mxu0 0.0
    %1673 = vmatpush.msra.mxu0 %v1631
    %1674 = vmatpush.msra.mxu0 %v1629
    %1675 = vmatpush.msra.mxu0 %v1627
    %1676 = vmatpush.msra.mxu0 %v1625
    %1677 = vmatmul.f32.gmra.mxu0 %v1639
    %v1678 = vpop.f32.mrf.mxu0
    %v1679 = vadd.f32 %v1635, %v1678
    %1680 = vdwg.mxu0
    %v1682 = vrot.slane %v1659, 4
    %1683 = vrot.lane.b32.xlu0 %v1682, 64
    %v1684 = vpop.permute.xlu0 %1683
    %1686 = vrot.lane.b32.xlu0 %v1659, 32
    %v1687 = vpop.permute.xlu0 %1686
    %v1690 = vrot.slane %v1679, 4
    %1691 = vrot.lane.b32.xlu0 %v1690, 96
    %v1692 = vpop.permute.xlu0 %1691
    %v1694 = vsel %vm393, %v1659, %v1684
    %v1695 = vsel %vm1237, %v1694, %v1687
    %vm1696 = vcmask 785408
    %v1697 = vsel %vm1696, %v1695, %v1692
    %1698 = vrot.lane.b32.xlu0 %v1659, 64
    %v1699 = vpop.permute.xlu0 %1698
    %v1702 = vsel %vm393, %v1699, %v1690
    %1703 = vrot.lane.b32.xlu0 %v1679, 96
    %v1704 = vpop.permute.xlu0 %1703
    %v1706 = vsel %vm393, %v1659, %v1699
    %v1707 = vsel %vm1237, %v1706, %v1687
    %v1708 = vsel %vm1696, %v1707, %v1704
    %v1709 = vsel %vm393, %v1699, %v1679
    %v1710 = vld [vmem:[%s49] sm:$0xff]
    %v1711 = vld [vmem:[%s49 + $0x8] sm:$0xff]
    %v1712 = vld [vmem:[%s49 + $0x10] sm:$0xff]
    %v1713 = vld [vmem:[%s49 + $0x18] sm:$0xff]
    %v1714 = vld [vmem:[%s49 + $0x20] sm:$0xff]
    %v1715 = vld [vmem:[%s49 + $0x28] sm:$0xff]
    %v1716 = vld [vmem:[%s49 + $0x30] sm:$0xff]
    %v1717 = vld [vmem:[%s49 + $0x38] sm:$0xff]
    %v1718 = vld [vmem:[%s49 + $0x40] sm:$0xff]
    %v1719 = vld [vmem:[%s49 + $0x48] sm:$0xff]
    %v1720 = vld [vmem:[%s49 + $0x50] sm:$0xff]
    %v1721 = vld [vmem:[%s49 + $0x58] sm:$0xff]
    %v1722 = vld [vmem:[%s49 + $0x60] sm:$0xff]
    %v1723 = vld [vmem:[%s49 + $0x68] sm:$0xff]
    %v1724 = vld [vmem:[%s49 + $0x70] sm:$0xff]
    %v1725 = vld [vmem:[%s49 + $0x78] sm:$0xff]
    %v1726 = vld [vmem:[#allocation14] sm:$0x3]
    %v1728 = vperm.slane %v1726, 0
    %v1729 = vperm.slane %v1726, 1
    %v1732 = vsel %vm1237, 0.0, 0
    %1734 = vmatpush.msra.mxu0 0.0
    %1735 = vmatpush.msra.mxu0 0.0
    %1736 = vmatpush.msra.mxu0 0.0
    %1737 = vmatpush.msra.mxu0 0.0
    %1738 = vmatpush.msra.mxu0 0.0
    %1739 = vmatpush.msra.mxu0 0.0
    %1740 = vmatpush.msra.mxu0 0.0
    %1741 = vmatpush.msra.mxu0 0.0
    %1742 = vmatpush.msra.mxu0 %v1724
    %1743 = vmatpush.msra.mxu0 %v1722
    %1744 = vmatpush.msra.mxu0 %v1720
    %1745 = vmatpush.msra.mxu0 %v1718
    %1746 = vmatpush.msra.mxu0 %v1716
    %1747 = vmatpush.msra.mxu0 %v1714
    %1748 = vmatpush.msra.mxu0 %v1712
    %1749 = vmatpush.msra.mxu0 %v1710
    %1750 = vmatmul.f32.gmra.mxu0 %v1732
    %v1751 = vpop.f32.mrf.mxu0
    %v1752 = vadd.f32 %v1728, %v1751
    %1753 = vdwg.mxu0
    %1754 = vmatpush.msra.mxu0 0.0
    %1755 = vmatpush.msra.mxu0 0.0
    %1756 = vmatpush.msra.mxu0 0.0
    %1757 = vmatpush.msra.mxu0 0.0
    %1758 = vmatpush.msra.mxu0 0.0
    %1759 = vmatpush.msra.mxu0 0.0
    %1760 = vmatpush.msra.mxu0 0.0
    %1761 = vmatpush.msra.mxu0 0.0
    %1762 = vmatpush.msra.mxu0 %v1725
    %1763 = vmatpush.msra.mxu0 %v1723
    %1764 = vmatpush.msra.mxu0 %v1721
    %1765 = vmatpush.msra.mxu0 %v1719
    %1766 = vmatpush.msra.mxu0 %v1717
    %1767 = vmatpush.msra.mxu0 %v1715
    %1768 = vmatpush.msra.mxu0 %v1713
    %1769 = vmatpush.msra.mxu0 %v1711
    %1770 = vmatmul.f32.gmra.mxu0 %v1732
    %v1771 = vpop.f32.mrf.mxu0
    %v1772 = vadd.f32 %v1729, %v1771
    %1773 = vdwg.mxu0
    %v1774 = vadd.f32 %v1697, %v1752
    %v1775 = vxor.u32 %v1774, 2147483648
    %v1776 = vmul.f32 %v1775, 1.442695
    %v1777 = vpow.pop %v1776
    %v1778 = vadd.f32 %v1777, 1.0
    %v1779 = vrcp.pop %v1778
    %v1780 = vmul.f32 %v1778, %v1779
    %v1781 = vsub.f32 1.0, %v1780
    %v1782 = vmul.f32 %v1779, %v1781
    %v1783 = vadd.f32 %v1779, %v1782
    %vm1784 = vweird.f32 %v1778
    %vm1785 = vweird.f32 %v1779
    %vm1786 = vmor %vm1784, %vm1785
    %v1787 = vsel %vm1786, %v1779, %v1783
    %v1788 = vand.u32 2147483647, %v1778
    %vm1789 = vcmp.eq.f32.partialorder %v1788, 8.507059e+37
    %v1790 = vand.u32 %v1778, 2147483648
    %v1791 = vor.u32 1.1754944e-38, %v1790
    %v1792 = vsel %vm1789, %v1791, %v1787
    %v1793 = vmul.f32 1.0, %v1792
    %v1794 = vmul.f32 %v1793, %v1772
    %v1795 = vadd.f32 %v1702, %v1794
    %v1796 = vtanh.pop %v1795
    %v1797 = vsub.f32 1.0, %v1793
    %1799 = vrot.lane.b32.xlu0 %v1796, 64
    %v1800 = vpop.permute.xlu0 %1799
    %v1802 = vmul.f32 %v1797, %v1800
    %v1803 = vmul.f32 %v1793, 0.0
    %v1804 = vadd.f32 %v1802, %v1803
    %1806 = vrot.lane.b32.xlu0 %v1804, 64
    %v1807 = vpop.permute.xlu0 %1806
    %v1808 = vsel %vm1237, %v1807, 0
    %1810 = vmatpush.msra.mxu0 0.0
    %1811 = vmatpush.msra.mxu0 0.0
    %1812 = vmatpush.msra.mxu0 0.0
    %1813 = vmatpush.msra.mxu0 0.0
    %1814 = vmatpush.msra.mxu0 0.0
    %1815 = vmatpush.msra.mxu0 0.0
    %1816 = vmatpush.msra.mxu0 0.0
    %1817 = vmatpush.msra.mxu0 0.0
    %1818 = vmatpush.msra.mxu0 %v1724
    %1819 = vmatpush.msra.mxu0 %v1722
    %1820 = vmatpush.msra.mxu0 %v1720
    %1821 = vmatpush.msra.mxu0 %v1718
    %1822 = vmatpush.msra.mxu0 %v1716
    %1823 = vmatpush.msra.mxu0 %v1714
    %1824 = vmatpush.msra.mxu0 %v1712
    %1825 = vmatpush.msra.mxu0 %v1710
    %1826 = vmatmul.f32.gmra.mxu0 %v1808
    %v1827 = vpop.f32.mrf.mxu0
    %v1828 = vadd.f32 %v1728, %v1827
    %1829 = vdwg.mxu0
    %1830 = vmatpush.msra.mxu0 0.0
    %1831 = vmatpush.msra.mxu0 0.0
    %1832 = vmatpush.msra.mxu0 0.0
    %1833 = vmatpush.msra.mxu0 0.0
    %1834 = vmatpush.msra.mxu0 0.0
    %1835 = vmatpush.msra.mxu0 0.0
    %1836 = vmatpush.msra.mxu0 0.0
    %1837 = vmatpush.msra.mxu0 0.0
    %1838 = vmatpush.msra.mxu0 %v1725
    %1839 = vmatpush.msra.mxu0 %v1723
    %1840 = vmatpush.msra.mxu0 %v1721
    %1841 = vmatpush.msra.mxu0 %v1719
    %1842 = vmatpush.msra.mxu0 %v1717
    %1843 = vmatpush.msra.mxu0 %v1715
    %1844 = vmatpush.msra.mxu0 %v1713
    %1845 = vmatpush.msra.mxu0 %v1711
    %1846 = vmatmul.f32.gmra.mxu0 %v1808
    %v1847 = vpop.f32.mrf.mxu0
    %v1848 = vadd.f32 %v1729, %v1847
    %1849 = vdwg.mxu0
    %v1851 = vrot.slane %v1828, 6
    %v1853 = vadd.f32 %v1708, %v1851
    %v1854 = vxor.u32 %v1853, 2147483648
    %v1855 = vmul.f32 %v1854, 1.442695
    %v1856 = vpow.pop %v1855
    %v1857 = vadd.f32 %v1856, 1.0
    %v1858 = vrcp.pop %v1857
    %v1859 = vmul.f32 %v1857, %v1858
    %v1860 = vsub.f32 1.0, %v1859
    %v1861 = vmul.f32 %v1858, %v1860
    %v1862 = vadd.f32 %v1858, %v1861
    %vm1863 = vweird.f32 %v1857
    %vm1864 = vweird.f32 %v1858
    %vm1865 = vmor %vm1863, %vm1864
    %v1866 = vsel %vm1865, %v1858, %v1862
    %v1867 = vand.u32 2147483647, %v1857
    %vm1868 = vcmp.eq.f32.partialorder %v1867, 8.507059e+37
    %v1869 = vand.u32 %v1857, 2147483648
    %v1870 = vor.u32 1.1754944e-38, %v1869
    %v1871 = vsel %vm1868, %v1870, %v1866
    %v1872 = vmul.f32 1.0, %v1871
    %v1874 = vrot.slane %v1848, 6
    %v1876 = vmul.f32 %v1872, %v1874
    %v1877 = vadd.f32 %v1709, %v1876
    %v1878 = vtanh.pop %v1877
    %v1879 = vsub.f32 1.0, %v1872
    %1881 = vrot.lane.b32.xlu0 %v1878, 64
    %v1882 = vpop.permute.xlu0 %1881
    %v1884 = vmul.f32 %v1879, %v1882
    %v1885 = vrot.slane %v1804, 6
    %v1887 = vmul.f32 %v1872, %v1885
    %v1888 = vadd.f32 %v1884, %v1887
    %v1890 = vrot.slane %v1888, 2
    %1891 = vrot.lane.b32.xlu0 %v1890, 64
    %v1892 = vpop.permute.xlu0 %1891
    %v1893 = vsel %vm1237, %v1892, 0
    %1895 = vmatpush.msra.mxu0 0.0
    %1896 = vmatpush.msra.mxu0 0.0
    %1897 = vmatpush.msra.mxu0 0.0
    %1898 = vmatpush.msra.mxu0 0.0
    %1899 = vmatpush.msra.mxu0 0.0
    %1900 = vmatpush.msra.mxu0 0.0
    %1901 = vmatpush.msra.mxu0 0.0
    %1902 = vmatpush.msra.mxu0 0.0
    %1903 = vmatpush.msra.mxu0 %v1724
    %1904 = vmatpush.msra.mxu0 %v1722
    %1905 = vmatpush.msra.mxu0 %v1720
    %1906 = vmatpush.msra.mxu0 %v1718
    %1907 = vmatpush.msra.mxu0 %v1716
    %1908 = vmatpush.msra.mxu0 %v1714
    %1909 = vmatpush.msra.mxu0 %v1712
    %1910 = vmatpush.msra.mxu0 %v1710
    %1911 = vmatmul.f32.gmra.mxu0 %v1893
    %v1912 = vpop.f32.mrf.mxu0
    %v1913 = vadd.f32 %v1728, %v1912
    %1914 = vdwg.mxu0
    %1915 = vmatpush.msra.mxu0 0.0
    %1916 = vmatpush.msra.mxu0 0.0
    %1917 = vmatpush.msra.mxu0 0.0
    %1918 = vmatpush.msra.mxu0 0.0
    %1919 = vmatpush.msra.mxu0 0.0
    %1920 = vmatpush.msra.mxu0 0.0
    %1921 = vmatpush.msra.mxu0 0.0
    %1922 = vmatpush.msra.mxu0 0.0
    %1923 = vmatpush.msra.mxu0 %v1725
    %1924 = vmatpush.msra.mxu0 %v1723
    %1925 = vmatpush.msra.mxu0 %v1721
    %1926 = vmatpush.msra.mxu0 %v1719
    %1927 = vmatpush.msra.mxu0 %v1717
    %1928 = vmatpush.msra.mxu0 %v1715
    %1929 = vmatpush.msra.mxu0 %v1713
    %1930 = vmatpush.msra.mxu0 %v1711
    %1931 = vmatmul.f32.gmra.mxu0 %v1893
    %v1932 = vpop.f32.mrf.mxu0
    %v1933 = vadd.f32 %v1729, %v1932
    %1934 = vdwg.mxu0
    %v1936 = vrot.slane %v1913, 4
    %v1938 = vadd.f32 %v1697, %v1936
    %v1939 = vxor.u32 %v1938, 2147483648
    %v1940 = vmul.f32 %v1939, 1.442695
    %v1941 = vpow.pop %v1940
    %v1942 = vadd.f32 %v1941, 1.0
    %v1943 = vrcp.pop %v1942
    %v1944 = vmul.f32 %v1942, %v1943
    %v1945 = vsub.f32 1.0, %v1944
    %v1946 = vmul.f32 %v1943, %v1945
    %v1947 = vadd.f32 %v1943, %v1946
    %vm1948 = vweird.f32 %v1942
    %vm1949 = vweird.f32 %v1943
    %vm1950 = vmor %vm1948, %vm1949
    %v1951 = vsel %vm1950, %v1943, %v1947
    %v1952 = vand.u32 2147483647, %v1942
    %vm1953 = vcmp.eq.f32.partialorder %v1952, 8.507059e+37
    %v1954 = vand.u32 %v1942, 2147483648
    %v1955 = vor.u32 1.1754944e-38, %v1954
    %v1956 = vsel %vm1953, %v1955, %v1951
    %v1957 = vmul.f32 1.0, %v1956
    %v1959 = vrot.slane %v1933, 4
    %v1961 = vmul.f32 %v1957, %v1959
    %v1962 = vadd.f32 %v1702, %v1961
    %v1963 = vtanh.pop %v1962
    %v1964 = vsub.f32 1.0, %v1957
    %1966 = vrot.lane.b32.xlu0 %v1963, 64
    %v1967 = vpop.permute.xlu0 %1966
    %v1969 = vmul.f32 %v1964, %v1967
    %v1970 = vrot.slane %v1888, 6
    %v1972 = vmul.f32 %v1957, %v1970
    %v1973 = vadd.f32 %v1969, %v1972
    %v1976 = vrot.slane %v1973, 4
    %1977 = vrot.lane.b32.xlu0 %v1976, 64
    %v1978 = vpop.permute.xlu0 %1977
    %v1980 = vsel %vm393, %v1807, %v1978
    %1981 = vrot.lane.b32.xlu0 %v1888, 64
    %v1982 = vpop.permute.xlu0 %1981
    %1984 = vrot.lane.b32.xlu0 %v1973, 64
    %v1985 = vpop.permute.xlu0 %1984
    %v1987 = vrot.slane %v1804, 4
    %1988 = vrot.lane.b32.xlu0 %v1987, 64
    %v1989 = vpop.permute.xlu0 %1988
    %v1991 = vsel %vm393, %v1985, %v1989
    %v1992 = vsel %vm346, %v1980, %v1982
    %v1993 = vsel %vm672, %v1992, %v1991
    %v1994 = vld [vmem:[%s53] sm:$0x1]
    %v1995 = vld [vmem:[#allocation16] sm:$0x1]
    %vm1996 = vcmask 521216
    %v1997 = vsel %vm1996, %v1993, 0.0
    %1998 = vadd.xlane.f32.xlu0 %v1997
    %v1999 = vpop.xlane.xlu0 %1998
    %v2000 = vmul.f32 %v1999, %v1195
    %v2001 = vsub.f32 %v1993, %v2000
    %v2002 = vmul.f32 %v2001, %v2001
    %v2003 = vsel %vm1996, %v2002, 0.0
    %2004 = vadd.xlane.f32.xlu0 %v2003
    %v2005 = vpop.xlane.xlu0 %2004
    %v2006 = vmul.f32 %v2005, %v1195
    %v2007 = vadd.f32 %v2006, 1e-05
    %v2008 = vrsqrt.pop %v2007
    %v2009 = vmul.f32 %v2008, %v2007
    %v2010 = vmul.f32 %v2009, %v2008
    %v2011 = vmul.f32 0.5, %v2010
    %v2012 = vsub.f32 1.5, %v2011
    %v2013 = vmul.f32 %v2008, %v2012
    %vm2014 = vweird.f32 %v2007
    %vm2015 = vweird.f32 %v2008
    %vm2016 = vmor %vm2014, %vm2015
    %v2017 = vsel %vm2016, %v2008, %v2013
    %v2018 = vmul.f32 %v2001, %v2017
    %v2020 = vperm.slane %v1994, 0
    %v2022 = vmul.f32 %v2018, %v2020
    %v2024 = vperm.slane %v1995, 0
    %v2026 = vadd.f32 %v2022, %v2024
    %v2027 = vld [vmem:[%s57] sm:$0xff]
    %v2028 = vld [vmem:[%s57 + $0x8] sm:$0xff]
    %v2029 = vld [vmem:[%s57 + $0x10] sm:$0xff]
    %v2030 = vld [vmem:[%s57 + $0x18] sm:$0xff]
    %v2031 = vld [vmem:[%s57 + $0x20] sm:$0xff]
    %v2032 = vld [vmem:[%s57 + $0x28] sm:$0xff]
    %v2033 = vld [vmem:[%s57 + $0x30] sm:$0xff]
    %v2034 = vld [vmem:[%s57 + $0x38] sm:$0xff]
    %v2035 = vld [vmem:[#allocation17] sm:$0x1]
    %v2037 = vperm.slane %v2035, 0
    %v2040 = vsel %vm1237, %v2026, 0
    %2042 = vmatpush.msra.mxu0 0.0
    %2043 = vmatpush.msra.mxu0 0.0
    %2044 = vmatpush.msra.mxu0 0.0
    %2045 = vmatpush.msra.mxu0 0.0
    %2046 = vmatpush.msra.mxu0 0.0
    %2047 = vmatpush.msra.mxu0 0.0
    %2048 = vmatpush.msra.mxu0 0.0
    %2049 = vmatpush.msra.mxu0 0.0
    %2050 = vmatpush.msra.mxu0 %v2034
    %2051 = vmatpush.msra.mxu0 %v2033
    %2052 = vmatpush.msra.mxu0 %v2032
    %2053 = vmatpush.msra.mxu0 %v2031
    %2054 = vmatpush.msra.mxu0 %v2030
    %2055 = vmatpush.msra.mxu0 %v2029
    %2056 = vmatpush.msra.mxu0 %v2028
    %2057 = vmatpush.msra.mxu0 %v2027
    %2058 = vmatmul.f32.gmra.mxu0 %v2040
    %v2059 = vpop.f32.mrf.mxu0
    %v2060 = vadd.f32 %v2037, %v2059
    %2061 = vdwg.mxu0
    %vm2062 = vcmask 62464
    %2063 = vst.msk [vmem:[%s61] sm:$0x3f] %vm2062, %v2060
    %v2065 = vrot.slane %v1973, 2
    %2066 = vrot.lane.b32.xlu0 %v2065, 96
    %v2067 = vpop.permute.xlu0 %2066
    %v2069 = vsel %vm346, %v1976, %v2067
    %2071 = vrot.lane.b32.xlu0 %v2069, 64
    %v2072 = vpop.permute.xlu0 %2071
    %vm2074 = vcmask 257024
    %2075 = vst.msk [vmem:[#allocation19] sm:$0xf] %vm2074, %v2072
    // Predicated region
    $region162: #{sequence_taggle1_forward.1} parent=1 // pred_check
      _
    $region163: #{sequence_taggle1_forward.1} parent=1 // pred_check_branch
      %2077 = sbr.rel (0) target = $region165
    $region164: #{sequence_taggle1_forward.1} parent=1 // pred_region
      _
    $region165: #{sequence_taggle1_forward.1} parent=1 // pred_fallthru
      _
    // Predicated region
    $region166: #{sequence_taggle1_forward.1} parent=1 // pred_check
      _
    $region167: #{sequence_taggle1_forward.1} parent=1 // pred_check_branch
      %2079 = sbr.rel (0) target = $region169
    $region168: #{sequence_taggle1_forward.1} parent=1 // pred_region
      %2081 = vsyncadd [#allocation4], 0
      %s2083 = sshll.u32 [#allocation19], 4
      %s2084 = int_to_ptr.vmem [resolvable:$true] %s2083
      %s2085 = sshll.u32 %s63, 4
      %s2086 = int_to_ptr.hbm [resolvable:$true] %s2085
      %2088 = dma.vmem_to_hbm [thread:$0]  %s2084, 64, %s2086, [#allocation4]
    $region169: #{sequence_taggle1_forward.1} parent=1 // pred_fallthru
      _
    // Predicated region
    $region170: #{sequence_taggle1_forward.1} parent=1 // pred_check
      _
    $region171: #{sequence_taggle1_forward.1} parent=1 // pred_check_branch
      %2090 = sbr.rel (0) target = $region173
    $region172: #{sequence_taggle1_forward.1} parent=1 // pred_region
      _
    $region173: #{sequence_taggle1_forward.1} parent=1 // pred_fallthru
      _
    // Predicated region
    $region174: #{sequence_taggle1_forward.1} parent=1 // pred_check
      _
    $region175: #{sequence_taggle1_forward.1} parent=1 // pred_check_branch
      %2092 = sbr.rel (0) target = $region177
    $region176: #{sequence_taggle1_forward.1} parent=1 // pred_region
      %2094 = dma.done [#allocation4], 64
    $region177: #{sequence_taggle1_forward.1} parent=1 // pred_fallthru
      _
    %2095 = vsyncpa [#allocation3], 1
    %2096 = vsyncpa [#allocation6], 1
    %2097 = vsyncpa [#allocation9], 1
    %2098 = vsyncpa [#allocation12], 1
    %2099 = vsyncpa [#allocation15], 1
    %2100 = vsyncpa [#allocation18], 1
    %2101 = vsyncpa [#allocation4], 1

</llo_original>
